<compile_context>
chip_gen: v7x
topology: tpu7x:2x2x1
jax: 0.10.0
libtpu: 0.0.40
codegen_flags: <defaults>
</compile_context>

<pallas_src>
import math

import jax
import jax.numpy as jnp
from jax.experimental import pallas as pl
from jax.experimental.pallas import tpu as pltpu


def _round_up(x, m):
    return ((x + m - 1) // m) * m


def _anonymizer_kernel(x_ref,
                       w1_ref, b1_ref, w2_ref, b2_ref, w3_ref, b3_ref,
                       w4_ref, b4_ref, w5_ref, b5_ref, w6_ref, b6_ref,
                       o_ref):
    """Full encoder+decoder MLP on one (row_tile, F_pad) tile of rows."""

    def layer(h_bf16, w_ref, b_ref, relu):
        # bf16 operands into the MXU, f32 accumulate / bias-add / ReLU.
        acc = jnp.dot(h_bf16, w_ref[...],
                      preferred_element_type=jnp.float32) + b_ref[...]
        if relu:
            acc = jnp.maximum(acc, 0.0)
        return acc

    h = x_ref[...]                                            # bf16

    # Encoder: fc1 -> relu, fc2 -> relu, fc3 -> relu
    h = layer(h, w1_ref, b1_ref, True).astype(jnp.bfloat16)
    h = layer(h, w2_ref, b2_ref, True).astype(jnp.bfloat16)
    h = layer(h, w3_ref, b3_ref, True).astype(jnp.bfloat16)

    # Decoder: fc1 -> relu, fc2 -> relu, fc3 (no relu)
    h = layer(h, w4_ref, b4_ref, True).astype(jnp.bfloat16)
    h = layer(h, w5_ref, b5_ref, True).astype(jnp.bfloat16)
    out = layer(h, w6_ref, b6_ref, False)                     # f32

    o_ref[...] = out.astype(o_ref.dtype)


def anonymizer_forward(x, params, *, row_tile=256):
    """x: (N, C, T, V, M) float32. Returns (N, C, T, V, M) float32."""
    N, C, T, V, M = x.shape
    F = C * V * M
    rows = N * T

    # torch: permute(0,2,1,3,4).contiguous().view(N, T, C*V*M)
    x_flat = jnp.transpose(x, (0, 2, 1, 3, 4)).reshape(rows, F)

    # ---- lane-dense padding (multiples of 128) + row-tile sizing ----------
    F_pad = _round_up(F, 128)

    # Keep at least 2 grid steps when there's enough work so the "parallel"
    # axis can shard across both TensorCores on v7x; never drop below 128 rows
    # (one MXU M-tile).
    if rows >= 2 * 128:
        row_tile = min(row_tile, _round_up(pl.cdiv(rows, 2), 128))
    rows_pad = _round_up(rows, row_tile)
    grid_rows = rows_pad // row_tile

    x_pad = jnp.pad(x_flat, ((0, rows_pad - rows), (0, F_pad - F)))
    x_pad = x_pad.astype(jnp.bfloat16)

    # Pad weights/biases to 128-multiples; weights -> bf16, biases stay f32.
    # (Constant index_maps mean Pallas DMAs each weight block only once.)
    weight_specs = []
    flat_params = []
    for (w, b) in params:
        di, do = w.shape
        di_p, do_p = _round_up(di, 128), _round_up(do, 128)
        w_p = jnp.pad(w, ((0, di_p - di), (0, do_p - do))).astype(jnp.bfloat16)
        b_p = jnp.pad(b, ((0, 0), (0, do_p - do))).astype(jnp.float32)
        weight_specs.append(pl.BlockSpec(w_p.shape, lambda i: (0, 0)))
        weight_specs.append(pl.BlockSpec(b_p.shape, lambda i: (0, 0)))
        flat_params.append(w_p)
        flat_params.append(b_p)

    out_pad = pl.pallas_call(
        _anonymizer_kernel,
        out_shape=jax.ShapeDtypeStruct((rows_pad, F_pad), jnp.float32),
        grid_spec=pltpu.PrefetchScalarGridSpec(
            num_scalar_prefetch=0,
            grid=(grid_rows,),
            in_specs=[pl.BlockSpec((row_tile, F_pad), lambda i: (i, 0))]
                     + weight_specs,
            out_specs=pl.BlockSpec((row_tile, F_pad), lambda i: (i, 0)),
        ),
        compiler_params=pltpu.CompilerParams(
            dimension_semantics=("parallel",)),
    )(x_pad, *flat_params)

    # Strip padding, then view(N,T,C,V,M).permute(0,2,1,3,4) -> (N,C,T,V,M)
    out_flat = out_pad[:rows, :F]
    out = out_flat.reshape(N, T, C, V, M)
    return jnp.transpose(out, (0, 2, 1, 3, 4))


def init_linear(key, in_dim, out_dim):
    """Deterministic init mimicking torch.nn.Linear default (uniform +/- 1/sqrt(in))."""
    kw, kb = jax.random.split(key)
    bound = 1.0 / math.sqrt(in_dim)
    # stored as (in, out) so the kernel does x @ W
    w = jax.random.uniform(kw, (in_dim, out_dim), jnp.float32, -bound, bound)
    b = jax.random.uniform(kb, (1, out_dim), jnp.float32, -bound, bound)
    return w, b


def make_params(num_point, num_person, in_channels, embedding_dim=10):
    num_features = num_person * num_point * in_channels
    dims = [
        (num_features, 500),   # encoder fc1
        (500, 100),            # encoder fc2
        (100, embedding_dim),  # encoder fc3
        (embedding_dim, 100),  # decoder fc1
        (100, 500),            # decoder fc2
        (500, num_features),   # decoder fc3
    ]
    keys = jax.random.split(jax.random.PRNGKey(42), len(dims))
    return [init_linear(k, di, do) for k, (di, do) in zip(keys, dims)]


def reference_forward(x, params):
    """Pure-JAX f32 reference matching the PyTorch forward."""
    N, C, T, V, M = x.shape
    F = C * V * M
    h = jnp.transpose(x, (0, 2, 1, 3, 4)).reshape(N * T, F)
    relu = lambda a: jnp.maximum(a, 0.0)
    (w1, b1), (w2, b2), (w3, b3), (w4, b4), (w5, b5), (w6, b6) = params
    h = relu(h @ w1 + b1)
    h = relu(h @ w2 + b2)
    h = relu(h @ w3 + b3)
    h = relu(h @ w4 + b4)
    h = relu(h @ w5 + b5)
    h = h @ w6 + b6
    return jnp.transpose(h.reshape(N, T, C, V, M), (0, 2, 1, 3, 4))


if __name__ == "__main__":
    # Small shapes: N=2 batch, C=3 channels, T=8 frames, V=4 joints, M=2 persons
    N, C, T, V, M = 2, 3, 8, 4, 2
    num_point, num_person, in_channels = V, M, C

    x = jax.random.normal(jax.random.PRNGKey(0), (N, C, T, V, M), jnp.float32)
    params = make_params(num_point, num_person, in_channels)

    out = anonymizer_forward(x, params)
    out = jax.block_until_ready(out)

    ref = reference_forward(x, params)
    assert out.shape == (N, C, T, V, M), out.shape
    # bf16 matmul operands (f32 accumulate) => loosened tolerance vs f32 ref.
    assert jnp.allclose(out, ref, atol=2e-2, rtol=2e-2), "mismatch vs reference"

    print("KERNEL_OK")
</pallas_src>

<mosaic_0001>
module attributes {stable_mosaic.version = 11 : i64} {
  func.func @_anonymizer_kernel(%arg0: i32, %arg1: memref<256x128xbf16, #tpu.memory_space<vmem>>, %arg2: memref<128x512xbf16, #tpu.memory_space<vmem>>, %arg3: memref<1x512xf32, #tpu.memory_space<vmem>>, %arg4: memref<512x128xbf16, #tpu.memory_space<vmem>>, %arg5: memref<1x128xf32, #tpu.memory_space<vmem>>, %arg6: memref<128x128xbf16, #tpu.memory_space<vmem>>, %arg7: memref<1x128xf32, #tpu.memory_space<vmem>>, %arg8: memref<128x128xbf16, #tpu.memory_space<vmem>>, %arg9: memref<1x128xf32, #tpu.memory_space<vmem>>, %arg10: memref<128x512xbf16, #tpu.memory_space<vmem>>, %arg11: memref<1x512xf32, #tpu.memory_space<vmem>>, %arg12: memref<512x128xbf16, #tpu.memory_space<vmem>>, %arg13: memref<1x128xf32, #tpu.memory_space<vmem>>, %arg14: memref<256x128xf32, #tpu.memory_space<vmem>>) attributes {dimension_semantics = [#tpu.dimension_semantics<parallel>], iteration_bounds = array<i64: 1>, scalar_prefetch = 0 : i64, scratch_operands = 0 : i64, tpu.core_type = #tpu.core_type<tc>, window_params = [{transform_indices = @transform_0, window_bounds = array<i64: 256, 128>}, {pipeline_mode = #tpu.pipeline_mode<synchronous>, transform_indices = @transform_1, window_bounds = array<i64: 128, 512>}, {pipeline_mode = #tpu.pipeline_mode<synchronous>, transform_indices = @transform_2, window_bounds = array<i64: 1, 512>}, {pipeline_mode = #tpu.pipeline_mode<synchronous>, transform_indices = @transform_3, window_bounds = array<i64: 512, 128>}, {pipeline_mode = #tpu.pipeline_mode<synchronous>, transform_indices = @transform_4, window_bounds = array<i64: 1, 128>}, {pipeline_mode = #tpu.pipeline_mode<synchronous>, transform_indices = @transform_5, window_bounds = array<i64: 128, 128>}, {pipeline_mode = #tpu.pipeline_mode<synchronous>, transform_indices = @transform_6, window_bounds = array<i64: 1, 128>}, {pipeline_mode = #tpu.pipeline_mode<synchronous>, transform_indices = @transform_7, window_bounds = array<i64: 128, 128>}, {pipeline_mode = #tpu.pipeline_mode<synchronous>, transform_indices = @transform_8, window_bounds = array<i64: 1, 128>}, {pipeline_mode = #tpu.pipeline_mode<synchronous>, transform_indices = @transform_9, window_bounds = array<i64: 128, 512>}, {pipeline_mode = #tpu.pipeline_mode<synchronous>, transform_indices = @transform_10, window_bounds = array<i64: 1, 512>}, {pipeline_mode = #tpu.pipeline_mode<synchronous>, transform_indices = @transform_11, window_bounds = array<i64: 512, 128>}, {pipeline_mode = #tpu.pipeline_mode<synchronous>, transform_indices = @transform_12, window_bounds = array<i64: 1, 128>}, {transform_indices = @transform_13, window_bounds = array<i64: 256, 128>}]} {
    %c0 = arith.constant 0 : index
    %c0_0 = arith.constant 0 : index
    %0 = vector.load %arg1[%c0, %c0_0] : memref<256x128xbf16, #tpu.memory_space<vmem>>, vector<256x128xbf16>
    %c0_1 = arith.constant 0 : index
    %c0_2 = arith.constant 0 : index
    %1 = vector.load %arg2[%c0_1, %c0_2] : memref<128x512xbf16, #tpu.memory_space<vmem>>, vector<128x512xbf16>
    %cst = arith.constant dense<0.000000e+00> : vector<256x512xf32>
    %2 = tpu.matmul %0, %1, %cst {dimension_numbers = #tpu.dot_dimension_numbers<[1], [0], [0], [1], [0, 0, 1, 1], [], []>} : vector<256x128xbf16>, vector<128x512xbf16>, vector<256x512xf32> -> vector<256x512xf32>
    %c0_3 = arith.constant 0 : index
    %c0_4 = arith.constant 0 : index
    %3 = vector.load %arg3[%c0_3, %c0_4] : memref<1x512xf32, #tpu.memory_space<vmem>>, vector<1x512xf32>
    %4 = vector.broadcast %3 : vector<1x512xf32> to vector<256x512xf32>
    %5 = arith.addf %2, %4 : vector<256x512xf32>
    %cst_5 = arith.constant 0.000000e+00 : f32
    %6 = vector.broadcast %cst_5 : f32 to vector<256x512xf32>
    %7 = arith.maximumf %5, %6 : vector<256x512xf32>
    %8 = arith.truncf %7 : vector<256x512xf32> to vector<256x512xbf16>
    %c0_6 = arith.constant 0 : index
    %c0_7 = arith.constant 0 : index
    %9 = vector.load %arg4[%c0_6, %c0_7] : memref<512x128xbf16, #tpu.memory_space<vmem>>, vector<512x128xbf16>
    %cst_8 = arith.constant dense<0.000000e+00> : vector<256x128xf32>
    %10 = tpu.matmul %8, %9, %cst_8 {dimension_numbers = #tpu.dot_dimension_numbers<[1], [0], [0], [1], [0, 0, 1, 1], [], []>} : vector<256x512xbf16>, vector<512x128xbf16>, vector<256x128xf32> -> vector<256x128xf32>
    %c0_9 = arith.constant 0 : index
    %c0_10 = arith.constant 0 : index
    %11 = vector.load %arg5[%c0_9, %c0_10] : memref<1x128xf32, #tpu.memory_space<vmem>>, vector<1x128xf32>
    %12 = vector.broadcast %11 : vector<1x128xf32> to vector<256x128xf32>
    %13 = arith.addf %10, %12 : vector<256x128xf32>
    %cst_11 = arith.constant 0.000000e+00 : f32
    %14 = vector.broadcast %cst_11 : f32 to vector<256x128xf32>
    %15 = arith.maximumf %13, %14 : vector<256x128xf32>
    %16 = arith.truncf %15 : vector<256x128xf32> to vector<256x128xbf16>
    %c0_12 = arith.constant 0 : index
    %c0_13 = arith.constant 0 : index
    %17 = vector.load %arg6[%c0_12, %c0_13] : memref<128x128xbf16, #tpu.memory_space<vmem>>, vector<128x128xbf16>
    %cst_14 = arith.constant dense<0.000000e+00> : vector<256x128xf32>
    %18 = tpu.matmul %16, %17, %cst_14 {dimension_numbers = #tpu.dot_dimension_numbers<[1], [0], [0], [1], [0, 0, 1, 1], [], []>} : vector<256x128xbf16>, vector<128x128xbf16>, vector<256x128xf32> -> vector<256x128xf32>
    %c0_15 = arith.constant 0 : index
    %c0_16 = arith.constant 0 : index
    %19 = vector.load %arg7[%c0_15, %c0_16] : memref<1x128xf32, #tpu.memory_space<vmem>>, vector<1x128xf32>
    %20 = vector.broadcast %19 : vector<1x128xf32> to vector<256x128xf32>
    %21 = arith.addf %18, %20 : vector<256x128xf32>
    %cst_17 = arith.constant 0.000000e+00 : f32
    %22 = vector.broadcast %cst_17 : f32 to vector<256x128xf32>
    %23 = arith.maximumf %21, %22 : vector<256x128xf32>
    %24 = arith.truncf %23 : vector<256x128xf32> to vector<256x128xbf16>
    %c0_18 = arith.constant 0 : index
    %c0_19 = arith.constant 0 : index
    %25 = vector.load %arg8[%c0_18, %c0_19] : memref<128x128xbf16, #tpu.memory_space<vmem>>, vector<128x128xbf16>
    %cst_20 = arith.constant dense<0.000000e+00> : vector<256x128xf32>
    %26 = tpu.matmul %24, %25, %cst_20 {dimension_numbers = #tpu.dot_dimension_numbers<[1], [0], [0], [1], [0, 0, 1, 1], [], []>} : vector<256x128xbf16>, vector<128x128xbf16>, vector<256x128xf32> -> vector<256x128xf32>
    %c0_21 = arith.constant 0 : index
    %c0_22 = arith.constant 0 : index
    %27 = vector.load %arg9[%c0_21, %c0_22] : memref<1x128xf32, #tpu.memory_space<vmem>>, vector<1x128xf32>
    %28 = vector.broadcast %27 : vector<1x128xf32> to vector<256x128xf32>
    %29 = arith.addf %26, %28 : vector<256x128xf32>
    %cst_23 = arith.constant 0.000000e+00 : f32
    %30 = vector.broadcast %cst_23 : f32 to vector<256x128xf32>
    %31 = arith.maximumf %29, %30 : vector<256x128xf32>
    %32 = arith.truncf %31 : vector<256x128xf32> to vector<256x128xbf16>
    %c0_24 = arith.constant 0 : index
    %c0_25 = arith.constant 0 : index
    %33 = vector.load %arg10[%c0_24, %c0_25] : memref<128x512xbf16, #tpu.memory_space<vmem>>, vector<128x512xbf16>
    %cst_26 = arith.constant dense<0.000000e+00> : vector<256x512xf32>
    %34 = tpu.matmul %32, %33, %cst_26 {dimension_numbers = #tpu.dot_dimension_numbers<[1], [0], [0], [1], [0, 0, 1, 1], [], []>} : vector<256x128xbf16>, vector<128x512xbf16>, vector<256x512xf32> -> vector<256x512xf32>
    %c0_27 = arith.constant 0 : index
    %c0_28 = arith.constant 0 : index
    %35 = vector.load %arg11[%c0_27, %c0_28] : memref<1x512xf32, #tpu.memory_space<vmem>>, vector<1x512xf32>
    %36 = vector.broadcast %35 : vector<1x512xf32> to vector<256x512xf32>
    %37 = arith.addf %34, %36 : vector<256x512xf32>
    %cst_29 = arith.constant 0.000000e+00 : f32
    %38 = vector.broadcast %cst_29 : f32 to vector<256x512xf32>
    %39 = arith.maximumf %37, %38 : vector<256x512xf32>
    %40 = arith.truncf %39 : vector<256x512xf32> to vector<256x512xbf16>
    %c0_30 = arith.constant 0 : index
    %c0_31 = arith.constant 0 : index
    %41 = vector.load %arg12[%c0_30, %c0_31] : memref<512x128xbf16, #tpu.memory_space<vmem>>, vector<512x128xbf16>
    %cst_32 = arith.constant dense<0.000000e+00> : vector<256x128xf32>
    %42 = tpu.matmul %40, %41, %cst_32 {dimension_numbers = #tpu.dot_dimension_numbers<[1], [0], [0], [1], [0, 0, 1, 1], [], []>} : vector<256x512xbf16>, vector<512x128xbf16>, vector<256x128xf32> -> vector<256x128xf32>
    %c0_33 = arith.constant 0 : index
    %c0_34 = arith.constant 0 : index
    %43 = vector.load %arg13[%c0_33, %c0_34] : memref<1x128xf32, #tpu.memory_space<vmem>>, vector<1x128xf32>
    %44 = vector.broadcast %43 : vector<1x128xf32> to vector<256x128xf32>
    %45 = arith.addf %42, %44 : vector<256x128xf32>
    %c0_35 = arith.constant 0 : index
    %c0_36 = arith.constant 0 : index
    %46 = vector.load %arg14[%c0_35, %c0_36] : memref<256x128xf32, #tpu.memory_space<vmem>>, vector<256x128xf32>
    tpu.vector_store %arg14[%c0_35, %c0_36], %45 {strides = array<i32>} : memref<256x128xf32, #tpu.memory_space<vmem>>, vector<256x128xf32>,
    return
  }
  func.func @transform_0(%arg0: i32) -> (i32, i32) {
    %c0_i32 = arith.constant 0 : i32
    %c0_i32_0 = arith.constant 0 : i32
    return %arg0, %c0_i32 : i32, i32
  }
  func.func @transform_1(%arg0: i32) -> (i32, i32) {
    %c0_i32 = arith.constant 0 : i32
    %c0_i32_0 = arith.constant 0 : i32
    %c0_i32_1 = arith.constant 0 : i32
    return %c0_i32, %c0_i32_0 : i32, i32
  }
  func.func @transform_2(%arg0: i32) -> (i32, i32) {
    %c0_i32 = arith.constant 0 : i32
    %c0_i32_0 = arith.constant 0 : i32
    %c0_i32_1 = arith.constant 0 : i32
    return %c0_i32, %c0_i32_0 : i32, i32
  }
  func.func @transform_3(%arg0: i32) -> (i32, i32) {
    %c0_i32 = arith.constant 0 : i32
    %c0_i32_0 = arith.constant 0 : i32
    %c0_i32_1 = arith.constant 0 : i32
    return %c0_i32, %c0_i32_0 : i32, i32
  }
  func.func @transform_4(%arg0: i32) -> (i32, i32) {
    %c0_i32 = arith.constant 0 : i32
    %c0_i32_0 = arith.constant 0 : i32
    %c0_i32_1 = arith.constant 0 : i32
    return %c0_i32, %c0_i32_0 : i32, i32
  }
  func.func @transform_5(%arg0: i32) -> (i32, i32) {
    %c0_i32 = arith.constant 0 : i32
    %c0_i32_0 = arith.constant 0 : i32
    %c0_i32_1 = arith.constant 0 : i32
    return %c0_i32, %c0_i32_0 : i32, i32
  }
  func.func @transform_6(%arg0: i32) -> (i32, i32) {
    %c0_i32 = arith.constant 0 : i32
    %c0_i32_0 = arith.constant 0 : i32
    %c0_i32_1 = arith.constant 0 : i32
    return %c0_i32, %c0_i32_0 : i32, i32
  }
  func.func @transform_7(%arg0: i32) -> (i32, i32) {
    %c0_i32 = arith.constant 0 : i32
    %c0_i32_0 = arith.constant 0 : i32
    %c0_i32_1 = arith.constant 0 : i32
    return %c0_i32, %c0_i32_0 : i32, i32
  }
  func.func @transform_8(%arg0: i32) -> (i32, i32) {
    %c0_i32 = arith.constant 0 : i32
    %c0_i32_0 = arith.constant 0 : i32
    %c0_i32_1 = arith.constant 0 : i32
    return %c0_i32, %c0_i32_0 : i32, i32
  }
  func.func @transform_9(%arg0: i32) -> (i32, i32) {
    %c0_i32 = arith.constant 0 : i32
    %c0_i32_0 = arith.constant 0 : i32
    %c0_i32_1 = arith.constant 0 : i32
    return %c0_i32, %c0_i32_0 : i32, i32
  }
  func.func @transform_10(%arg0: i32) -> (i32, i32) {
    %c0_i32 = arith.constant 0 : i32
    %c0_i32_0 = arith.constant 0 : i32
    %c0_i32_1 = arith.constant 0 : i32
    return %c0_i32, %c0_i32_0 : i32, i32
  }
  func.func @transform_11(%arg0: i32) -> (i32, i32) {
    %c0_i32 = arith.constant 0 : i32
    %c0_i32_0 = arith.constant 0 : i32
    %c0_i32_1 = arith.constant 0 : i32
    return %c0_i32, %c0_i32_0 : i32, i32
  }
  func.func @transform_12(%arg0: i32) -> (i32, i32) {
    %c0_i32 = arith.constant 0 : i32
    %c0_i32_0 = arith.constant 0 : i32
    %c0_i32_1 = arith.constant 0 : i32
    return %c0_i32, %c0_i32_0 : i32, i32
  }
  func.func @transform_13(%arg0: i32) -> (i32, i32) {
    %c0_i32 = arith.constant 0 : i32
    %c0_i32_0 = arith.constant 0 : i32
    return %arg0, %c0_i32 : i32, i32
  }
}

</mosaic_0001>

<llo_original>
// kernel: tpu_custom_call.1
$region0: #{tpu_custom_call.1}
  #allocation0 [shape = 'u32[]', space=smem, size = 0x4, offset = 0x4, fixed_abs, tag = 'smem constant byte address 0x4 - core index']
  #allocation1 [shape = 'u32[144,128]{1,0:T(1,128)}', space=vmem, size = 0x12000, scoped, tag = 'internal scratch']
  %s0 = inlined_call_operand.hbm [shape: bf16[256,128], index: 0, kind: input, shape index: {}]
  %s1 = inlined_call_operand.hbm [shape: bf16[128,512], index: 1, kind: input, shape index: {}]
  %s2 = inlined_call_operand.vmem [shape: f32[1,512], index: 2, kind: input, shape index: {}]
  %s3 = inlined_call_operand.hbm [shape: bf16[512,128], index: 3, kind: input, shape index: {}]
  %s4 = inlined_call_operand.vmem [shape: f32[1,128], index: 4, kind: input, shape index: {}]
  %s5 = inlined_call_operand.hbm [shape: bf16[128,128], index: 5, kind: input, shape index: {}]
  %s6 = inlined_call_operand.vmem [shape: f32[1,128], index: 6, kind: input, shape index: {}]
  %s7 = inlined_call_operand.hbm [shape: bf16[128,128], index: 7, kind: input, shape index: {}]
  %s8 = inlined_call_operand.vmem [shape: f32[1,128], index: 8, kind: input, shape index: {}]
  %s9 = inlined_call_operand.hbm [shape: bf16[128,512], index: 9, kind: input, shape index: {}]
  %s10 = inlined_call_operand.vmem [shape: f32[1,512], index: 10, kind: input, shape index: {}]
  %s11 = inlined_call_operand.hbm [shape: bf16[512,128], index: 11, kind: input, shape index: {}]
  %s12 = inlined_call_operand.vmem [shape: f32[1,128], index: 12, kind: input, shape index: {}]
  %s13 = inlined_call_operand.hbm [shape: f32[256,128], index: 13, kind: output, shape index: {}]
  %s14 = sld [smem:[#allocation0]]
  $region90: #{tpu_custom_call.1} parent=0
    _
  %s16 = ssub.s32 1, %s14
  %s17 = scalar_select 0, %s16, %s14
  $region1: #{tpu_custom_call.1} parent=0
    #allocation2 [shape = 'u8[65536]{0}', space=vmem, size = 0x10000, scoped, tag = 'input window, operand 0, single buffered']
    #allocation3 [shape = 's32[1]{0}', space=sflag, size = 0x4, scoped, tag = 'scoped memory for tpu_custom_call.1']
    #allocation4 [shape = 's32[1]{0}', space=sflag, size = 0x4, scoped, tag = 'scoped memory for tpu_custom_call.1']
    #allocation5 [shape = 'u8[131072]{0}', space=vmem, size = 0x20000, scoped, tag = 'input window, operand 1, single buffered']
    #allocation6 [shape = 's32[1]{0}', space=sflag, size = 0x4, scoped, tag = 'scoped memory for tpu_custom_call.1']
    #allocation7 [shape = 'u8[131072]{0}', space=vmem, size = 0x20000, scoped, tag = 'input window, operand 3, single buffered']
    #allocation8 [shape = 'u8[32768]{0}', space=vmem, size = 0x8000, scoped, tag = 'input window, operand 5, single buffered']
    #allocation9 [shape = 's32[1]{0}', space=sflag, size = 0x4, scoped, tag = 'scoped memory for tpu_custom_call.1']
    #allocation10 [shape = 'u8[32768]{0}', space=vmem, size = 0x8000, scoped, tag = 'input window, operand 7, single buffered']
    #allocation11 [shape = 'u8[131072]{0}', space=vmem, size = 0x20000, scoped, tag = 'input window, operand 9, single buffered']
    #allocation12 [shape = 's32[1]{0}', space=sflag, size = 0x4, scoped, tag = 'scoped memory for tpu_custom_call.1']
    #allocation13 [shape = 'u8[131072]{0}', space=vmem, size = 0x20000, scoped, tag = 'input window, operand 11, single buffered']
    #allocation14 [shape = 'u8[131072]{0}', space=vmem, size = 0x20000, scoped, tag = 'output window, operand 0, single buffered']
    %18 = vsyncpa [#allocation3], 0
    %19 = vsyncpa [#allocation6], 0
    %20 = vsyncpa [#allocation9], 0
    %21 = vsyncpa [#allocation12], 0
    %22 = vsyncpa [#allocation4], 0
    // Predicated region
    $region2: #{tpu_custom_call.1} parent=1 // pred_check
      _
    $region3: #{tpu_custom_call.1} parent=1 // pred_check_branch
      %24 = sbr.rel (0) target = $region5
    $region4: #{tpu_custom_call.1} parent=1 // pred_region
      %s26 = ssub.s32 2048, 2048
      %27 = vsyncadd [#allocation3], %s26
      %s28 = sshll.u32 [#allocation2], 4
      %s29 = int_to_ptr.vmem [resolvable:$true] %s28
      %34 = dma.hbm_to_vmem [thread:$0]  %s0, 2048, %s29, [#allocation3], 64, 64, 4
    $region5: #{tpu_custom_call.1} parent=1 // pred_fallthru
      _
    // Predicated region
    $region6: #{tpu_custom_call.1} parent=1 // pred_check
      _
    $region7: #{tpu_custom_call.1} parent=1 // pred_check_branch
      %36 = sbr.rel (0) target = $region9
    $region8: #{tpu_custom_call.1} parent=1 // pred_region
      %s38 = ssub.s32 4096, 4096
      %39 = vsyncadd [#allocation6], %s38
      %s40 = sshll.u32 [#allocation5], 4
      %s41 = int_to_ptr.vmem [resolvable:$true] %s40
      %46 = dma.hbm_to_vmem [thread:$0]  %s1, 4096, %s41, [#allocation6], 256, 256, 16
    $region9: #{tpu_custom_call.1} parent=1 // pred_fallthru
      _
    // Predicated region
    $region10: #{tpu_custom_call.1} parent=1 // pred_check
      _
    $region11: #{tpu_custom_call.1} parent=1 // pred_check_branch
      %48 = sbr.rel (0) target = $region13
    $region12: #{tpu_custom_call.1} parent=1 // pred_region
      _
    $region13: #{tpu_custom_call.1} parent=1 // pred_fallthru
      _
    // Predicated region
    $region14: #{tpu_custom_call.1} parent=1 // pred_check
      _
    $region15: #{tpu_custom_call.1} parent=1 // pred_check_branch
      %50 = sbr.rel (0) target = $region17
    $region16: #{tpu_custom_call.1} parent=1 // pred_region
      %s52 = ssub.s32 4096, 4096
      %53 = vsyncadd [#allocation6], %s52
      %s54 = sshll.u32 [#allocation7], 4
      %s55 = int_to_ptr.vmem [resolvable:$true] %s54
      %60 = dma.hbm_to_vmem [thread:$0]  %s3, 4096, %s55, [#allocation6], 64, 64, 4
    $region17: #{tpu_custom_call.1} parent=1 // pred_fallthru
      _
    // Predicated region
    $region18: #{tpu_custom_call.1} parent=1 // pred_check
      _
    $region19: #{tpu_custom_call.1} parent=1 // pred_check_branch
      %62 = sbr.rel (0) target = $region21
    $region20: #{tpu_custom_call.1} parent=1 // pred_region
      _
    $region21: #{tpu_custom_call.1} parent=1 // pred_fallthru
      _
    // Predicated region
    $region22: #{tpu_custom_call.1} parent=1 // pred_check
      _
    $region23: #{tpu_custom_call.1} parent=1 // pred_check_branch
      %64 = sbr.rel (0) target = $region25
    $region24: #{tpu_custom_call.1} parent=1 // pred_region
      %s66 = ssub.s32 1024, 1024
      %67 = vsyncadd [#allocation9], %s66
      %s68 = sshll.u32 [#allocation8], 4
      %s69 = int_to_ptr.vmem [resolvable:$true] %s68
      %74 = dma.hbm_to_vmem [thread:$0]  %s5, 1024, %s69, [#allocation9], 64, 64, 4
    $region25: #{tpu_custom_call.1} parent=1 // pred_fallthru
      _
    // Predicated region
    $region26: #{tpu_custom_call.1} parent=1 // pred_check
      _
    $region27: #{tpu_custom_call.1} parent=1 // pred_check_branch
      %76 = sbr.rel (0) target = $region29
    $region28: #{tpu_custom_call.1} parent=1 // pred_region
      _
    $region29: #{tpu_custom_call.1} parent=1 // pred_fallthru
      _
    // Predicated region
    $region30: #{tpu_custom_call.1} parent=1 // pred_check
      _
    $region31: #{tpu_custom_call.1} parent=1 // pred_check_branch
      %78 = sbr.rel (0) target = $region33
    $region32: #{tpu_custom_call.1} parent=1 // pred_region
      %s80 = ssub.s32 1024, 1024
      %81 = vsyncadd [#allocation9], %s80
      %s82 = sshll.u32 [#allocation10], 4
      %s83 = int_to_ptr.vmem [resolvable:$true] %s82
      %88 = dma.hbm_to_vmem [thread:$0]  %s7, 1024, %s83, [#allocation9], 64, 64, 4
    $region33: #{tpu_custom_call.1} parent=1 // pred_fallthru
      _
    // Predicated region
    $region34: #{tpu_custom_call.1} parent=1 // pred_check
      _
    $region35: #{tpu_custom_call.1} parent=1 // pred_check_branch
      %90 = sbr.rel (0) target = $region37
    $region36: #{tpu_custom_call.1} parent=1 // pred_region
      _
    $region37: #{tpu_custom_call.1} parent=1 // pred_fallthru
      _
    // Predicated region
    $region38: #{tpu_custom_call.1} parent=1 // pred_check
      _
    $region39: #{tpu_custom_call.1} parent=1 // pred_check_branch
      %92 = sbr.rel (0) target = $region41
    $region40: #{tpu_custom_call.1} parent=1 // pred_region
      %s94 = ssub.s32 4096, 4096
      %95 = vsyncadd [#allocation12], %s94
      %s96 = sshll.u32 [#allocation11], 4
      %s97 = int_to_ptr.vmem [resolvable:$true] %s96
      %102 = dma.hbm_to_vmem [thread:$0]  %s9, 4096, %s97, [#allocation12], 256, 256, 16
    $region41: #{tpu_custom_call.1} parent=1 // pred_fallthru
      _
    // Predicated region
    $region42: #{tpu_custom_call.1} parent=1 // pred_check
      _
    $region43: #{tpu_custom_call.1} parent=1 // pred_check_branch
      %104 = sbr.rel (0) target = $region45
    $region44: #{tpu_custom_call.1} parent=1 // pred_region
      _
    $region45: #{tpu_custom_call.1} parent=1 // pred_fallthru
      _
    // Predicated region
    $region46: #{tpu_custom_call.1} parent=1 // pred_check
      _
    $region47: #{tpu_custom_call.1} parent=1 // pred_check_branch
      %106 = sbr.rel (0) target = $region49
    $region48: #{tpu_custom_call.1} parent=1 // pred_region
      %s108 = ssub.s32 4096, 4096
      %109 = vsyncadd [#allocation12], %s108
      %s110 = sshll.u32 [#allocation13], 4
      %s111 = int_to_ptr.vmem [resolvable:$true] %s110
      %116 = dma.hbm_to_vmem [thread:$0]  %s11, 4096, %s111, [#allocation12], 64, 64, 4
    $region49: #{tpu_custom_call.1} parent=1 // pred_fallthru
      _
    // Predicated region
    $region50: #{tpu_custom_call.1} parent=1 // pred_check
      _
    $region51: #{tpu_custom_call.1} parent=1 // pred_check_branch
      %118 = sbr.rel (0) target = $region53
    $region52: #{tpu_custom_call.1} parent=1 // pred_region
      _
    $region53: #{tpu_custom_call.1} parent=1 // pred_fallthru
      _
    // Predicated region
    $region54: #{tpu_custom_call.1} parent=1 // pred_check
      _
    $region55: #{tpu_custom_call.1} parent=1 // pred_check_branch
      %120 = sbr.rel (0) target = $region57
    $region56: #{tpu_custom_call.1} parent=1 // pred_region
      %121 = dma.done [#allocation3], 2048
    $region57: #{tpu_custom_call.1} parent=1 // pred_fallthru
      _
    // Predicated region
    $region58: #{tpu_custom_call.1} parent=1 // pred_check
      _
    $region59: #{tpu_custom_call.1} parent=1 // pred_check_branch
      %123 = sbr.rel (0) target = $region61
    $region60: #{tpu_custom_call.1} parent=1 // pred_region
      %124 = dma.done [#allocation6], 4096
    $region61: #{tpu_custom_call.1} parent=1 // pred_fallthru
      _
    // Predicated region
    $region62: #{tpu_custom_call.1} parent=1 // pred_check
      _
    $region63: #{tpu_custom_call.1} parent=1 // pred_check_branch
      %126 = sbr.rel (0) target = $region65
    $region64: #{tpu_custom_call.1} parent=1 // pred_region
      %127 = dma.done [#allocation6], 4096
    $region65: #{tpu_custom_call.1} parent=1 // pred_fallthru
      _
    // Predicated region
    $region66: #{tpu_custom_call.1} parent=1 // pred_check
      _
    $region67: #{tpu_custom_call.1} parent=1 // pred_check_branch
      %129 = sbr.rel (0) target = $region69
    $region68: #{tpu_custom_call.1} parent=1 // pred_region
      %130 = dma.done [#allocation9], 1024
    $region69: #{tpu_custom_call.1} parent=1 // pred_fallthru
      _
    // Predicated region
    $region70: #{tpu_custom_call.1} parent=1 // pred_check
      _
    $region71: #{tpu_custom_call.1} parent=1 // pred_check_branch
      %132 = sbr.rel (0) target = $region73
    $region72: #{tpu_custom_call.1} parent=1 // pred_region
      %133 = dma.done [#allocation9], 1024
    $region73: #{tpu_custom_call.1} parent=1 // pred_fallthru
      _
    // Predicated region
    $region74: #{tpu_custom_call.1} parent=1 // pred_check
      _
    $region75: #{tpu_custom_call.1} parent=1 // pred_check_branch
      %135 = sbr.rel (0) target = $region77
    $region76: #{tpu_custom_call.1} parent=1 // pred_region
      %136 = dma.done [#allocation12], 4096
    $region77: #{tpu_custom_call.1} parent=1 // pred_fallthru
      _
    // Predicated region
    $region78: #{tpu_custom_call.1} parent=1 // pred_check
      _
    $region79: #{tpu_custom_call.1} parent=1 // pred_check_branch
      %138 = sbr.rel (0) target = $region81
    $region80: #{tpu_custom_call.1} parent=1 // pred_region
      %139 = dma.done [#allocation12], 4096
    $region81: #{tpu_custom_call.1} parent=1 // pred_fallthru
      _
    %v141 = vld [vmem:[#allocation2] sm:$0xf]
    %v142 = vld [vmem:[#allocation2 + $0x4] sm:$0xf]
    %v143 = vld [vmem:[#allocation2 + $0x8] sm:$0xf]
    %v144 = vld [vmem:[#allocation2 + $0xc] sm:$0xf]
    %v145 = vld [vmem:[#allocation2 + $0x10] sm:$0xf]
    %v146 = vld [vmem:[#allocation2 + $0x14] sm:$0xf]
    %v147 = vld [vmem:[#allocation2 + $0x18] sm:$0xf]
    %v148 = vld [vmem:[#allocation2 + $0x1c] sm:$0xf]
    %v149 = vld [vmem:[#allocation2 + $0x20] sm:$0xf]
    %v150 = vld [vmem:[#allocation2 + $0x24] sm:$0xf]
    %v151 = vld [vmem:[#allocation2 + $0x28] sm:$0xf]
    %v152 = vld [vmem:[#allocation2 + $0x2c] sm:$0xf]
    %v153 = vld [vmem:[#allocation2 + $0x30] sm:$0xf]
    %v154 = vld [vmem:[#allocation2 + $0x34] sm:$0xf]
    %v155 = vld [vmem:[#allocation2 + $0x38] sm:$0xf]
    %v156 = vld [vmem:[#allocation2 + $0x3c] sm:$0xf]
    %v157 = vld [vmem:[#allocation2 + $0x40] sm:$0xf]
    %v158 = vld [vmem:[#allocation2 + $0x44] sm:$0xf]
    %v159 = vld [vmem:[#allocation2 + $0x48] sm:$0xf]
    %v160 = vld [vmem:[#allocation2 + $0x4c] sm:$0xf]
    %v161 = vld [vmem:[#allocation2 + $0x50] sm:$0xf]
    %v162 = vld [vmem:[#allocation2 + $0x54] sm:$0xf]
    %v163 = vld [vmem:[#allocation2 + $0x58] sm:$0xf]
    %v164 = vld [vmem:[#allocation2 + $0x5c] sm:$0xf]
    %v165 = vld [vmem:[#allocation2 + $0x60] sm:$0xf]
    %v166 = vld [vmem:[#allocation2 + $0x64] sm:$0xf]
    %v167 = vld [vmem:[#allocation2 + $0x68] sm:$0xf]
    %v168 = vld [vmem:[#allocation2 + $0x6c] sm:$0xf]
    %v169 = vld [vmem:[#allocation2 + $0x70] sm:$0xf]
    %v170 = vld [vmem:[#allocation2 + $0x74] sm:$0xf]
    %v171 = vld [vmem:[#allocation2 + $0x78] sm:$0xf]
    %v172 = vld [vmem:[#allocation2 + $0x7c] sm:$0xf]
    %v173 = vld [vmem:[#allocation5] sm:$0xff]
    %v174 = vld [vmem:[#allocation5 + $0x8] sm:$0xff]
    %v175 = vld [vmem:[#allocation5 + $0x10] sm:$0xff]
    %v176 = vld [vmem:[#allocation5 + $0x18] sm:$0xff]
    %v177 = vld [vmem:[#allocation5 + $0x20] sm:$0xff]
    %v178 = vld [vmem:[#allocation5 + $0x28] sm:$0xff]
    %v179 = vld [vmem:[#allocation5 + $0x30] sm:$0xff]
    %v180 = vld [vmem:[#allocation5 + $0x38] sm:$0xff]
    %v181 = vld [vmem:[#allocation5 + $0x40] sm:$0xff]
    %v182 = vld [vmem:[#allocation5 + $0x48] sm:$0xff]
    %v183 = vld [vmem:[#allocation5 + $0x50] sm:$0xff]
    %v184 = vld [vmem:[#allocation5 + $0x58] sm:$0xff]
    %v185 = vld [vmem:[#allocation5 + $0x60] sm:$0xff]
    %v186 = vld [vmem:[#allocation5 + $0x68] sm:$0xff]
    %v187 = vld [vmem:[#allocation5 + $0x70] sm:$0xff]
    %v188 = vld [vmem:[#allocation5 + $0x78] sm:$0xff]
    %v189 = vld [vmem:[#allocation5 + $0x80] sm:$0xff]
    %v190 = vld [vmem:[#allocation5 + $0x88] sm:$0xff]
    %v191 = vld [vmem:[#allocation5 + $0x90] sm:$0xff]
    %v192 = vld [vmem:[#allocation5 + $0x98] sm:$0xff]
    %v193 = vld [vmem:[#allocation5 + $0xa0] sm:$0xff]
    %v194 = vld [vmem:[#allocation5 + $0xa8] sm:$0xff]
    %v195 = vld [vmem:[#allocation5 + $0xb0] sm:$0xff]
    %v196 = vld [vmem:[#allocation5 + $0xb8] sm:$0xff]
    %v197 = vld [vmem:[#allocation5 + $0xc0] sm:$0xff]
    %v198 = vld [vmem:[#allocation5 + $0xc8] sm:$0xff]
    %v199 = vld [vmem:[#allocation5 + $0xd0] sm:$0xff]
    %v200 = vld [vmem:[#allocation5 + $0xd8] sm:$0xff]
    %v201 = vld [vmem:[#allocation5 + $0xe0] sm:$0xff]
    %v202 = vld [vmem:[#allocation5 + $0xe8] sm:$0xff]
    %v203 = vld [vmem:[#allocation5 + $0xf0] sm:$0xff]
    %v204 = vld [vmem:[#allocation5 + $0xf8] sm:$0xff]
    %v205 = vld [vmem:[%s2] sm:$0xf]
    %v207 = vlaneseq
    %v208 = vshrl.u32 %v207, 7
    %v209 = vsub.s32 0, %v208
    %v210 = vrot.slane %v205, %v209
    %v211 = vlaneseq
    %v212 = vshrl.u32 %v211, 7
    %v213 = vsub.s32 1, %v212
    %v214 = vrot.slane %v205, %v213
    %v215 = vlaneseq
    %v216 = vshrl.u32 %v215, 7
    %v217 = vsub.s32 2, %v216
    %v218 = vrot.slane %v205, %v217
    %v219 = vlaneseq
    %v220 = vshrl.u32 %v219, 7
    %v221 = vsub.s32 3, %v220
    %v222 = vrot.slane %v205, %v221
    %v259 = vunpack.c.l.b16 %v141
    %v260 = vunpack.c.l.b16 %v142
    %v261 = vunpack.c.l.b16 %v143
    %v262 = vunpack.c.l.b16 %v144
    %v263 = vunpack.c.l.b16 %v145
    %v264 = vunpack.c.l.b16 %v146
    %v265 = vunpack.c.l.b16 %v147
    %v266 = vunpack.c.l.b16 %v148
    %v267 = vunpack.c.l.b16 %v149
    %v268 = vunpack.c.l.b16 %v150
    %v269 = vunpack.c.l.b16 %v151
    %v270 = vunpack.c.l.b16 %v152
    %v271 = vunpack.c.l.b16 %v153
    %v272 = vunpack.c.l.b16 %v154
    %v273 = vunpack.c.l.b16 %v155
    %v274 = vunpack.c.l.b16 %v156
    %v275 = vunpack.c.l.b16 %v157
    %v276 = vunpack.c.l.b16 %v158
    %v277 = vunpack.c.l.b16 %v159
    %v278 = vunpack.c.l.b16 %v160
    %v279 = vunpack.c.l.b16 %v161
    %v280 = vunpack.c.l.b16 %v162
    %v281 = vunpack.c.l.b16 %v163
    %v282 = vunpack.c.l.b16 %v164
    %v283 = vunpack.c.l.b16 %v165
    %v284 = vunpack.c.l.b16 %v166
    %v285 = vunpack.c.l.b16 %v167
    %v286 = vunpack.c.l.b16 %v168
    %v287 = vunpack.c.l.b16 %v169
    %v288 = vunpack.c.l.b16 %v170
    %v289 = vunpack.c.l.b16 %v171
    %v290 = vunpack.c.l.b16 %v172
    %v291 = vpack.c.b16 %v260, %v259
    %v292 = vpack.c.b16 %v262, %v261
    %v293 = vpack.c.b16 %v264, %v263
    %v294 = vpack.c.b16 %v266, %v265
    %v295 = vpack.c.b16 %v268, %v267
    %v296 = vpack.c.b16 %v270, %v269
    %v297 = vpack.c.b16 %v272, %v271
    %v298 = vpack.c.b16 %v274, %v273
    %v299 = vpack.c.b16 %v276, %v275
    %v300 = vpack.c.b16 %v278, %v277
    %v301 = vpack.c.b16 %v280, %v279
    %v302 = vpack.c.b16 %v282, %v281
    %v303 = vpack.c.b16 %v284, %v283
    %v304 = vpack.c.b16 %v286, %v285
    %v305 = vpack.c.b16 %v288, %v287
    %v306 = vpack.c.b16 %v290, %v289
    %v355 = vunpack.c.l.b16 %v173
    %v356 = vunpack.c.h.b16 %v173
    %v357 = vunpack.c.l.b16 %v174
    %v358 = vunpack.c.h.b16 %v174
    %v359 = vunpack.c.l.b16 %v175
    %v360 = vunpack.c.h.b16 %v175
    %v361 = vunpack.c.l.b16 %v176
    %v362 = vunpack.c.h.b16 %v176
    %v363 = vunpack.c.l.b16 %v177
    %v364 = vunpack.c.h.b16 %v177
    %v365 = vunpack.c.l.b16 %v178
    %v366 = vunpack.c.h.b16 %v178
    %v367 = vunpack.c.l.b16 %v179
    %v368 = vunpack.c.h.b16 %v179
    %v369 = vunpack.c.l.b16 %v180
    %v370 = vunpack.c.h.b16 %v180
    %v371 = vunpack.c.l.b16 %v181
    %v372 = vunpack.c.h.b16 %v181
    %v373 = vunpack.c.l.b16 %v182
    %v374 = vunpack.c.h.b16 %v182
    %v375 = vunpack.c.l.b16 %v183
    %v376 = vunpack.c.h.b16 %v183
    %v377 = vunpack.c.l.b16 %v184
    %v378 = vunpack.c.h.b16 %v184
    %v379 = vunpack.c.l.b16 %v185
    %v380 = vunpack.c.h.b16 %v185
    %v381 = vunpack.c.l.b16 %v186
    %v382 = vunpack.c.h.b16 %v186
    %v383 = vunpack.c.l.b16 %v187
    %v384 = vunpack.c.h.b16 %v187
    %v385 = vunpack.c.l.b16 %v188
    %v386 = vunpack.c.h.b16 %v188
    %v387 = vunpack.c.l.b16 %v189
    %v388 = vunpack.c.h.b16 %v189
    %v389 = vunpack.c.l.b16 %v190
    %v390 = vunpack.c.h.b16 %v190
    %v391 = vunpack.c.l.b16 %v191
    %v392 = vunpack.c.h.b16 %v191
    %v393 = vunpack.c.l.b16 %v192
    %v394 = vunpack.c.h.b16 %v192
    %v395 = vunpack.c.l.b16 %v193
    %v396 = vunpack.c.h.b16 %v193
    %v397 = vunpack.c.l.b16 %v194
    %v398 = vunpack.c.h.b16 %v194
    %v399 = vunpack.c.l.b16 %v195
    %v400 = vunpack.c.h.b16 %v195
    %v401 = vunpack.c.l.b16 %v196
    %v402 = vunpack.c.h.b16 %v196
    %v403 = vunpack.c.l.b16 %v197
    %v404 = vunpack.c.h.b16 %v197
    %v405 = vunpack.c.l.b16 %v198
    %v406 = vunpack.c.h.b16 %v198
    %v407 = vunpack.c.l.b16 %v199
    %v408 = vunpack.c.h.b16 %v199
    %v409 = vunpack.c.l.b16 %v200
    %v410 = vunpack.c.h.b16 %v200
    %v411 = vunpack.c.l.b16 %v201
    %v412 = vunpack.c.h.b16 %v201
    %v413 = vunpack.c.l.b16 %v202
    %v414 = vunpack.c.h.b16 %v202
    %v415 = vunpack.c.l.b16 %v203
    %v416 = vunpack.c.h.b16 %v203
    %v417 = vunpack.c.l.b16 %v204
    %v418 = vunpack.c.h.b16 %v204
    %v419 = vpack.c.b16 %v359, %v355
    %v420 = vpack.c.b16 %v360, %v356
    %v421 = vpack.c.b16 %v361, %v357
    %v422 = vpack.c.b16 %v362, %v358
    %v423 = vpack.c.b16 %v367, %v363
    %v424 = vpack.c.b16 %v368, %v364
    %v425 = vpack.c.b16 %v369, %v365
    %v426 = vpack.c.b16 %v370, %v366
    %v427 = vpack.c.b16 %v375, %v371
    %v428 = vpack.c.b16 %v376, %v372
    %v429 = vpack.c.b16 %v377, %v373
    %v430 = vpack.c.b16 %v378, %v374
    %v431 = vpack.c.b16 %v383, %v379
    %v432 = vpack.c.b16 %v384, %v380
    %v433 = vpack.c.b16 %v385, %v381
    %v434 = vpack.c.b16 %v386, %v382
    %v435 = vpack.c.b16 %v391, %v387
    %v436 = vpack.c.b16 %v392, %v388
    %v437 = vpack.c.b16 %v393, %v389
    %v438 = vpack.c.b16 %v394, %v390
    %v439 = vpack.c.b16 %v399, %v395
    %v440 = vpack.c.b16 %v400, %v396
    %v441 = vpack.c.b16 %v401, %v397
    %v442 = vpack.c.b16 %v402, %v398
    %v443 = vpack.c.b16 %v407, %v403
    %v444 = vpack.c.b16 %v408, %v404
    %v445 = vpack.c.b16 %v409, %v405
    %v446 = vpack.c.b16 %v410, %v406
    %v447 = vpack.c.b16 %v415, %v411
    %v448 = vpack.c.b16 %v416, %v412
    %v449 = vpack.c.b16 %v417, %v413
    %v450 = vpack.c.b16 %v418, %v414
    %483 = vmatprep.subr.bf16.mxu0 %v420
    %484 = vmatpush1.bf16.msra.mxu0 %v419
    %485 = vmatprep.subr.bf16.mxu0 %v424
    %486 = vmatpush1.bf16.msra.mxu0 %v423
    %487 = vmatprep.subr.bf16.mxu0 %v428
    %488 = vmatpush1.bf16.msra.mxu0 %v427
    %489 = vmatprep.subr.bf16.mxu0 %v432
    %490 = vmatpush1.bf16.msra.mxu0 %v431
    %491 = vmatprep.subr.bf16.mxu0 %v436
    %492 = vmatpush1.bf16.msra.mxu0 %v435
    %493 = vmatprep.subr.bf16.mxu0 %v440
    %494 = vmatpush1.bf16.msra.mxu0 %v439
    %495 = vmatprep.subr.bf16.mxu0 %v444
    %496 = vmatpush1.bf16.msra.mxu0 %v443
    %497 = vmatprep.subr.bf16.mxu0 %v448
    %498 = vmatpush1.bf16.msra.mxu0 %v447
    %499 = vmatprep.subr.bf16.mxu0 0
    %500 = vmatpush1.bf16.msra.mxu0 0
    %501 = vmatprep.subr.bf16.mxu0 0
    %502 = vmatpush1.bf16.msra.mxu0 0
    %503 = vmatprep.subr.bf16.mxu0 0
    %504 = vmatpush1.bf16.msra.mxu0 0
    %505 = vmatprep.subr.bf16.mxu0 0
    %506 = vmatpush1.bf16.msra.mxu0 0
    %507 = vmatprep.subr.bf16.mxu0 0
    %508 = vmatpush1.bf16.msra.mxu0 0
    %509 = vmatprep.subr.bf16.mxu0 0
    %510 = vmatpush1.bf16.msra.mxu0 0
    %511 = vmatprep.subr.bf16.mxu0 0
    %512 = vmatpush1.bf16.msra.mxu0 0
    %513 = vmatprep.subr.bf16.mxu0 0
    %514 = vmatpush1.bf16.msra.mxu0 0
    %515 = vmatprep.mubr.bf16.mxu0 0
    %516 = vmatmul.mubr.bf16.gmra.mrb[0].mxu0 %v291
    %v517 = vpop.f32.mrb[0].mxu0
    %v518 = vadd.f32 %v210, %v517
    %v519 = vpop.f32.mrb[0].mxu0
    %v520 = vadd.f32 %v214, %v519
    %v521 = vpop.f32.mrb[0].mxu0
    %v522 = vadd.f32 %v210, %v521
    %v523 = vpop.f32.mrb[0].mxu0
    %v524 = vadd.f32 %v214, %v523
    %525 = vmatprep.mubr.bf16.mxu0 0
    %526 = vmatmul.mubr.bf16.gmra.mrb[0].mxu0 %v292
    %v527 = vpop.f32.mrb[0].mxu0
    %v528 = vadd.f32 %v210, %v527
    %v529 = vpop.f32.mrb[0].mxu0
    %v530 = vadd.f32 %v214, %v529
    %v531 = vpop.f32.mrb[0].mxu0
    %v532 = vadd.f32 %v210, %v531
    %v533 = vpop.f32.mrb[0].mxu0
    %v534 = vadd.f32 %v214, %v533
    %535 = vmatprep.mubr.bf16.mxu0 0
    %536 = vmatmul.mubr.bf16.gmra.mrb[0].mxu0 %v293
    %v537 = vpop.f32.mrb[0].mxu0
    %v538 = vadd.f32 %v210, %v537
    %v539 = vpop.f32.mrb[0].mxu0
    %v540 = vadd.f32 %v214, %v539
    %v541 = vpop.f32.mrb[0].mxu0
    %v542 = vadd.f32 %v210, %v541
    %v543 = vpop.f32.mrb[0].mxu0
    %v544 = vadd.f32 %v214, %v543
    %545 = vmatprep.mubr.bf16.mxu0 0
    %546 = vmatmul.mubr.bf16.gmra.mrb[0].mxu0 %v294
    %v547 = vpop.f32.mrb[0].mxu0
    %v548 = vadd.f32 %v210, %v547
    %v549 = vpop.f32.mrb[0].mxu0
    %v550 = vadd.f32 %v214, %v549
    %v551 = vpop.f32.mrb[0].mxu0
    %v552 = vadd.f32 %v210, %v551
    %v553 = vpop.f32.mrb[0].mxu0
    %v554 = vadd.f32 %v214, %v553
    %555 = vmatprep.mubr.bf16.mxu0 0
    %556 = vmatmul.mubr.bf16.gmra.mrb[0].mxu0 %v295
    %v557 = vpop.f32.mrb[0].mxu0
    %v558 = vadd.f32 %v210, %v557
    %v559 = vpop.f32.mrb[0].mxu0
    %v560 = vadd.f32 %v214, %v559
    %v561 = vpop.f32.mrb[0].mxu0
    %v562 = vadd.f32 %v210, %v561
    %v563 = vpop.f32.mrb[0].mxu0
    %v564 = vadd.f32 %v214, %v563
    %565 = vmatprep.mubr.bf16.mxu0 0
    %566 = vmatmul.mubr.bf16.gmra.mrb[0].mxu0 %v296
    %v567 = vpop.f32.mrb[0].mxu0
    %v568 = vadd.f32 %v210, %v567
    %v569 = vpop.f32.mrb[0].mxu0
    %v570 = vadd.f32 %v214, %v569
    %v571 = vpop.f32.mrb[0].mxu0
    %v572 = vadd.f32 %v210, %v571
    %v573 = vpop.f32.mrb[0].mxu0
    %v574 = vadd.f32 %v214, %v573
    %575 = vmatprep.mubr.bf16.mxu0 0
    %576 = vmatmul.mubr.bf16.gmra.mrb[0].mxu0 %v297
    %v577 = vpop.f32.mrb[0].mxu0
    %v578 = vadd.f32 %v210, %v577
    %v579 = vpop.f32.mrb[0].mxu0
    %v580 = vadd.f32 %v214, %v579
    %v581 = vpop.f32.mrb[0].mxu0
    %v582 = vadd.f32 %v210, %v581
    %v583 = vpop.f32.mrb[0].mxu0
    %v584 = vadd.f32 %v214, %v583
    %585 = vmatprep.mubr.bf16.mxu0 0
    %586 = vmatmul.mubr.bf16.gmra.mrb[0].mxu0 %v298
    %v587 = vpop.f32.mrb[0].mxu0
    %v588 = vadd.f32 %v210, %v587
    %v589 = vpop.f32.mrb[0].mxu0
    %v590 = vadd.f32 %v214, %v589
    %v591 = vpop.f32.mrb[0].mxu0
    %v592 = vadd.f32 %v210, %v591
    %v593 = vpop.f32.mrb[0].mxu0
    %v594 = vadd.f32 %v214, %v593
    %595 = vmatprep.mubr.bf16.mxu0 0
    %596 = vmatmul.mubr.bf16.gmra.mrb[0].mxu0 %v299
    %v597 = vpop.f32.mrb[0].mxu0
    %v598 = vadd.f32 %v210, %v597
    %v599 = vpop.f32.mrb[0].mxu0
    %v600 = vadd.f32 %v214, %v599
    %v601 = vpop.f32.mrb[0].mxu0
    %v602 = vadd.f32 %v210, %v601
    %v603 = vpop.f32.mrb[0].mxu0
    %v604 = vadd.f32 %v214, %v603
    %605 = vmatprep.mubr.bf16.mxu0 0
    %606 = vmatmul.mubr.bf16.gmra.mrb[0].mxu0 %v300
    %v607 = vpop.f32.mrb[0].mxu0
    %v608 = vadd.f32 %v210, %v607
    %v609 = vpop.f32.mrb[0].mxu0
    %v610 = vadd.f32 %v214, %v609
    %v611 = vpop.f32.mrb[0].mxu0
    %v612 = vadd.f32 %v210, %v611
    %v613 = vpop.f32.mrb[0].mxu0
    %v614 = vadd.f32 %v214, %v613
    %615 = vmatprep.mubr.bf16.mxu0 0
    %616 = vmatmul.mubr.bf16.gmra.mrb[0].mxu0 %v301
    %v617 = vpop.f32.mrb[0].mxu0
    %v618 = vadd.f32 %v210, %v617
    %v619 = vpop.f32.mrb[0].mxu0
    %v620 = vadd.f32 %v214, %v619
    %v621 = vpop.f32.mrb[0].mxu0
    %v622 = vadd.f32 %v210, %v621
    %v623 = vpop.f32.mrb[0].mxu0
    %v624 = vadd.f32 %v214, %v623
    %625 = vmatprep.mubr.bf16.mxu0 0
    %626 = vmatmul.mubr.bf16.gmra.mrb[0].mxu0 %v302
    %v627 = vpop.f32.mrb[0].mxu0
    %v628 = vadd.f32 %v210, %v627
    %v629 = vpop.f32.mrb[0].mxu0
    %v630 = vadd.f32 %v214, %v629
    %v631 = vpop.f32.mrb[0].mxu0
    %v632 = vadd.f32 %v210, %v631
    %v633 = vpop.f32.mrb[0].mxu0
    %v634 = vadd.f32 %v214, %v633
    %635 = vmatprep.mubr.bf16.mxu0 0
    %636 = vmatmul.mubr.bf16.gmra.mrb[0].mxu0 %v303
    %v637 = vpop.f32.mrb[0].mxu0
    %v638 = vadd.f32 %v210, %v637
    %v639 = vpop.f32.mrb[0].mxu0
    %v640 = vadd.f32 %v214, %v639
    %v641 = vpop.f32.mrb[0].mxu0
    %v642 = vadd.f32 %v210, %v641
    %v643 = vpop.f32.mrb[0].mxu0
    %v644 = vadd.f32 %v214, %v643
    %645 = vmatprep.mubr.bf16.mxu0 0
    %646 = vmatmul.mubr.bf16.gmra.mrb[0].mxu0 %v304
    %v647 = vpop.f32.mrb[0].mxu0
    %v648 = vadd.f32 %v210, %v647
    %v649 = vpop.f32.mrb[0].mxu0
    %v650 = vadd.f32 %v214, %v649
    %v651 = vpop.f32.mrb[0].mxu0
    %v652 = vadd.f32 %v210, %v651
    %v653 = vpop.f32.mrb[0].mxu0
    %v654 = vadd.f32 %v214, %v653
    %655 = vmatprep.mubr.bf16.mxu0 0
    %656 = vmatmul.mubr.bf16.gmra.mrb[0].mxu0 %v305
    %v657 = vpop.f32.mrb[0].mxu0
    %v658 = vadd.f32 %v210, %v657
    %v659 = vpop.f32.mrb[0].mxu0
    %v660 = vadd.f32 %v214, %v659
    %v661 = vpop.f32.mrb[0].mxu0
    %v662 = vadd.f32 %v210, %v661
    %v663 = vpop.f32.mrb[0].mxu0
    %v664 = vadd.f32 %v214, %v663
    %665 = vmatprep.mubr.bf16.mxu0 0
    %666 = vmatmul.mubr.bf16.gmra.mrb[0].mxu0 %v306
    %v667 = vpop.f32.mrb[0].mxu0
    %v668 = vadd.f32 %v210, %v667
    %v669 = vpop.f32.mrb[0].mxu0
    %v670 = vadd.f32 %v214, %v669
    %v671 = vpop.f32.mrb[0].mxu0
    %v672 = vadd.f32 %v210, %v671
    %v673 = vpop.f32.mrb[0].mxu0
    %v674 = vadd.f32 %v214, %v673
    %675 = vdwg.mxu0
    %676 = vmatprep.subr.bf16.mxu0 %v422
    %677 = vmatpush1.bf16.msra.mxu0 %v421
    %678 = vmatprep.subr.bf16.mxu0 %v426
    %679 = vmatpush1.bf16.msra.mxu0 %v425
    %680 = vmatprep.subr.bf16.mxu0 %v430
    %681 = vmatpush1.bf16.msra.mxu0 %v429
    %682 = vmatprep.subr.bf16.mxu0 %v434
    %683 = vmatpush1.bf16.msra.mxu0 %v433
    %684 = vmatprep.subr.bf16.mxu0 %v438
    %685 = vmatpush1.bf16.msra.mxu0 %v437
    %686 = vmatprep.subr.bf16.mxu0 %v442
    %687 = vmatpush1.bf16.msra.mxu0 %v441
    %688 = vmatprep.subr.bf16.mxu0 %v446
    %689 = vmatpush1.bf16.msra.mxu0 %v445
    %690 = vmatprep.subr.bf16.mxu0 %v450
    %691 = vmatpush1.bf16.msra.mxu0 %v449
    %692 = vmatprep.subr.bf16.mxu0 0
    %693 = vmatpush1.bf16.msra.mxu0 0
    %694 = vmatprep.subr.bf16.mxu0 0
    %695 = vmatpush1.bf16.msra.mxu0 0
    %696 = vmatprep.subr.bf16.mxu0 0
    %697 = vmatpush1.bf16.msra.mxu0 0
    %698 = vmatprep.subr.bf16.mxu0 0
    %699 = vmatpush1.bf16.msra.mxu0 0
    %700 = vmatprep.subr.bf16.mxu0 0
    %701 = vmatpush1.bf16.msra.mxu0 0
    %702 = vmatprep.subr.bf16.mxu0 0
    %703 = vmatpush1.bf16.msra.mxu0 0
    %704 = vmatprep.subr.bf16.mxu0 0
    %705 = vmatpush1.bf16.msra.mxu0 0
    %706 = vmatprep.subr.bf16.mxu0 0
    %707 = vmatpush1.bf16.msra.mxu0 0
    %708 = vmatprep.mubr.bf16.mxu0 0
    %709 = vmatmul.mubr.bf16.gmra.mrb[0].mxu0 %v291
    %v710 = vpop.f32.mrb[0].mxu0
    %v711 = vadd.f32 %v218, %v710
    %v712 = vpop.f32.mrb[0].mxu0
    %v713 = vadd.f32 %v222, %v712
    %v714 = vpop.f32.mrb[0].mxu0
    %v715 = vadd.f32 %v218, %v714
    %v716 = vpop.f32.mrb[0].mxu0
    %v717 = vadd.f32 %v222, %v716
    %718 = vmatprep.mubr.bf16.mxu0 0
    %719 = vmatmul.mubr.bf16.gmra.mrb[0].mxu0 %v292
    %v720 = vpop.f32.mrb[0].mxu0
    %v721 = vadd.f32 %v218, %v720
    %v722 = vpop.f32.mrb[0].mxu0
    %v723 = vadd.f32 %v222, %v722
    %v724 = vpop.f32.mrb[0].mxu0
    %v725 = vadd.f32 %v218, %v724
    %v726 = vpop.f32.mrb[0].mxu0
    %v727 = vadd.f32 %v222, %v726
    %728 = vmatprep.mubr.bf16.mxu0 0
    %729 = vmatmul.mubr.bf16.gmra.mrb[0].mxu0 %v293
    %v730 = vpop.f32.mrb[0].mxu0
    %v731 = vadd.f32 %v218, %v730
    %v732 = vpop.f32.mrb[0].mxu0
    %v733 = vadd.f32 %v222, %v732
    %v734 = vpop.f32.mrb[0].mxu0
    %v735 = vadd.f32 %v218, %v734
    %v736 = vpop.f32.mrb[0].mxu0
    %v737 = vadd.f32 %v222, %v736
    %738 = vmatprep.mubr.bf16.mxu0 0
    %739 = vmatmul.mubr.bf16.gmra.mrb[0].mxu0 %v294
    %v740 = vpop.f32.mrb[0].mxu0
    %v741 = vadd.f32 %v218, %v740
    %v742 = vpop.f32.mrb[0].mxu0
    %v743 = vadd.f32 %v222, %v742
    %v744 = vpop.f32.mrb[0].mxu0
    %v745 = vadd.f32 %v218, %v744
    %v746 = vpop.f32.mrb[0].mxu0
    %v747 = vadd.f32 %v222, %v746
    %748 = vmatprep.mubr.bf16.mxu0 0
    %749 = vmatmul.mubr.bf16.gmra.mrb[0].mxu0 %v295
    %v750 = vpop.f32.mrb[0].mxu0
    %v751 = vadd.f32 %v218, %v750
    %v752 = vpop.f32.mrb[0].mxu0
    %v753 = vadd.f32 %v222, %v752
    %v754 = vpop.f32.mrb[0].mxu0
    %v755 = vadd.f32 %v218, %v754
    %v756 = vpop.f32.mrb[0].mxu0
    %v757 = vadd.f32 %v222, %v756
    %758 = vmatprep.mubr.bf16.mxu0 0
    %759 = vmatmul.mubr.bf16.gmra.mrb[0].mxu0 %v296
    %v760 = vpop.f32.mrb[0].mxu0
    %v761 = vadd.f32 %v218, %v760
    %v762 = vpop.f32.mrb[0].mxu0
    %v763 = vadd.f32 %v222, %v762
    %v764 = vpop.f32.mrb[0].mxu0
    %v765 = vadd.f32 %v218, %v764
    %v766 = vpop.f32.mrb[0].mxu0
    %v767 = vadd.f32 %v222, %v766
    %768 = vmatprep.mubr.bf16.mxu0 0
    %769 = vmatmul.mubr.bf16.gmra.mrb[0].mxu0 %v297
    %v770 = vpop.f32.mrb[0].mxu0
    %v771 = vadd.f32 %v218, %v770
    %v772 = vpop.f32.mrb[0].mxu0
    %v773 = vadd.f32 %v222, %v772
    %v774 = vpop.f32.mrb[0].mxu0
    %v775 = vadd.f32 %v218, %v774
    %v776 = vpop.f32.mrb[0].mxu0
    %v777 = vadd.f32 %v222, %v776
    %778 = vmatprep.mubr.bf16.mxu0 0
    %779 = vmatmul.mubr.bf16.gmra.mrb[0].mxu0 %v298
    %v780 = vpop.f32.mrb[0].mxu0
    %v781 = vadd.f32 %v218, %v780
    %v782 = vpop.f32.mrb[0].mxu0
    %v783 = vadd.f32 %v222, %v782
    %v784 = vpop.f32.mrb[0].mxu0
    %v785 = vadd.f32 %v218, %v784
    %v786 = vpop.f32.mrb[0].mxu0
    %v787 = vadd.f32 %v222, %v786
    %788 = vmatprep.mubr.bf16.mxu0 0
    %789 = vmatmul.mubr.bf16.gmra.mrb[0].mxu0 %v299
    %v790 = vpop.f32.mrb[0].mxu0
    %v791 = vadd.f32 %v218, %v790
    %v792 = vpop.f32.mrb[0].mxu0
    %v793 = vadd.f32 %v222, %v792
    %v794 = vpop.f32.mrb[0].mxu0
    %v795 = vadd.f32 %v218, %v794
    %v796 = vpop.f32.mrb[0].mxu0
    %v797 = vadd.f32 %v222, %v796
    %798 = vmatprep.mubr.bf16.mxu0 0
    %799 = vmatmul.mubr.bf16.gmra.mrb[0].mxu0 %v300
    %v800 = vpop.f32.mrb[0].mxu0
    %v801 = vadd.f32 %v218, %v800
    %v802 = vpop.f32.mrb[0].mxu0
    %v803 = vadd.f32 %v222, %v802
    %v804 = vpop.f32.mrb[0].mxu0
    %v805 = vadd.f32 %v218, %v804
    %v806 = vpop.f32.mrb[0].mxu0
    %v807 = vadd.f32 %v222, %v806
    %808 = vmatprep.mubr.bf16.mxu0 0
    %809 = vmatmul.mubr.bf16.gmra.mrb[0].mxu0 %v301
    %v810 = vpop.f32.mrb[0].mxu0
    %v811 = vadd.f32 %v218, %v810
    %v812 = vpop.f32.mrb[0].mxu0
    %v813 = vadd.f32 %v222, %v812
    %v814 = vpop.f32.mrb[0].mxu0
    %v815 = vadd.f32 %v218, %v814
    %v816 = vpop.f32.mrb[0].mxu0
    %v817 = vadd.f32 %v222, %v816
    %818 = vmatprep.mubr.bf16.mxu0 0
    %819 = vmatmul.mubr.bf16.gmra.mrb[0].mxu0 %v302
    %v820 = vpop.f32.mrb[0].mxu0
    %v821 = vadd.f32 %v218, %v820
    %v822 = vpop.f32.mrb[0].mxu0
    %v823 = vadd.f32 %v222, %v822
    %v824 = vpop.f32.mrb[0].mxu0
    %v825 = vadd.f32 %v218, %v824
    %v826 = vpop.f32.mrb[0].mxu0
    %v827 = vadd.f32 %v222, %v826
    %828 = vmatprep.mubr.bf16.mxu0 0
    %829 = vmatmul.mubr.bf16.gmra.mrb[0].mxu0 %v303
    %v830 = vpop.f32.mrb[0].mxu0
    %v831 = vadd.f32 %v218, %v830
    %v832 = vpop.f32.mrb[0].mxu0
    %v833 = vadd.f32 %v222, %v832
    %v834 = vpop.f32.mrb[0].mxu0
    %v835 = vadd.f32 %v218, %v834
    %v836 = vpop.f32.mrb[0].mxu0
    %v837 = vadd.f32 %v222, %v836
    %838 = vmatprep.mubr.bf16.mxu0 0
    %839 = vmatmul.mubr.bf16.gmra.mrb[0].mxu0 %v304
    %v840 = vpop.f32.mrb[0].mxu0
    %v841 = vadd.f32 %v218, %v840
    %v842 = vpop.f32.mrb[0].mxu0
    %v843 = vadd.f32 %v222, %v842
    %v844 = vpop.f32.mrb[0].mxu0
    %v845 = vadd.f32 %v218, %v844
    %v846 = vpop.f32.mrb[0].mxu0
    %v847 = vadd.f32 %v222, %v846
    %848 = vmatprep.mubr.bf16.mxu0 0
    %849 = vmatmul.mubr.bf16.gmra.mrb[0].mxu0 %v305
    %v850 = vpop.f32.mrb[0].mxu0
    %v851 = vadd.f32 %v218, %v850
    %v852 = vpop.f32.mrb[0].mxu0
    %v853 = vadd.f32 %v222, %v852
    %v854 = vpop.f32.mrb[0].mxu0
    %v855 = vadd.f32 %v218, %v854
    %v856 = vpop.f32.mrb[0].mxu0
    %v857 = vadd.f32 %v222, %v856
    %858 = vmatprep.mubr.bf16.mxu0 0
    %859 = vmatmul.mubr.bf16.gmra.mrb[0].mxu0 %v306
    %v860 = vpop.f32.mrb[0].mxu0
    %v861 = vadd.f32 %v218, %v860
    %v862 = vpop.f32.mrb[0].mxu0
    %v863 = vadd.f32 %v222, %v862
    %v864 = vpop.f32.mrb[0].mxu0
    %v865 = vadd.f32 %v218, %v864
    %v866 = vpop.f32.mrb[0].mxu0
    %v867 = vadd.f32 %v222, %v866
    %868 = vdwg.mxu0
    %v869 = vmax.f32 %v518, 0.0
    %v870 = vmax.f32 %v520, 0.0
    %v871 = vmax.f32 %v711, 0.0
    %v872 = vmax.f32 %v713, 0.0
    %v873 = vmax.f32 %v522, 0.0
    %v874 = vmax.f32 %v524, 0.0
    %v875 = vmax.f32 %v715, 0.0
    %v876 = vmax.f32 %v717, 0.0
    %v877 = vmax.f32 %v528, 0.0
    %v878 = vmax.f32 %v530, 0.0
    %v879 = vmax.f32 %v721, 0.0
    %v880 = vmax.f32 %v723, 0.0
    %v881 = vmax.f32 %v532, 0.0
    %v882 = vmax.f32 %v534, 0.0
    %v883 = vmax.f32 %v725, 0.0
    %v884 = vmax.f32 %v727, 0.0
    %v885 = vmax.f32 %v538, 0.0
    %v886 = vmax.f32 %v540, 0.0
    %v887 = vmax.f32 %v731, 0.0
    %v888 = vmax.f32 %v733, 0.0
    %v889 = vmax.f32 %v542, 0.0
    %v890 = vmax.f32 %v544, 0.0
    %v891 = vmax.f32 %v735, 0.0
    %v892 = vmax.f32 %v737, 0.0
    %v893 = vmax.f32 %v548, 0.0
    %v894 = vmax.f32 %v550, 0.0
    %v895 = vmax.f32 %v741, 0.0
    %v896 = vmax.f32 %v743, 0.0
    %v897 = vmax.f32 %v552, 0.0
    %v898 = vmax.f32 %v554, 0.0
    %v899 = vmax.f32 %v745, 0.0
    %v900 = vmax.f32 %v747, 0.0
    %v901 = vmax.f32 %v558, 0.0
    %v902 = vmax.f32 %v560, 0.0
    %v903 = vmax.f32 %v751, 0.0
    %v904 = vmax.f32 %v753, 0.0
    %v905 = vmax.f32 %v562, 0.0
    %v906 = vmax.f32 %v564, 0.0
    %v907 = vmax.f32 %v755, 0.0
    %v908 = vmax.f32 %v757, 0.0
    %v909 = vmax.f32 %v568, 0.0
    %v910 = vmax.f32 %v570, 0.0
    %v911 = vmax.f32 %v761, 0.0
    %v912 = vmax.f32 %v763, 0.0
    %v913 = vmax.f32 %v572, 0.0
    %v914 = vmax.f32 %v574, 0.0
    %v915 = vmax.f32 %v765, 0.0
    %v916 = vmax.f32 %v767, 0.0
    %v917 = vmax.f32 %v578, 0.0
    %v918 = vmax.f32 %v580, 0.0
    %v919 = vmax.f32 %v771, 0.0
    %v920 = vmax.f32 %v773, 0.0
    %v921 = vmax.f32 %v582, 0.0
    %v922 = vmax.f32 %v584, 0.0
    %v923 = vmax.f32 %v775, 0.0
    %v924 = vmax.f32 %v777, 0.0
    %v925 = vmax.f32 %v588, 0.0
    %v926 = vmax.f32 %v590, 0.0
    %v927 = vmax.f32 %v781, 0.0
    %v928 = vmax.f32 %v783, 0.0
    %v929 = vmax.f32 %v592, 0.0
    %v930 = vmax.f32 %v594, 0.0
    %v931 = vmax.f32 %v785, 0.0
    %v932 = vmax.f32 %v787, 0.0
    %v933 = vmax.f32 %v598, 0.0
    %v934 = vmax.f32 %v600, 0.0
    %v935 = vmax.f32 %v791, 0.0
    %v936 = vmax.f32 %v793, 0.0
    %v937 = vmax.f32 %v602, 0.0
    %v938 = vmax.f32 %v604, 0.0
    %v939 = vmax.f32 %v795, 0.0
    %v940 = vmax.f32 %v797, 0.0
    %v941 = vmax.f32 %v608, 0.0
    %v942 = vmax.f32 %v610, 0.0
    %v943 = vmax.f32 %v801, 0.0
    %v944 = vmax.f32 %v803, 0.0
    %v945 = vmax.f32 %v612, 0.0
    %v946 = vmax.f32 %v614, 0.0
    %v947 = vmax.f32 %v805, 0.0
    %v948 = vmax.f32 %v807, 0.0
    %v949 = vmax.f32 %v618, 0.0
    %v950 = vmax.f32 %v620, 0.0
    %v951 = vmax.f32 %v811, 0.0
    %v952 = vmax.f32 %v813, 0.0
    %v953 = vmax.f32 %v622, 0.0
    %v954 = vmax.f32 %v624, 0.0
    %v955 = vmax.f32 %v815, 0.0
    %v956 = vmax.f32 %v817, 0.0
    %v957 = vmax.f32 %v628, 0.0
    %v958 = vmax.f32 %v630, 0.0
    %v959 = vmax.f32 %v821, 0.0
    %v960 = vmax.f32 %v823, 0.0
    %v961 = vmax.f32 %v632, 0.0
    %v962 = vmax.f32 %v634, 0.0
    %v963 = vmax.f32 %v825, 0.0
    %v964 = vmax.f32 %v827, 0.0
    %v965 = vmax.f32 %v638, 0.0
    %v966 = vmax.f32 %v640, 0.0
    %v967 = vmax.f32 %v831, 0.0
    %v968 = vmax.f32 %v833, 0.0
    %v969 = vmax.f32 %v642, 0.0
    %v970 = vmax.f32 %v644, 0.0
    %v971 = vmax.f32 %v835, 0.0
    %v972 = vmax.f32 %v837, 0.0
    %v973 = vmax.f32 %v648, 0.0
    %v974 = vmax.f32 %v650, 0.0
    %v975 = vmax.f32 %v841, 0.0
    %v976 = vmax.f32 %v843, 0.0
    %v977 = vmax.f32 %v652, 0.0
    %v978 = vmax.f32 %v654, 0.0
    %v979 = vmax.f32 %v845, 0.0
    %v980 = vmax.f32 %v847, 0.0
    %v981 = vmax.f32 %v658, 0.0
    %v982 = vmax.f32 %v660, 0.0
    %v983 = vmax.f32 %v851, 0.0
    %v984 = vmax.f32 %v853, 0.0
    %v985 = vmax.f32 %v662, 0.0
    %v986 = vmax.f32 %v664, 0.0
    %v987 = vmax.f32 %v855, 0.0
    %v988 = vmax.f32 %v857, 0.0
    %v989 = vmax.f32 %v668, 0.0
    %v990 = vmax.f32 %v670, 0.0
    %v991 = vmax.f32 %v861, 0.0
    %v992 = vmax.f32 %v863, 0.0
    %v993 = vmax.f32 %v672, 0.0
    %v994 = vmax.f32 %v674, 0.0
    %v995 = vmax.f32 %v865, 0.0
    %v996 = vmax.f32 %v867, 0.0
    %v997 = vpack.c.bf16 %v873, %v869
    %v998 = vpack.c.bf16 %v874, %v870
    %v999 = vpack.c.bf16 %v875, %v871
    %v1000 = vpack.c.bf16 %v876, %v872
    %v1001 = vpack.c.bf16 %v881, %v877
    %v1002 = vpack.c.bf16 %v882, %v878
    %v1003 = vpack.c.bf16 %v883, %v879
    %v1004 = vpack.c.bf16 %v884, %v880
    %v1005 = vpack.c.bf16 %v889, %v885
    %v1006 = vpack.c.bf16 %v890, %v886
    %v1007 = vpack.c.bf16 %v891, %v887
    %v1008 = vpack.c.bf16 %v892, %v888
    %v1009 = vpack.c.bf16 %v897, %v893
    %v1010 = vpack.c.bf16 %v898, %v894
    %v1011 = vpack.c.bf16 %v899, %v895
    %v1012 = vpack.c.bf16 %v900, %v896
    %v1013 = vpack.c.bf16 %v905, %v901
    %v1014 = vpack.c.bf16 %v906, %v902
    %v1015 = vpack.c.bf16 %v907, %v903
    %v1016 = vpack.c.bf16 %v908, %v904
    %v1017 = vpack.c.bf16 %v913, %v909
    %v1018 = vpack.c.bf16 %v914, %v910
    %v1019 = vpack.c.bf16 %v915, %v911
    %v1020 = vpack.c.bf16 %v916, %v912
    %v1021 = vpack.c.bf16 %v921, %v917
    %v1022 = vpack.c.bf16 %v922, %v918
    %v1023 = vpack.c.bf16 %v923, %v919
    %v1024 = vpack.c.bf16 %v924, %v920
    %v1025 = vpack.c.bf16 %v929, %v925
    %v1026 = vpack.c.bf16 %v930, %v926
    %v1027 = vpack.c.bf16 %v931, %v927
    %v1028 = vpack.c.bf16 %v932, %v928
    %v1029 = vpack.c.bf16 %v937, %v933
    %v1030 = vpack.c.bf16 %v938, %v934
    %v1031 = vpack.c.bf16 %v939, %v935
    %v1032 = vpack.c.bf16 %v940, %v936
    %v1033 = vpack.c.bf16 %v945, %v941
    %v1034 = vpack.c.bf16 %v946, %v942
    %v1035 = vpack.c.bf16 %v947, %v943
    %v1036 = vpack.c.bf16 %v948, %v944
    %v1037 = vpack.c.bf16 %v953, %v949
    %v1038 = vpack.c.bf16 %v954, %v950
    %v1039 = vpack.c.bf16 %v955, %v951
    %v1040 = vpack.c.bf16 %v956, %v952
    %v1041 = vpack.c.bf16 %v961, %v957
    %v1042 = vpack.c.bf16 %v962, %v958
    %v1043 = vpack.c.bf16 %v963, %v959
    %v1044 = vpack.c.bf16 %v964, %v960
    %v1045 = vpack.c.bf16 %v969, %v965
    %v1046 = vpack.c.bf16 %v970, %v966
    %v1047 = vpack.c.bf16 %v971, %v967
    %v1048 = vpack.c.bf16 %v972, %v968
    %v1049 = vpack.c.bf16 %v977, %v973
    %v1050 = vpack.c.bf16 %v978, %v974
    %v1051 = vpack.c.bf16 %v979, %v975
    %v1052 = vpack.c.bf16 %v980, %v976
    %v1053 = vpack.c.bf16 %v985, %v981
    %v1054 = vpack.c.bf16 %v986, %v982
    %v1055 = vpack.c.bf16 %v987, %v983
    %v1056 = vpack.c.bf16 %v988, %v984
    %v1057 = vpack.c.bf16 %v993, %v989
    %v1058 = vpack.c.bf16 %v994, %v990
    %v1059 = vpack.c.bf16 %v995, %v991
    %v1060 = vpack.c.bf16 %v996, %v992
    %v1061 = vld [vmem:[#allocation7] sm:$0xf]
    %v1062 = vld [vmem:[#allocation7 + $0x4] sm:$0xf]
    %v1063 = vld [vmem:[#allocation7 + $0x8] sm:$0xf]
    %v1064 = vld [vmem:[#allocation7 + $0xc] sm:$0xf]
    %v1065 = vld [vmem:[#allocation7 + $0x10] sm:$0xf]
    %v1066 = vld [vmem:[#allocation7 + $0x14] sm:$0xf]
    %v1067 = vld [vmem:[#allocation7 + $0x18] sm:$0xf]
    %v1068 = vld [vmem:[#allocation7 + $0x1c] sm:$0xf]
    %v1069 = vld [vmem:[#allocation7 + $0x20] sm:$0xf]
    %v1070 = vld [vmem:[#allocation7 + $0x24] sm:$0xf]
    %v1071 = vld [vmem:[#allocation7 + $0x28] sm:$0xf]
    %v1072 = vld [vmem:[#allocation7 + $0x2c] sm:$0xf]
    %v1073 = vld [vmem:[#allocation7 + $0x30] sm:$0xf]
    %v1074 = vld [vmem:[#allocation7 + $0x34] sm:$0xf]
    %v1075 = vld [vmem:[#allocation7 + $0x38] sm:$0xf]
    %v1076 = vld [vmem:[#allocation7 + $0x3c] sm:$0xf]
    %v1077 = vld [vmem:[#allocation7 + $0x40] sm:$0xf]
    %v1078 = vld [vmem:[#allocation7 + $0x44] sm:$0xf]
    %v1079 = vld [vmem:[#allocation7 + $0x48] sm:$0xf]
    %v1080 = vld [vmem:[#allocation7 + $0x4c] sm:$0xf]
    %v1081 = vld [vmem:[#allocation7 + $0x50] sm:$0xf]
    %v1082 = vld [vmem:[#allocation7 + $0x54] sm:$0xf]
    %v1083 = vld [vmem:[#allocation7 + $0x58] sm:$0xf]
    %v1084 = vld [vmem:[#allocation7 + $0x5c] sm:$0xf]
    %v1085 = vld [vmem:[#allocation7 + $0x60] sm:$0xf]
    %v1086 = vld [vmem:[#allocation7 + $0x64] sm:$0xf]
    %v1087 = vld [vmem:[#allocation7 + $0x68] sm:$0xf]
    %v1088 = vld [vmem:[#allocation7 + $0x6c] sm:$0xf]
    %v1089 = vld [vmem:[#allocation7 + $0x70] sm:$0xf]
    %v1090 = vld [vmem:[#allocation7 + $0x74] sm:$0xf]
    %v1091 = vld [vmem:[#allocation7 + $0x78] sm:$0xf]
    %v1092 = vld [vmem:[#allocation7 + $0x7c] sm:$0xf]
    %v1093 = vld [vmem:[#allocation7 + $0x80] sm:$0xf]
    %v1094 = vld [vmem:[#allocation7 + $0x84] sm:$0xf]
    %v1095 = vld [vmem:[#allocation7 + $0x88] sm:$0xf]
    %v1096 = vld [vmem:[#allocation7 + $0x8c] sm:$0xf]
    %v1097 = vld [vmem:[#allocation7 + $0x90] sm:$0xf]
    %v1098 = vld [vmem:[#allocation7 + $0x94] sm:$0xf]
    %v1099 = vld [vmem:[#allocation7 + $0x98] sm:$0xf]
    %v1100 = vld [vmem:[#allocation7 + $0x9c] sm:$0xf]
    %v1101 = vld [vmem:[#allocation7 + $0xa0] sm:$0xf]
    %v1102 = vld [vmem:[#allocation7 + $0xa4] sm:$0xf]
    %v1103 = vld [vmem:[#allocation7 + $0xa8] sm:$0xf]
    %v1104 = vld [vmem:[#allocation7 + $0xac] sm:$0xf]
    %v1105 = vld [vmem:[#allocation7 + $0xb0] sm:$0xf]
    %v1106 = vld [vmem:[#allocation7 + $0xb4] sm:$0xf]
    %v1107 = vld [vmem:[#allocation7 + $0xb8] sm:$0xf]
    %v1108 = vld [vmem:[#allocation7 + $0xbc] sm:$0xf]
    %v1109 = vld [vmem:[#allocation7 + $0xc0] sm:$0xf]
    %v1110 = vld [vmem:[#allocation7 + $0xc4] sm:$0xf]
    %v1111 = vld [vmem:[#allocation7 + $0xc8] sm:$0xf]
    %v1112 = vld [vmem:[#allocation7 + $0xcc] sm:$0xf]
    %v1113 = vld [vmem:[#allocation7 + $0xd0] sm:$0xf]
    %v1114 = vld [vmem:[#allocation7 + $0xd4] sm:$0xf]
    %v1115 = vld [vmem:[#allocation7 + $0xd8] sm:$0xf]
    %v1116 = vld [vmem:[#allocation7 + $0xdc] sm:$0xf]
    %v1117 = vld [vmem:[#allocation7 + $0xe0] sm:$0xf]
    %v1118 = vld [vmem:[#allocation7 + $0xe4] sm:$0xf]
    %v1119 = vld [vmem:[#allocation7 + $0xe8] sm:$0xf]
    %v1120 = vld [vmem:[#allocation7 + $0xec] sm:$0xf]
    %v1121 = vld [vmem:[#allocation7 + $0xf0] sm:$0xf]
    %v1122 = vld [vmem:[#allocation7 + $0xf4] sm:$0xf]
    %v1123 = vld [vmem:[#allocation7 + $0xf8] sm:$0xf]
    %v1124 = vld [vmem:[#allocation7 + $0xfc] sm:$0xf]
    %v1125 = vld [vmem:[%s4] sm:$0x1]
    %v1127 = vlaneseq
    %v1128 = vshrl.u32 %v1127, 7
    %v1129 = vsub.s32 0, %v1128
    %v1130 = vrot.slane %v1125, %v1129
    %v1196 = vunpack.c.l.b16 %v1061
    %v1197 = vunpack.c.l.b16 %v1062
    %v1198 = vunpack.c.l.b16 %v1063
    %v1199 = vunpack.c.l.b16 %v1064
    %v1200 = vunpack.c.l.b16 %v1065
    %v1201 = vunpack.c.l.b16 %v1066
    %v1202 = vunpack.c.l.b16 %v1067
    %v1203 = vunpack.c.l.b16 %v1068
    %v1204 = vunpack.c.l.b16 %v1069
    %v1205 = vunpack.c.l.b16 %v1070
    %v1206 = vunpack.c.l.b16 %v1071
    %v1207 = vunpack.c.l.b16 %v1072
    %v1208 = vunpack.c.l.b16 %v1073
    %v1209 = vunpack.c.l.b16 %v1074
    %v1210 = vunpack.c.l.b16 %v1075
    %v1211 = vunpack.c.l.b16 %v1076
    %v1212 = vunpack.c.l.b16 %v1077
    %v1213 = vunpack.c.l.b16 %v1078
    %v1214 = vunpack.c.l.b16 %v1079
    %v1215 = vunpack.c.l.b16 %v1080
    %v1216 = vunpack.c.l.b16 %v1081
    %v1217 = vunpack.c.l.b16 %v1082
    %v1218 = vunpack.c.l.b16 %v1083
    %v1219 = vunpack.c.l.b16 %v1084
    %v1220 = vunpack.c.l.b16 %v1085
    %v1221 = vunpack.c.l.b16 %v1086
    %v1222 = vunpack.c.l.b16 %v1087
    %v1223 = vunpack.c.l.b16 %v1088
    %v1224 = vunpack.c.l.b16 %v1089
    %v1225 = vunpack.c.l.b16 %v1090
    %v1226 = vunpack.c.l.b16 %v1091
    %v1227 = vunpack.c.l.b16 %v1092
    %v1228 = vunpack.c.l.b16 %v1093
    %v1229 = vunpack.c.l.b16 %v1094
    %v1230 = vunpack.c.l.b16 %v1095
    %v1231 = vunpack.c.l.b16 %v1096
    %v1232 = vunpack.c.l.b16 %v1097
    %v1233 = vunpack.c.l.b16 %v1098
    %v1234 = vunpack.c.l.b16 %v1099
    %v1235 = vunpack.c.l.b16 %v1100
    %v1236 = vunpack.c.l.b16 %v1101
    %v1237 = vunpack.c.l.b16 %v1102
    %v1238 = vunpack.c.l.b16 %v1103
    %v1239 = vunpack.c.l.b16 %v1104
    %v1240 = vunpack.c.l.b16 %v1105
    %v1241 = vunpack.c.l.b16 %v1106
    %v1242 = vunpack.c.l.b16 %v1107
    %v1243 = vunpack.c.l.b16 %v1108
    %v1244 = vunpack.c.l.b16 %v1109
    %v1245 = vunpack.c.l.b16 %v1110
    %v1246 = vunpack.c.l.b16 %v1111
    %v1247 = vunpack.c.l.b16 %v1112
    %v1248 = vunpack.c.l.b16 %v1113
    %v1249 = vunpack.c.l.b16 %v1114
    %v1250 = vunpack.c.l.b16 %v1115
    %v1251 = vunpack.c.l.b16 %v1116
    %v1252 = vunpack.c.l.b16 %v1117
    %v1253 = vunpack.c.l.b16 %v1118
    %v1254 = vunpack.c.l.b16 %v1119
    %v1255 = vunpack.c.l.b16 %v1120
    %v1256 = vunpack.c.l.b16 %v1121
    %v1257 = vunpack.c.l.b16 %v1122
    %v1258 = vunpack.c.l.b16 %v1123
    %v1259 = vunpack.c.l.b16 %v1124
    %v1260 = vpack.c.b16 %v1197, %v1196
    %v1261 = vpack.c.b16 %v1199, %v1198
    %v1262 = vpack.c.b16 %v1201, %v1200
    %v1263 = vpack.c.b16 %v1203, %v1202
    %v1264 = vpack.c.b16 %v1205, %v1204
    %v1265 = vpack.c.b16 %v1207, %v1206
    %v1266 = vpack.c.b16 %v1209, %v1208
    %v1267 = vpack.c.b16 %v1211, %v1210
    %v1268 = vpack.c.b16 %v1213, %v1212
    %v1269 = vpack.c.b16 %v1215, %v1214
    %v1270 = vpack.c.b16 %v1217, %v1216
    %v1271 = vpack.c.b16 %v1219, %v1218
    %v1272 = vpack.c.b16 %v1221, %v1220
    %v1273 = vpack.c.b16 %v1223, %v1222
    %v1274 = vpack.c.b16 %v1225, %v1224
    %v1275 = vpack.c.b16 %v1227, %v1226
    %v1276 = vpack.c.b16 %v1229, %v1228
    %v1277 = vpack.c.b16 %v1231, %v1230
    %v1278 = vpack.c.b16 %v1233, %v1232
    %v1279 = vpack.c.b16 %v1235, %v1234
    %v1280 = vpack.c.b16 %v1237, %v1236
    %v1281 = vpack.c.b16 %v1239, %v1238
    %v1282 = vpack.c.b16 %v1241, %v1240
    %v1283 = vpack.c.b16 %v1243, %v1242
    %v1284 = vpack.c.b16 %v1245, %v1244
    %v1285 = vpack.c.b16 %v1247, %v1246
    %v1286 = vpack.c.b16 %v1249, %v1248
    %v1287 = vpack.c.b16 %v1251, %v1250
    %v1288 = vpack.c.b16 %v1253, %v1252
    %v1289 = vpack.c.b16 %v1255, %v1254
    %v1290 = vpack.c.b16 %v1257, %v1256
    %v1291 = vpack.c.b16 %v1259, %v1258
    %1324 = vmatprep.subr.bf16.mxu0 0
    %1325 = vmatpush1.bf16.msra.mxu0 %v1260
    %1326 = vmatprep.subr.bf16.mxu0 0
    %1327 = vmatpush1.bf16.msra.mxu0 %v1261
    %1328 = vmatprep.subr.bf16.mxu0 0
    %1329 = vmatpush1.bf16.msra.mxu0 %v1262
    %1330 = vmatprep.subr.bf16.mxu0 0
    %1331 = vmatpush1.bf16.msra.mxu0 %v1263
    %1332 = vmatprep.subr.bf16.mxu0 0
    %1333 = vmatpush1.bf16.msra.mxu0 %v1264
    %1334 = vmatprep.subr.bf16.mxu0 0
    %1335 = vmatpush1.bf16.msra.mxu0 %v1265
    %1336 = vmatprep.subr.bf16.mxu0 0
    %1337 = vmatpush1.bf16.msra.mxu0 %v1266
    %1338 = vmatprep.subr.bf16.mxu0 0
    %1339 = vmatpush1.bf16.msra.mxu0 %v1267
    %1340 = vmatprep.subr.bf16.mxu0 0
    %1341 = vmatpush1.bf16.msra.mxu0 %v1268
    %1342 = vmatprep.subr.bf16.mxu0 0
    %1343 = vmatpush1.bf16.msra.mxu0 %v1269
    %1344 = vmatprep.subr.bf16.mxu0 0
    %1345 = vmatpush1.bf16.msra.mxu0 %v1270
    %1346 = vmatprep.subr.bf16.mxu0 0
    %1347 = vmatpush1.bf16.msra.mxu0 %v1271
    %1348 = vmatprep.subr.bf16.mxu0 0
    %1349 = vmatpush1.bf16.msra.mxu0 %v1272
    %1350 = vmatprep.subr.bf16.mxu0 0
    %1351 = vmatpush1.bf16.msra.mxu0 %v1273
    %1352 = vmatprep.subr.bf16.mxu0 0
    %1353 = vmatpush1.bf16.msra.mxu0 %v1274
    %1354 = vmatprep.subr.bf16.mxu0 0
    %1355 = vmatpush1.bf16.msra.mxu0 %v1275
    %1356 = vmatprep.mubr.bf16.mxu0 %v998
    %1357 = vmatmul.mubr.bf16.gmra.mrb[0].mxu0 %v997
    %v1358 = vpop.f32.mrb[0].mxu0
    %v1359 = vadd.f32 %v1130, %v1358
    %v1360 = vpop.f32.mrb[0].mxu0
    %v1361 = vpop.f32.mrb[0].mxu0
    %v1362 = vadd.f32 %v1130, %v1361
    %v1363 = vpop.f32.mrb[0].mxu0
    %1364 = vmatprep.mubr.bf16.mxu0 %v1002
    %1365 = vmatmul.mubr.bf16.gmra.mrb[0].mxu0 %v1001
    %v1366 = vpop.f32.mrb[0].mxu0
    %v1367 = vadd.f32 %v1130, %v1366
    %v1368 = vpop.f32.mrb[0].mxu0
    %v1369 = vpop.f32.mrb[0].mxu0
    %v1370 = vadd.f32 %v1130, %v1369
    %v1371 = vpop.f32.mrb[0].mxu0
    %1372 = vmatprep.mubr.bf16.mxu0 %v1006
    %1373 = vmatmul.mubr.bf16.gmra.mrb[0].mxu0 %v1005
    %v1374 = vpop.f32.mrb[0].mxu0
    %v1375 = vadd.f32 %v1130, %v1374
    %v1376 = vpop.f32.mrb[0].mxu0
    %v1377 = vpop.f32.mrb[0].mxu0
    %v1378 = vadd.f32 %v1130, %v1377
    %v1379 = vpop.f32.mrb[0].mxu0
    %1380 = vmatprep.mubr.bf16.mxu0 %v1010
    %1381 = vmatmul.mubr.bf16.gmra.mrb[0].mxu0 %v1009
    %v1382 = vpop.f32.mrb[0].mxu0
    %v1383 = vadd.f32 %v1130, %v1382
    %v1384 = vpop.f32.mrb[0].mxu0
    %v1385 = vpop.f32.mrb[0].mxu0
    %v1386 = vadd.f32 %v1130, %v1385
    %v1387 = vpop.f32.mrb[0].mxu0
    %1388 = vmatprep.mubr.bf16.mxu0 %v1014
    %1389 = vmatmul.mubr.bf16.gmra.mrb[0].mxu0 %v1013
    %v1390 = vpop.f32.mrb[0].mxu0
    %v1391 = vadd.f32 %v1130, %v1390
    %v1392 = vpop.f32.mrb[0].mxu0
    %v1393 = vpop.f32.mrb[0].mxu0
    %v1394 = vadd.f32 %v1130, %v1393
    %v1395 = vpop.f32.mrb[0].mxu0
    %1396 = vmatprep.mubr.bf16.mxu0 %v1018
    %1397 = vmatmul.mubr.bf16.gmra.mrb[0].mxu0 %v1017
    %v1398 = vpop.f32.mrb[0].mxu0
    %v1399 = vadd.f32 %v1130, %v1398
    %v1400 = vpop.f32.mrb[0].mxu0
    %v1401 = vpop.f32.mrb[0].mxu0
    %v1402 = vadd.f32 %v1130, %v1401
    %v1403 = vpop.f32.mrb[0].mxu0
    %1404 = vmatprep.mubr.bf16.mxu0 %v1022
    %1405 = vmatmul.mubr.bf16.gmra.mrb[0].mxu0 %v1021
    %v1406 = vpop.f32.mrb[0].mxu0
    %v1407 = vadd.f32 %v1130, %v1406
    %v1408 = vpop.f32.mrb[0].mxu0
    %v1409 = vpop.f32.mrb[0].mxu0
    %v1410 = vadd.f32 %v1130, %v1409
    %v1411 = vpop.f32.mrb[0].mxu0
    %1412 = vmatprep.mubr.bf16.mxu0 %v1026
    %1413 = vmatmul.mubr.bf16.gmra.mrb[0].mxu0 %v1025
    %v1414 = vpop.f32.mrb[0].mxu0
    %v1415 = vadd.f32 %v1130, %v1414
    %v1416 = vpop.f32.mrb[0].mxu0
    %v1417 = vpop.f32.mrb[0].mxu0
    %v1418 = vadd.f32 %v1130, %v1417
    %v1419 = vpop.f32.mrb[0].mxu0
    %1420 = vmatprep.mubr.bf16.mxu0 %v1030
    %1421 = vmatmul.mubr.bf16.gmra.mrb[0].mxu0 %v1029
    %v1422 = vpop.f32.mrb[0].mxu0
    %v1423 = vadd.f32 %v1130, %v1422
    %v1424 = vpop.f32.mrb[0].mxu0
    %v1425 = vpop.f32.mrb[0].mxu0
    %v1426 = vadd.f32 %v1130, %v1425
    %v1427 = vpop.f32.mrb[0].mxu0
    %1428 = vmatprep.mubr.bf16.mxu0 %v1034
    %1429 = vmatmul.mubr.bf16.gmra.mrb[0].mxu0 %v1033
    %v1430 = vpop.f32.mrb[0].mxu0
    %v1431 = vadd.f32 %v1130, %v1430
    %v1432 = vpop.f32.mrb[0].mxu0
    %v1433 = vpop.f32.mrb[0].mxu0
    %v1434 = vadd.f32 %v1130, %v1433
    %v1435 = vpop.f32.mrb[0].mxu0
    %1436 = vmatprep.mubr.bf16.mxu0 %v1038
    %1437 = vmatmul.mubr.bf16.gmra.mrb[0].mxu0 %v1037
    %v1438 = vpop.f32.mrb[0].mxu0
    %v1439 = vadd.f32 %v1130, %v1438
    %v1440 = vpop.f32.mrb[0].mxu0
    %v1441 = vpop.f32.mrb[0].mxu0
    %v1442 = vadd.f32 %v1130, %v1441
    %v1443 = vpop.f32.mrb[0].mxu0
    %1444 = vmatprep.mubr.bf16.mxu0 %v1042
    %1445 = vmatmul.mubr.bf16.gmra.mrb[0].mxu0 %v1041
    %v1446 = vpop.f32.mrb[0].mxu0
    %v1447 = vadd.f32 %v1130, %v1446
    %v1448 = vpop.f32.mrb[0].mxu0
    %v1449 = vpop.f32.mrb[0].mxu0
    %v1450 = vadd.f32 %v1130, %v1449
    %v1451 = vpop.f32.mrb[0].mxu0
    %1452 = vmatprep.mubr.bf16.mxu0 %v1046
    %1453 = vmatmul.mubr.bf16.gmra.mrb[0].mxu0 %v1045
    %v1454 = vpop.f32.mrb[0].mxu0
    %v1455 = vadd.f32 %v1130, %v1454
    %v1456 = vpop.f32.mrb[0].mxu0
    %v1457 = vpop.f32.mrb[0].mxu0
    %v1458 = vadd.f32 %v1130, %v1457
    %v1459 = vpop.f32.mrb[0].mxu0
    %1460 = vmatprep.mubr.bf16.mxu0 %v1050
    %1461 = vmatmul.mubr.bf16.gmra.mrb[0].mxu0 %v1049
    %v1462 = vpop.f32.mrb[0].mxu0
    %v1463 = vadd.f32 %v1130, %v1462
    %v1464 = vpop.f32.mrb[0].mxu0
    %v1465 = vpop.f32.mrb[0].mxu0
    %v1466 = vadd.f32 %v1130, %v1465
    %v1467 = vpop.f32.mrb[0].mxu0
    %1468 = vmatprep.mubr.bf16.mxu0 %v1054
    %1469 = vmatmul.mubr.bf16.gmra.mrb[0].mxu0 %v1053
    %v1470 = vpop.f32.mrb[0].mxu0
    %v1471 = vadd.f32 %v1130, %v1470
    %v1472 = vpop.f32.mrb[0].mxu0
    %v1473 = vpop.f32.mrb[0].mxu0
    %v1474 = vadd.f32 %v1130, %v1473
    %v1475 = vpop.f32.mrb[0].mxu0
    %1476 = vmatprep.mubr.bf16.mxu0 %v1058
    %1477 = vmatmul.mubr.bf16.gmra.mrb[0].mxu0 %v1057
    %v1478 = vpop.f32.mrb[0].mxu0
    %v1479 = vadd.f32 %v1130, %v1478
    %v1480 = vpop.f32.mrb[0].mxu0
    %v1481 = vpop.f32.mrb[0].mxu0
    %v1482 = vadd.f32 %v1130, %v1481
    %v1483 = vpop.f32.mrb[0].mxu0
    %1484 = vdwg.mxu0
    %1485 = vmatprep.subr.bf16.mxu0 0
    %1486 = vmatpush1.bf16.msra.mxu0 %v1276
    %1487 = vmatprep.subr.bf16.mxu0 0
    %1488 = vmatpush1.bf16.msra.mxu0 %v1277
    %1489 = vmatprep.subr.bf16.mxu0 0
    %1490 = vmatpush1.bf16.msra.mxu0 %v1278
    %1491 = vmatprep.subr.bf16.mxu0 0
    %1492 = vmatpush1.bf16.msra.mxu0 %v1279
    %1493 = vmatprep.subr.bf16.mxu0 0
    %1494 = vmatpush1.bf16.msra.mxu0 %v1280
    %1495 = vmatprep.subr.bf16.mxu0 0
    %1496 = vmatpush1.bf16.msra.mxu0 %v1281
    %1497 = vmatprep.subr.bf16.mxu0 0
    %1498 = vmatpush1.bf16.msra.mxu0 %v1282
    %1499 = vmatprep.subr.bf16.mxu0 0
    %1500 = vmatpush1.bf16.msra.mxu0 %v1283
    %1501 = vmatprep.subr.bf16.mxu0 0
    %1502 = vmatpush1.bf16.msra.mxu0 %v1284
    %1503 = vmatprep.subr.bf16.mxu0 0
    %1504 = vmatpush1.bf16.msra.mxu0 %v1285
    %1505 = vmatprep.subr.bf16.mxu0 0
    %1506 = vmatpush1.bf16.msra.mxu0 %v1286
    %1507 = vmatprep.subr.bf16.mxu0 0
    %1508 = vmatpush1.bf16.msra.mxu0 %v1287
    %1509 = vmatprep.subr.bf16.mxu0 0
    %1510 = vmatpush1.bf16.msra.mxu0 %v1288
    %1511 = vmatprep.subr.bf16.mxu0 0
    %1512 = vmatpush1.bf16.msra.mxu0 %v1289
    %1513 = vmatprep.subr.bf16.mxu0 0
    %1514 = vmatpush1.bf16.msra.mxu0 %v1290
    %1515 = vmatprep.subr.bf16.mxu0 0
    %1516 = vmatpush1.bf16.msra.mxu0 %v1291
    %1517 = vmatprep.mubr.bf16.mxu0 %v1000
    %1518 = vmatmul.mubr.bf16.gmra.mrb[0].mxu0 %v999
    %v1519 = vpop.f32.mrb[0].mxu0
    %v1520 = vadd.f32 %v1359, %v1519
    %v1521 = vpop.f32.mrb[0].mxu0
    %v1522 = vpop.f32.mrb[0].mxu0
    %v1523 = vadd.f32 %v1362, %v1522
    %v1524 = vpop.f32.mrb[0].mxu0
    %1525 = vmatprep.mubr.bf16.mxu0 %v1004
    %1526 = vmatmul.mubr.bf16.gmra.mrb[0].mxu0 %v1003
    %v1527 = vpop.f32.mrb[0].mxu0
    %v1528 = vadd.f32 %v1367, %v1527
    %v1529 = vpop.f32.mrb[0].mxu0
    %v1530 = vpop.f32.mrb[0].mxu0
    %v1531 = vadd.f32 %v1370, %v1530
    %v1532 = vpop.f32.mrb[0].mxu0
    %1533 = vmatprep.mubr.bf16.mxu0 %v1008
    %1534 = vmatmul.mubr.bf16.gmra.mrb[0].mxu0 %v1007
    %v1535 = vpop.f32.mrb[0].mxu0
    %v1536 = vadd.f32 %v1375, %v1535
    %v1537 = vpop.f32.mrb[0].mxu0
    %v1538 = vpop.f32.mrb[0].mxu0
    %v1539 = vadd.f32 %v1378, %v1538
    %v1540 = vpop.f32.mrb[0].mxu0
    %1541 = vmatprep.mubr.bf16.mxu0 %v1012
    %1542 = vmatmul.mubr.bf16.gmra.mrb[0].mxu0 %v1011
    %v1543 = vpop.f32.mrb[0].mxu0
    %v1544 = vadd.f32 %v1383, %v1543
    %v1545 = vpop.f32.mrb[0].mxu0
    %v1546 = vpop.f32.mrb[0].mxu0
    %v1547 = vadd.f32 %v1386, %v1546
    %v1548 = vpop.f32.mrb[0].mxu0
    %1549 = vmatprep.mubr.bf16.mxu0 %v1016
    %1550 = vmatmul.mubr.bf16.gmra.mrb[0].mxu0 %v1015
    %v1551 = vpop.f32.mrb[0].mxu0
    %v1552 = vadd.f32 %v1391, %v1551
    %v1553 = vpop.f32.mrb[0].mxu0
    %v1554 = vpop.f32.mrb[0].mxu0
    %v1555 = vadd.f32 %v1394, %v1554
    %v1556 = vpop.f32.mrb[0].mxu0
    %1557 = vmatprep.mubr.bf16.mxu0 %v1020
    %1558 = vmatmul.mubr.bf16.gmra.mrb[0].mxu0 %v1019
    %v1559 = vpop.f32.mrb[0].mxu0
    %v1560 = vadd.f32 %v1399, %v1559
    %v1561 = vpop.f32.mrb[0].mxu0
    %v1562 = vpop.f32.mrb[0].mxu0
    %v1563 = vadd.f32 %v1402, %v1562
    %v1564 = vpop.f32.mrb[0].mxu0
    %1565 = vmatprep.mubr.bf16.mxu0 %v1024
    %1566 = vmatmul.mubr.bf16.gmra.mrb[0].mxu0 %v1023
    %v1567 = vpop.f32.mrb[0].mxu0
    %v1568 = vadd.f32 %v1407, %v1567
    %v1569 = vpop.f32.mrb[0].mxu0
    %v1570 = vpop.f32.mrb[0].mxu0
    %v1571 = vadd.f32 %v1410, %v1570
    %v1572 = vpop.f32.mrb[0].mxu0
    %1573 = vmatprep.mubr.bf16.mxu0 %v1028
    %1574 = vmatmul.mubr.bf16.gmra.mrb[0].mxu0 %v1027
    %v1575 = vpop.f32.mrb[0].mxu0
    %v1576 = vadd.f32 %v1415, %v1575
    %v1577 = vpop.f32.mrb[0].mxu0
    %v1578 = vpop.f32.mrb[0].mxu0
    %v1579 = vadd.f32 %v1418, %v1578
    %v1580 = vpop.f32.mrb[0].mxu0
    %1581 = vmatprep.mubr.bf16.mxu0 %v1032
    %1582 = vmatmul.mubr.bf16.gmra.mrb[0].mxu0 %v1031
    %v1583 = vpop.f32.mrb[0].mxu0
    %v1584 = vadd.f32 %v1423, %v1583
    %v1585 = vpop.f32.mrb[0].mxu0
    %v1586 = vpop.f32.mrb[0].mxu0
    %v1587 = vadd.f32 %v1426, %v1586
    %v1588 = vpop.f32.mrb[0].mxu0
    %1589 = vmatprep.mubr.bf16.mxu0 %v1036
    %1590 = vmatmul.mubr.bf16.gmra.mrb[0].mxu0 %v1035
    %v1591 = vpop.f32.mrb[0].mxu0
    %v1592 = vadd.f32 %v1431, %v1591
    %v1593 = vpop.f32.mrb[0].mxu0
    %v1594 = vpop.f32.mrb[0].mxu0
    %v1595 = vadd.f32 %v1434, %v1594
    %v1596 = vpop.f32.mrb[0].mxu0
    %1597 = vmatprep.mubr.bf16.mxu0 %v1040
    %1598 = vmatmul.mubr.bf16.gmra.mrb[0].mxu0 %v1039
    %v1599 = vpop.f32.mrb[0].mxu0
    %v1600 = vadd.f32 %v1439, %v1599
    %v1601 = vpop.f32.mrb[0].mxu0
    %v1602 = vpop.f32.mrb[0].mxu0
    %v1603 = vadd.f32 %v1442, %v1602
    %v1604 = vpop.f32.mrb[0].mxu0
    %1605 = vmatprep.mubr.bf16.mxu0 %v1044
    %1606 = vmatmul.mubr.bf16.gmra.mrb[0].mxu0 %v1043
    %v1607 = vpop.f32.mrb[0].mxu0
    %v1608 = vadd.f32 %v1447, %v1607
    %v1609 = vpop.f32.mrb[0].mxu0
    %v1610 = vpop.f32.mrb[0].mxu0
    %v1611 = vadd.f32 %v1450, %v1610
    %v1612 = vpop.f32.mrb[0].mxu0
    %1613 = vmatprep.mubr.bf16.mxu0 %v1048
    %1614 = vmatmul.mubr.bf16.gmra.mrb[0].mxu0 %v1047
    %v1615 = vpop.f32.mrb[0].mxu0
    %v1616 = vadd.f32 %v1455, %v1615
    %v1617 = vpop.f32.mrb[0].mxu0
    %v1618 = vpop.f32.mrb[0].mxu0
    %v1619 = vadd.f32 %v1458, %v1618
    %v1620 = vpop.f32.mrb[0].mxu0
    %1621 = vmatprep.mubr.bf16.mxu0 %v1052
    %1622 = vmatmul.mubr.bf16.gmra.mrb[0].mxu0 %v1051
    %v1623 = vpop.f32.mrb[0].mxu0
    %v1624 = vadd.f32 %v1463, %v1623
    %v1625 = vpop.f32.mrb[0].mxu0
    %v1626 = vpop.f32.mrb[0].mxu0
    %v1627 = vadd.f32 %v1466, %v1626
    %v1628 = vpop.f32.mrb[0].mxu0
    %1629 = vmatprep.mubr.bf16.mxu0 %v1056
    %1630 = vmatmul.mubr.bf16.gmra.mrb[0].mxu0 %v1055
    %v1631 = vpop.f32.mrb[0].mxu0
    %v1632 = vadd.f32 %v1471, %v1631
    %v1633 = vpop.f32.mrb[0].mxu0
    %v1634 = vpop.f32.mrb[0].mxu0
    %v1635 = vadd.f32 %v1474, %v1634
    %v1636 = vpop.f32.mrb[0].mxu0
    %1637 = vmatprep.mubr.bf16.mxu0 %v1060
    %1638 = vmatmul.mubr.bf16.gmra.mrb[0].mxu0 %v1059
    %v1639 = vpop.f32.mrb[0].mxu0
    %v1640 = vadd.f32 %v1479, %v1639
    %v1641 = vpop.f32.mrb[0].mxu0
    %v1642 = vpop.f32.mrb[0].mxu0
    %v1643 = vadd.f32 %v1482, %v1642
    %v1644 = vpop.f32.mrb[0].mxu0
    %1645 = vdwg.mxu0
    %v1646 = vmax.f32 %v1520, 0.0
    %v1647 = vmax.f32 %v1523, 0.0
    %v1648 = vmax.f32 %v1528, 0.0
    %v1649 = vmax.f32 %v1531, 0.0
    %v1650 = vmax.f32 %v1536, 0.0
    %v1651 = vmax.f32 %v1539, 0.0
    %v1652 = vmax.f32 %v1544, 0.0
    %v1653 = vmax.f32 %v1547, 0.0
    %v1654 = vmax.f32 %v1552, 0.0
    %v1655 = vmax.f32 %v1555, 0.0
    %v1656 = vmax.f32 %v1560, 0.0
    %v1657 = vmax.f32 %v1563, 0.0
    %v1658 = vmax.f32 %v1568, 0.0
    %v1659 = vmax.f32 %v1571, 0.0
    %v1660 = vmax.f32 %v1576, 0.0
    %v1661 = vmax.f32 %v1579, 0.0
    %v1662 = vmax.f32 %v1584, 0.0
    %v1663 = vmax.f32 %v1587, 0.0
    %v1664 = vmax.f32 %v1592, 0.0
    %v1665 = vmax.f32 %v1595, 0.0
    %v1666 = vmax.f32 %v1600, 0.0
    %v1667 = vmax.f32 %v1603, 0.0
    %v1668 = vmax.f32 %v1608, 0.0
    %v1669 = vmax.f32 %v1611, 0.0
    %v1670 = vmax.f32 %v1616, 0.0
    %v1671 = vmax.f32 %v1619, 0.0
    %v1672 = vmax.f32 %v1624, 0.0
    %v1673 = vmax.f32 %v1627, 0.0
    %v1674 = vmax.f32 %v1632, 0.0
    %v1675 = vmax.f32 %v1635, 0.0
    %v1676 = vmax.f32 %v1640, 0.0
    %v1677 = vmax.f32 %v1643, 0.0
    %v1678 = vpack.c.bf16 %v1647, %v1646
    %v1679 = vpack.c.bf16 %v1649, %v1648
    %v1680 = vpack.c.bf16 %v1651, %v1650
    %v1681 = vpack.c.bf16 %v1653, %v1652
    %v1682 = vpack.c.bf16 %v1655, %v1654
    %v1683 = vpack.c.bf16 %v1657, %v1656
    %v1684 = vpack.c.bf16 %v1659, %v1658
    %v1685 = vpack.c.bf16 %v1661, %v1660
    %v1686 = vpack.c.bf16 %v1663, %v1662
    %v1687 = vpack.c.bf16 %v1665, %v1664
    %v1688 = vpack.c.bf16 %v1667, %v1666
    %v1689 = vpack.c.bf16 %v1669, %v1668
    %v1690 = vpack.c.bf16 %v1671, %v1670
    %v1691 = vpack.c.bf16 %v1673, %v1672
    %v1692 = vpack.c.bf16 %v1675, %v1674
    %v1693 = vpack.c.bf16 %v1677, %v1676
    %v1694 = vld [vmem:[#allocation8] sm:$0xf]
    %v1695 = vld [vmem:[#allocation8 + $0x4] sm:$0xf]
    %v1696 = vld [vmem:[#allocation8 + $0x8] sm:$0xf]
    %v1697 = vld [vmem:[#allocation8 + $0xc] sm:$0xf]
    %v1698 = vld [vmem:[#allocation8 + $0x10] sm:$0xf]
    %v1699 = vld [vmem:[#allocation8 + $0x14] sm:$0xf]
    %v1700 = vld [vmem:[#allocation8 + $0x18] sm:$0xf]
    %v1701 = vld [vmem:[#allocation8 + $0x1c] sm:$0xf]
    %v1702 = vld [vmem:[#allocation8 + $0x20] sm:$0xf]
    %v1703 = vld [vmem:[#allocation8 + $0x24] sm:$0xf]
    %v1704 = vld [vmem:[#allocation8 + $0x28] sm:$0xf]
    %v1705 = vld [vmem:[#allocation8 + $0x2c] sm:$0xf]
    %v1706 = vld [vmem:[#allocation8 + $0x30] sm:$0xf]
    %v1707 = vld [vmem:[#allocation8 + $0x34] sm:$0xf]
    %v1708 = vld [vmem:[#allocation8 + $0x38] sm:$0xf]
    %v1709 = vld [vmem:[#allocation8 + $0x3c] sm:$0xf]
    %v1710 = vld [vmem:[%s6] sm:$0x1]
    %v1712 = vlaneseq
    %v1713 = vshrl.u32 %v1712, 7
    %v1714 = vsub.s32 0, %v1713
    %v1715 = vrot.slane %v1710, %v1714
    %v1733 = vunpack.c.l.b16 %v1694
    %v1734 = vunpack.c.l.b16 %v1695
    %v1735 = vunpack.c.l.b16 %v1696
    %v1736 = vunpack.c.l.b16 %v1697
    %v1737 = vunpack.c.l.b16 %v1698
    %v1738 = vunpack.c.l.b16 %v1699
    %v1739 = vunpack.c.l.b16 %v1700
    %v1740 = vunpack.c.l.b16 %v1701
    %v1741 = vunpack.c.l.b16 %v1702
    %v1742 = vunpack.c.l.b16 %v1703
    %v1743 = vunpack.c.l.b16 %v1704
    %v1744 = vunpack.c.l.b16 %v1705
    %v1745 = vunpack.c.l.b16 %v1706
    %v1746 = vunpack.c.l.b16 %v1707
    %v1747 = vunpack.c.l.b16 %v1708
    %v1748 = vunpack.c.l.b16 %v1709
    %v1749 = vpack.c.b16 %v1734, %v1733
    %v1750 = vpack.c.b16 %v1736, %v1735
    %v1751 = vpack.c.b16 %v1738, %v1737
    %v1752 = vpack.c.b16 %v1740, %v1739
    %v1753 = vpack.c.b16 %v1742, %v1741
    %v1754 = vpack.c.b16 %v1744, %v1743
    %v1755 = vpack.c.b16 %v1746, %v1745
    %v1756 = vpack.c.b16 %v1748, %v1747
    %1765 = vmatprep.subr.bf16.mxu0 0
    %1766 = vmatpush1.bf16.msra.mxu0 %v1749
    %1767 = vmatprep.subr.bf16.mxu0 0
    %1768 = vmatpush1.bf16.msra.mxu0 %v1750
    %1769 = vmatprep.subr.bf16.mxu0 0
    %1770 = vmatpush1.bf16.msra.mxu0 %v1751
    %1771 = vmatprep.subr.bf16.mxu0 0
    %1772 = vmatpush1.bf16.msra.mxu0 %v1752
    %1773 = vmatprep.subr.bf16.mxu0 0
    %1774 = vmatpush1.bf16.msra.mxu0 %v1753
    %1775 = vmatprep.subr.bf16.mxu0 0
    %1776 = vmatpush1.bf16.msra.mxu0 %v1754
    %1777 = vmatprep.subr.bf16.mxu0 0
    %1778 = vmatpush1.bf16.msra.mxu0 %v1755
    %1779 = vmatprep.subr.bf16.mxu0 0
    %1780 = vmatpush1.bf16.msra.mxu0 %v1756
    %1781 = vmatprep.subr.bf16.mxu0 0
    %1782 = vmatpush1.bf16.msra.mxu0 0
    %1783 = vmatprep.subr.bf16.mxu0 0
    %1784 = vmatpush1.bf16.msra.mxu0 0
    %1785 = vmatprep.subr.bf16.mxu0 0
    %1786 = vmatpush1.bf16.msra.mxu0 0
    %1787 = vmatprep.subr.bf16.mxu0 0
    %1788 = vmatpush1.bf16.msra.mxu0 0
    %1789 = vmatprep.subr.bf16.mxu0 0
    %1790 = vmatpush1.bf16.msra.mxu0 0
    %1791 = vmatprep.subr.bf16.mxu0 0
    %1792 = vmatpush1.bf16.msra.mxu0 0
    %1793 = vmatprep.subr.bf16.mxu0 0
    %1794 = vmatpush1.bf16.msra.mxu0 0
    %1795 = vmatprep.subr.bf16.mxu0 0
    %1796 = vmatpush1.bf16.msra.mxu0 0
    %1797 = vmatprep.mubr.bf16.mxu0 0
    %1798 = vmatmul.mubr.bf16.gmra.mrb[0].mxu0 %v1678
    %v1799 = vpop.f32.mrb[0].mxu0
    %v1800 = vadd.f32 %v1715, %v1799
    %v1801 = vpop.f32.mrb[0].mxu0
    %v1802 = vpop.f32.mrb[0].mxu0
    %v1803 = vadd.f32 %v1715, %v1802
    %v1804 = vpop.f32.mrb[0].mxu0
    %1805 = vmatprep.mubr.bf16.mxu0 0
    %1806 = vmatmul.mubr.bf16.gmra.mrb[0].mxu0 %v1679
    %v1807 = vpop.f32.mrb[0].mxu0
    %v1808 = vadd.f32 %v1715, %v1807
    %v1809 = vpop.f32.mrb[0].mxu0
    %v1810 = vpop.f32.mrb[0].mxu0
    %v1811 = vadd.f32 %v1715, %v1810
    %v1812 = vpop.f32.mrb[0].mxu0
    %1813 = vmatprep.mubr.bf16.mxu0 0
    %1814 = vmatmul.mubr.bf16.gmra.mrb[0].mxu0 %v1680
    %v1815 = vpop.f32.mrb[0].mxu0
    %v1816 = vadd.f32 %v1715, %v1815
    %v1817 = vpop.f32.mrb[0].mxu0
    %v1818 = vpop.f32.mrb[0].mxu0
    %v1819 = vadd.f32 %v1715, %v1818
    %v1820 = vpop.f32.mrb[0].mxu0
    %1821 = vmatprep.mubr.bf16.mxu0 0
    %1822 = vmatmul.mubr.bf16.gmra.mrb[0].mxu0 %v1681
    %v1823 = vpop.f32.mrb[0].mxu0
    %v1824 = vadd.f32 %v1715, %v1823
    %v1825 = vpop.f32.mrb[0].mxu0
    %v1826 = vpop.f32.mrb[0].mxu0
    %v1827 = vadd.f32 %v1715, %v1826
    %v1828 = vpop.f32.mrb[0].mxu0
    %1829 = vmatprep.mubr.bf16.mxu0 0
    %1830 = vmatmul.mubr.bf16.gmra.mrb[0].mxu0 %v1682
    %v1831 = vpop.f32.mrb[0].mxu0
    %v1832 = vadd.f32 %v1715, %v1831
    %v1833 = vpop.f32.mrb[0].mxu0
    %v1834 = vpop.f32.mrb[0].mxu0
    %v1835 = vadd.f32 %v1715, %v1834
    %v1836 = vpop.f32.mrb[0].mxu0
    %1837 = vmatprep.mubr.bf16.mxu0 0
    %1838 = vmatmul.mubr.bf16.gmra.mrb[0].mxu0 %v1683
    %v1839 = vpop.f32.mrb[0].mxu0
    %v1840 = vadd.f32 %v1715, %v1839
    %v1841 = vpop.f32.mrb[0].mxu0
    %v1842 = vpop.f32.mrb[0].mxu0
    %v1843 = vadd.f32 %v1715, %v1842
    %v1844 = vpop.f32.mrb[0].mxu0
    %1845 = vmatprep.mubr.bf16.mxu0 0
    %1846 = vmatmul.mubr.bf16.gmra.mrb[0].mxu0 %v1684
    %v1847 = vpop.f32.mrb[0].mxu0
    %v1848 = vadd.f32 %v1715, %v1847
    %v1849 = vpop.f32.mrb[0].mxu0
    %v1850 = vpop.f32.mrb[0].mxu0
    %v1851 = vadd.f32 %v1715, %v1850
    %v1852 = vpop.f32.mrb[0].mxu0
    %1853 = vmatprep.mubr.bf16.mxu0 0
    %1854 = vmatmul.mubr.bf16.gmra.mrb[0].mxu0 %v1685
    %v1855 = vpop.f32.mrb[0].mxu0
    %v1856 = vadd.f32 %v1715, %v1855
    %v1857 = vpop.f32.mrb[0].mxu0
    %v1858 = vpop.f32.mrb[0].mxu0
    %v1859 = vadd.f32 %v1715, %v1858
    %v1860 = vpop.f32.mrb[0].mxu0
    %1861 = vmatprep.mubr.bf16.mxu0 0
    %1862 = vmatmul.mubr.bf16.gmra.mrb[0].mxu0 %v1686
    %v1863 = vpop.f32.mrb[0].mxu0
    %v1864 = vadd.f32 %v1715, %v1863
    %v1865 = vpop.f32.mrb[0].mxu0
    %v1866 = vpop.f32.mrb[0].mxu0
    %v1867 = vadd.f32 %v1715, %v1866
    %v1868 = vpop.f32.mrb[0].mxu0
    %1869 = vmatprep.mubr.bf16.mxu0 0
    %1870 = vmatmul.mubr.bf16.gmra.mrb[0].mxu0 %v1687
    %v1871 = vpop.f32.mrb[0].mxu0
    %v1872 = vadd.f32 %v1715, %v1871
    %v1873 = vpop.f32.mrb[0].mxu0
    %v1874 = vpop.f32.mrb[0].mxu0
    %v1875 = vadd.f32 %v1715, %v1874
    %v1876 = vpop.f32.mrb[0].mxu0
    %1877 = vmatprep.mubr.bf16.mxu0 0
    %1878 = vmatmul.mubr.bf16.gmra.mrb[0].mxu0 %v1688
    %v1879 = vpop.f32.mrb[0].mxu0
    %v1880 = vadd.f32 %v1715, %v1879
    %v1881 = vpop.f32.mrb[0].mxu0
    %v1882 = vpop.f32.mrb[0].mxu0
    %v1883 = vadd.f32 %v1715, %v1882
    %v1884 = vpop.f32.mrb[0].mxu0
    %1885 = vmatprep.mubr.bf16.mxu0 0
    %1886 = vmatmul.mubr.bf16.gmra.mrb[0].mxu0 %v1689
    %v1887 = vpop.f32.mrb[0].mxu0
    %v1888 = vadd.f32 %v1715, %v1887
    %v1889 = vpop.f32.mrb[0].mxu0
    %v1890 = vpop.f32.mrb[0].mxu0
    %v1891 = vadd.f32 %v1715, %v1890
    %v1892 = vpop.f32.mrb[0].mxu0
    %1893 = vmatprep.mubr.bf16.mxu0 0
    %1894 = vmatmul.mubr.bf16.gmra.mrb[0].mxu0 %v1690
    %v1895 = vpop.f32.mrb[0].mxu0
    %v1896 = vadd.f32 %v1715, %v1895
    %v1897 = vpop.f32.mrb[0].mxu0
    %v1898 = vpop.f32.mrb[0].mxu0
    %v1899 = vadd.f32 %v1715, %v1898
    %v1900 = vpop.f32.mrb[0].mxu0
    %1901 = vmatprep.mubr.bf16.mxu0 0
    %1902 = vmatmul.mubr.bf16.gmra.mrb[0].mxu0 %v1691
    %v1903 = vpop.f32.mrb[0].mxu0
    %v1904 = vadd.f32 %v1715, %v1903
    %v1905 = vpop.f32.mrb[0].mxu0
    %v1906 = vpop.f32.mrb[0].mxu0
    %v1907 = vadd.f32 %v1715, %v1906
    %v1908 = vpop.f32.mrb[0].mxu0
    %1909 = vmatprep.mubr.bf16.mxu0 0
    %1910 = vmatmul.mubr.bf16.gmra.mrb[0].mxu0 %v1692
    %v1911 = vpop.f32.mrb[0].mxu0
    %v1912 = vadd.f32 %v1715, %v1911
    %v1913 = vpop.f32.mrb[0].mxu0
    %v1914 = vpop.f32.mrb[0].mxu0
    %v1915 = vadd.f32 %v1715, %v1914
    %v1916 = vpop.f32.mrb[0].mxu0
    %1917 = vmatprep.mubr.bf16.mxu0 0
    %1918 = vmatmul.mubr.bf16.gmra.mrb[0].mxu0 %v1693
    %v1919 = vpop.f32.mrb[0].mxu0
    %v1920 = vadd.f32 %v1715, %v1919
    %v1921 = vpop.f32.mrb[0].mxu0
    %v1922 = vpop.f32.mrb[0].mxu0
    %v1923 = vadd.f32 %v1715, %v1922
    %v1924 = vpop.f32.mrb[0].mxu0
    %1925 = vdwg.mxu0
    %v1926 = vmax.f32 %v1800, 0.0
    %v1927 = vmax.f32 %v1803, 0.0
    %v1928 = vmax.f32 %v1808, 0.0
    %v1929 = vmax.f32 %v1811, 0.0
    %v1930 = vmax.f32 %v1816, 0.0
    %v1931 = vmax.f32 %v1819, 0.0
    %v1932 = vmax.f32 %v1824, 0.0
    %v1933 = vmax.f32 %v1827, 0.0
    %v1934 = vmax.f32 %v1832, 0.0
    %v1935 = vmax.f32 %v1835, 0.0
    %v1936 = vmax.f32 %v1840, 0.0
    %v1937 = vmax.f32 %v1843, 0.0
    %v1938 = vmax.f32 %v1848, 0.0
    %v1939 = vmax.f32 %v1851, 0.0
    %v1940 = vmax.f32 %v1856, 0.0
    %v1941 = vmax.f32 %v1859, 0.0
    %v1942 = vmax.f32 %v1864, 0.0
    %v1943 = vmax.f32 %v1867, 0.0
    %v1944 = vmax.f32 %v1872, 0.0
    %v1945 = vmax.f32 %v1875, 0.0
    %v1946 = vmax.f32 %v1880, 0.0
    %v1947 = vmax.f32 %v1883, 0.0
    %v1948 = vmax.f32 %v1888, 0.0
    %v1949 = vmax.f32 %v1891, 0.0
    %v1950 = vmax.f32 %v1896, 0.0
    %v1951 = vmax.f32 %v1899, 0.0
    %v1952 = vmax.f32 %v1904, 0.0
    %v1953 = vmax.f32 %v1907, 0.0
    %v1954 = vmax.f32 %v1912, 0.0
    %v1955 = vmax.f32 %v1915, 0.0
    %v1956 = vmax.f32 %v1920, 0.0
    %v1957 = vmax.f32 %v1923, 0.0
    %v1958 = vpack.c.bf16 %v1927, %v1926
    %v1959 = vpack.c.bf16 %v1929, %v1928
    %v1960 = vpack.c.bf16 %v1931, %v1930
    %v1961 = vpack.c.bf16 %v1933, %v1932
    %v1962 = vpack.c.bf16 %v1935, %v1934
    %v1963 = vpack.c.bf16 %v1937, %v1936
    %v1964 = vpack.c.bf16 %v1939, %v1938
    %v1965 = vpack.c.bf16 %v1941, %v1940
    %v1966 = vpack.c.bf16 %v1943, %v1942
    %v1967 = vpack.c.bf16 %v1945, %v1944
    %v1968 = vpack.c.bf16 %v1947, %v1946
    %v1969 = vpack.c.bf16 %v1949, %v1948
    %v1970 = vpack.c.bf16 %v1951, %v1950
    %v1971 = vpack.c.bf16 %v1953, %v1952
    %v1972 = vpack.c.bf16 %v1955, %v1954
    %v1973 = vpack.c.bf16 %v1957, %v1956
    %v1974 = vld [vmem:[#allocation10] sm:$0xf]
    %v1975 = vld [vmem:[#allocation10 + $0x4] sm:$0xf]
    %v1976 = vld [vmem:[#allocation10 + $0x8] sm:$0xf]
    %v1977 = vld [vmem:[#allocation10 + $0xc] sm:$0xf]
    %v1978 = vld [vmem:[#allocation10 + $0x10] sm:$0xf]
    %v1979 = vld [vmem:[#allocation10 + $0x14] sm:$0xf]
    %v1980 = vld [vmem:[#allocation10 + $0x18] sm:$0xf]
    %v1981 = vld [vmem:[#allocation10 + $0x1c] sm:$0xf]
    %v1982 = vld [vmem:[#allocation10 + $0x20] sm:$0xf]
    %v1983 = vld [vmem:[#allocation10 + $0x24] sm:$0xf]
    %v1984 = vld [vmem:[#allocation10 + $0x28] sm:$0xf]
    %v1985 = vld [vmem:[#allocation10 + $0x2c] sm:$0xf]
    %v1986 = vld [vmem:[#allocation10 + $0x30] sm:$0xf]
    %v1987 = vld [vmem:[#allocation10 + $0x34] sm:$0xf]
    %v1988 = vld [vmem:[#allocation10 + $0x38] sm:$0xf]
    %v1989 = vld [vmem:[#allocation10 + $0x3c] sm:$0xf]
    %v1990 = vld [vmem:[%s8] sm:$0x1]
    %v1992 = vlaneseq
    %v1993 = vshrl.u32 %v1992, 7
    %v1994 = vsub.s32 0, %v1993
    %v1995 = vrot.slane %v1990, %v1994
    %v2013 = vunpack.c.l.b16 %v1974
    %v2014 = vunpack.c.l.b16 %v1975
    %v2015 = vunpack.c.l.b16 %v1976
    %v2016 = vunpack.c.l.b16 %v1977
    %v2017 = vunpack.c.l.b16 %v1978
    %v2018 = vunpack.c.l.b16 %v1979
    %v2019 = vunpack.c.l.b16 %v1980
    %v2020 = vunpack.c.l.b16 %v1981
    %v2021 = vunpack.c.l.b16 %v1982
    %v2022 = vunpack.c.l.b16 %v1983
    %v2023 = vunpack.c.l.b16 %v1984
    %v2024 = vunpack.c.l.b16 %v1985
    %v2025 = vunpack.c.l.b16 %v1986
    %v2026 = vunpack.c.l.b16 %v1987
    %v2027 = vunpack.c.l.b16 %v1988
    %v2028 = vunpack.c.l.b16 %v1989
    %v2029 = vpack.c.b16 %v2014, %v2013
    %v2030 = vpack.c.b16 %v2016, %v2015
    %v2031 = vpack.c.b16 %v2018, %v2017
    %v2032 = vpack.c.b16 %v2020, %v2019
    %v2033 = vpack.c.b16 %v2022, %v2021
    %v2034 = vpack.c.b16 %v2024, %v2023
    %v2035 = vpack.c.b16 %v2026, %v2025
    %v2036 = vpack.c.b16 %v2028, %v2027
    %2045 = vmatprep.subr.bf16.mxu0 0
    %2046 = vmatpush1.bf16.msra.mxu0 %v2029
    %2047 = vmatprep.subr.bf16.mxu0 0
    %2048 = vmatpush1.bf16.msra.mxu0 %v2030
    %2049 = vmatprep.subr.bf16.mxu0 0
    %2050 = vmatpush1.bf16.msra.mxu0 %v2031
    %2051 = vmatprep.subr.bf16.mxu0 0
    %2052 = vmatpush1.bf16.msra.mxu0 %v2032
    %2053 = vmatprep.subr.bf16.mxu0 0
    %2054 = vmatpush1.bf16.msra.mxu0 %v2033
    %2055 = vmatprep.subr.bf16.mxu0 0
    %2056 = vmatpush1.bf16.msra.mxu0 %v2034
    %2057 = vmatprep.subr.bf16.mxu0 0
    %2058 = vmatpush1.bf16.msra.mxu0 %v2035
    %2059 = vmatprep.subr.bf16.mxu0 0
    %2060 = vmatpush1.bf16.msra.mxu0 %v2036
    %2061 = vmatprep.subr.bf16.mxu0 0
    %2062 = vmatpush1.bf16.msra.mxu0 0
    %2063 = vmatprep.subr.bf16.mxu0 0
    %2064 = vmatpush1.bf16.msra.mxu0 0
    %2065 = vmatprep.subr.bf16.mxu0 0
    %2066 = vmatpush1.bf16.msra.mxu0 0
    %2067 = vmatprep.subr.bf16.mxu0 0
    %2068 = vmatpush1.bf16.msra.mxu0 0
    %2069 = vmatprep.subr.bf16.mxu0 0
    %2070 = vmatpush1.bf16.msra.mxu0 0
    %2071 = vmatprep.subr.bf16.mxu0 0
    %2072 = vmatpush1.bf16.msra.mxu0 0
    %2073 = vmatprep.subr.bf16.mxu0 0
    %2074 = vmatpush1.bf16.msra.mxu0 0
    %2075 = vmatprep.subr.bf16.mxu0 0
    %2076 = vmatpush1.bf16.msra.mxu0 0
    %2077 = vmatprep.mubr.bf16.mxu0 0
    %2078 = vmatmul.mubr.bf16.gmra.mrb[0].mxu0 %v1958
    %v2079 = vpop.f32.mrb[0].mxu0
    %v2080 = vadd.f32 %v1995, %v2079
    %v2081 = vpop.f32.mrb[0].mxu0
    %v2082 = vpop.f32.mrb[0].mxu0
    %v2083 = vadd.f32 %v1995, %v2082
    %v2084 = vpop.f32.mrb[0].mxu0
    %2085 = vmatprep.mubr.bf16.mxu0 0
    %2086 = vmatmul.mubr.bf16.gmra.mrb[0].mxu0 %v1959
    %v2087 = vpop.f32.mrb[0].mxu0
    %v2088 = vadd.f32 %v1995, %v2087
    %v2089 = vpop.f32.mrb[0].mxu0
    %v2090 = vpop.f32.mrb[0].mxu0
    %v2091 = vadd.f32 %v1995, %v2090
    %v2092 = vpop.f32.mrb[0].mxu0
    %2093 = vmatprep.mubr.bf16.mxu0 0
    %2094 = vmatmul.mubr.bf16.gmra.mrb[0].mxu0 %v1960
    %v2095 = vpop.f32.mrb[0].mxu0
    %v2096 = vadd.f32 %v1995, %v2095
    %v2097 = vpop.f32.mrb[0].mxu0
    %v2098 = vpop.f32.mrb[0].mxu0
    %v2099 = vadd.f32 %v1995, %v2098
    %v2100 = vpop.f32.mrb[0].mxu0
    %2101 = vmatprep.mubr.bf16.mxu0 0
    %2102 = vmatmul.mubr.bf16.gmra.mrb[0].mxu0 %v1961
    %v2103 = vpop.f32.mrb[0].mxu0
    %v2104 = vadd.f32 %v1995, %v2103
    %v2105 = vpop.f32.mrb[0].mxu0
    %v2106 = vpop.f32.mrb[0].mxu0
    %v2107 = vadd.f32 %v1995, %v2106
    %v2108 = vpop.f32.mrb[0].mxu0
    %2109 = vmatprep.mubr.bf16.mxu0 0
    %2110 = vmatmul.mubr.bf16.gmra.mrb[0].mxu0 %v1962
    %v2111 = vpop.f32.mrb[0].mxu0
    %v2112 = vadd.f32 %v1995, %v2111
    %v2113 = vpop.f32.mrb[0].mxu0
    %v2114 = vpop.f32.mrb[0].mxu0
    %v2115 = vadd.f32 %v1995, %v2114
    %v2116 = vpop.f32.mrb[0].mxu0
    %2117 = vmatprep.mubr.bf16.mxu0 0
    %2118 = vmatmul.mubr.bf16.gmra.mrb[0].mxu0 %v1963
    %v2119 = vpop.f32.mrb[0].mxu0
    %v2120 = vadd.f32 %v1995, %v2119
    %v2121 = vpop.f32.mrb[0].mxu0
    %v2122 = vpop.f32.mrb[0].mxu0
    %v2123 = vadd.f32 %v1995, %v2122
    %v2124 = vpop.f32.mrb[0].mxu0
    %2125 = vmatprep.mubr.bf16.mxu0 0
    %2126 = vmatmul.mubr.bf16.gmra.mrb[0].mxu0 %v1964
    %v2127 = vpop.f32.mrb[0].mxu0
    %v2128 = vadd.f32 %v1995, %v2127
    %v2129 = vpop.f32.mrb[0].mxu0
    %v2130 = vpop.f32.mrb[0].mxu0
    %v2131 = vadd.f32 %v1995, %v2130
    %v2132 = vpop.f32.mrb[0].mxu0
    %2133 = vmatprep.mubr.bf16.mxu0 0
    %2134 = vmatmul.mubr.bf16.gmra.mrb[0].mxu0 %v1965
    %v2135 = vpop.f32.mrb[0].mxu0
    %v2136 = vadd.f32 %v1995, %v2135
    %v2137 = vpop.f32.mrb[0].mxu0
    %v2138 = vpop.f32.mrb[0].mxu0
    %v2139 = vadd.f32 %v1995, %v2138
    %v2140 = vpop.f32.mrb[0].mxu0
    %2141 = vmatprep.mubr.bf16.mxu0 0
    %2142 = vmatmul.mubr.bf16.gmra.mrb[0].mxu0 %v1966
    %v2143 = vpop.f32.mrb[0].mxu0
    %v2144 = vadd.f32 %v1995, %v2143
    %v2145 = vpop.f32.mrb[0].mxu0
    %v2146 = vpop.f32.mrb[0].mxu0
    %v2147 = vadd.f32 %v1995, %v2146
    %v2148 = vpop.f32.mrb[0].mxu0
    %2149 = vmatprep.mubr.bf16.mxu0 0
    %2150 = vmatmul.mubr.bf16.gmra.mrb[0].mxu0 %v1967
    %v2151 = vpop.f32.mrb[0].mxu0
    %v2152 = vadd.f32 %v1995, %v2151
    %v2153 = vpop.f32.mrb[0].mxu0
    %v2154 = vpop.f32.mrb[0].mxu0
    %v2155 = vadd.f32 %v1995, %v2154
    %v2156 = vpop.f32.mrb[0].mxu0
    %2157 = vmatprep.mubr.bf16.mxu0 0
    %2158 = vmatmul.mubr.bf16.gmra.mrb[0].mxu0 %v1968
    %v2159 = vpop.f32.mrb[0].mxu0
    %v2160 = vadd.f32 %v1995, %v2159
    %v2161 = vpop.f32.mrb[0].mxu0
    %v2162 = vpop.f32.mrb[0].mxu0
    %v2163 = vadd.f32 %v1995, %v2162
    %v2164 = vpop.f32.mrb[0].mxu0
    %2165 = vmatprep.mubr.bf16.mxu0 0
    %2166 = vmatmul.mubr.bf16.gmra.mrb[0].mxu0 %v1969
    %v2167 = vpop.f32.mrb[0].mxu0
    %v2168 = vadd.f32 %v1995, %v2167
    %v2169 = vpop.f32.mrb[0].mxu0
    %v2170 = vpop.f32.mrb[0].mxu0
    %v2171 = vadd.f32 %v1995, %v2170
    %v2172 = vpop.f32.mrb[0].mxu0
    %2173 = vmatprep.mubr.bf16.mxu0 0
    %2174 = vmatmul.mubr.bf16.gmra.mrb[0].mxu0 %v1970
    %v2175 = vpop.f32.mrb[0].mxu0
    %v2176 = vadd.f32 %v1995, %v2175
    %v2177 = vpop.f32.mrb[0].mxu0
    %v2178 = vpop.f32.mrb[0].mxu0
    %v2179 = vadd.f32 %v1995, %v2178
    %v2180 = vpop.f32.mrb[0].mxu0
    %2181 = vmatprep.mubr.bf16.mxu0 0
    %2182 = vmatmul.mubr.bf16.gmra.mrb[0].mxu0 %v1971
    %v2183 = vpop.f32.mrb[0].mxu0
    %v2184 = vadd.f32 %v1995, %v2183
    %v2185 = vpop.f32.mrb[0].mxu0
    %v2186 = vpop.f32.mrb[0].mxu0
    %v2187 = vadd.f32 %v1995, %v2186
    %v2188 = vpop.f32.mrb[0].mxu0
    %2189 = vmatprep.mubr.bf16.mxu0 0
    %2190 = vmatmul.mubr.bf16.gmra.mrb[0].mxu0 %v1972
    %v2191 = vpop.f32.mrb[0].mxu0
    %v2192 = vadd.f32 %v1995, %v2191
    %v2193 = vpop.f32.mrb[0].mxu0
    %v2194 = vpop.f32.mrb[0].mxu0
    %v2195 = vadd.f32 %v1995, %v2194
    %v2196 = vpop.f32.mrb[0].mxu0
    %2197 = vmatprep.mubr.bf16.mxu0 0
    %2198 = vmatmul.mubr.bf16.gmra.mrb[0].mxu0 %v1973
    %v2199 = vpop.f32.mrb[0].mxu0
    %v2200 = vadd.f32 %v1995, %v2199
    %v2201 = vpop.f32.mrb[0].mxu0
    %v2202 = vpop.f32.mrb[0].mxu0
    %v2203 = vadd.f32 %v1995, %v2202
    %v2204 = vpop.f32.mrb[0].mxu0
    %2205 = vdwg.mxu0
    %v2206 = vmax.f32 %v2080, 0.0
    %v2207 = vmax.f32 %v2083, 0.0
    %v2208 = vmax.f32 %v2088, 0.0
    %v2209 = vmax.f32 %v2091, 0.0
    %v2210 = vmax.f32 %v2096, 0.0
    %v2211 = vmax.f32 %v2099, 0.0
    %v2212 = vmax.f32 %v2104, 0.0
    %v2213 = vmax.f32 %v2107, 0.0
    %v2214 = vmax.f32 %v2112, 0.0
    %v2215 = vmax.f32 %v2115, 0.0
    %v2216 = vmax.f32 %v2120, 0.0
    %v2217 = vmax.f32 %v2123, 0.0
    %v2218 = vmax.f32 %v2128, 0.0
    %v2219 = vmax.f32 %v2131, 0.0
    %v2220 = vmax.f32 %v2136, 0.0
    %v2221 = vmax.f32 %v2139, 0.0
    %v2222 = vmax.f32 %v2144, 0.0
    %v2223 = vmax.f32 %v2147, 0.0
    %v2224 = vmax.f32 %v2152, 0.0
    %v2225 = vmax.f32 %v2155, 0.0
    %v2226 = vmax.f32 %v2160, 0.0
    %v2227 = vmax.f32 %v2163, 0.0
    %v2228 = vmax.f32 %v2168, 0.0
    %v2229 = vmax.f32 %v2171, 0.0
    %v2230 = vmax.f32 %v2176, 0.0
    %v2231 = vmax.f32 %v2179, 0.0
    %v2232 = vmax.f32 %v2184, 0.0
    %v2233 = vmax.f32 %v2187, 0.0
    %v2234 = vmax.f32 %v2192, 0.0
    %v2235 = vmax.f32 %v2195, 0.0
    %v2236 = vmax.f32 %v2200, 0.0
    %v2237 = vmax.f32 %v2203, 0.0
    %v2238 = vpack.c.bf16 %v2207, %v2206
    %v2239 = vpack.c.bf16 %v2209, %v2208
    %v2240 = vpack.c.bf16 %v2211, %v2210
    %v2241 = vpack.c.bf16 %v2213, %v2212
    %v2242 = vpack.c.bf16 %v2215, %v2214
    %v2243 = vpack.c.bf16 %v2217, %v2216
    %v2244 = vpack.c.bf16 %v2219, %v2218
    %v2245 = vpack.c.bf16 %v2221, %v2220
    %v2246 = vpack.c.bf16 %v2223, %v2222
    %v2247 = vpack.c.bf16 %v2225, %v2224
    %v2248 = vpack.c.bf16 %v2227, %v2226
    %v2249 = vpack.c.bf16 %v2229, %v2228
    %v2250 = vpack.c.bf16 %v2231, %v2230
    %v2251 = vpack.c.bf16 %v2233, %v2232
    %v2252 = vpack.c.bf16 %v2235, %v2234
    %v2253 = vpack.c.bf16 %v2237, %v2236
    %v2254 = vld [vmem:[#allocation11] sm:$0xff]
    %v2255 = vld [vmem:[#allocation11 + $0x8] sm:$0xff]
    %v2256 = vld [vmem:[#allocation11 + $0x10] sm:$0xff]
    %v2257 = vld [vmem:[#allocation11 + $0x18] sm:$0xff]
    %v2258 = vld [vmem:[#allocation11 + $0x20] sm:$0xff]
    %v2259 = vld [vmem:[#allocation11 + $0x28] sm:$0xff]
    %v2260 = vld [vmem:[#allocation11 + $0x30] sm:$0xff]
    %v2261 = vld [vmem:[#allocation11 + $0x38] sm:$0xff]
    %v2262 = vld [vmem:[#allocation11 + $0x40] sm:$0xff]
    %v2263 = vld [vmem:[#allocation11 + $0x48] sm:$0xff]
    %v2264 = vld [vmem:[#allocation11 + $0x50] sm:$0xff]
    %v2265 = vld [vmem:[#allocation11 + $0x58] sm:$0xff]
    %v2266 = vld [vmem:[#allocation11 + $0x60] sm:$0xff]
    %v2267 = vld [vmem:[#allocation11 + $0x68] sm:$0xff]
    %v2268 = vld [vmem:[#allocation11 + $0x70] sm:$0xff]
    %v2269 = vld [vmem:[#allocation11 + $0x78] sm:$0xff]
    %v2270 = vld [vmem:[#allocation11 + $0x80] sm:$0xff]
    %v2271 = vld [vmem:[#allocation11 + $0x88] sm:$0xff]
    %v2272 = vld [vmem:[#allocation11 + $0x90] sm:$0xff]
    %v2273 = vld [vmem:[#allocation11 + $0x98] sm:$0xff]
    %v2274 = vld [vmem:[#allocation11 + $0xa0] sm:$0xff]
    %v2275 = vld [vmem:[#allocation11 + $0xa8] sm:$0xff]
    %v2276 = vld [vmem:[#allocation11 + $0xb0] sm:$0xff]
    %v2277 = vld [vmem:[#allocation11 + $0xb8] sm:$0xff]
    %v2278 = vld [vmem:[#allocation11 + $0xc0] sm:$0xff]
    %v2279 = vld [vmem:[#allocation11 + $0xc8] sm:$0xff]
    %v2280 = vld [vmem:[#allocation11 + $0xd0] sm:$0xff]
    %v2281 = vld [vmem:[#allocation11 + $0xd8] sm:$0xff]
    %v2282 = vld [vmem:[#allocation11 + $0xe0] sm:$0xff]
    %v2283 = vld [vmem:[#allocation11 + $0xe8] sm:$0xff]
    %v2284 = vld [vmem:[#allocation11 + $0xf0] sm:$0xff]
    %v2285 = vld [vmem:[#allocation11 + $0xf8] sm:$0xff]
    %v2286 = vld [vmem:[%s10] sm:$0xf]
    %v2288 = vlaneseq
    %v2289 = vshrl.u32 %v2288, 7
    %v2290 = vsub.s32 0, %v2289
    %v2291 = vrot.slane %v2286, %v2290
    %v2292 = vlaneseq
    %v2293 = vshrl.u32 %v2292, 7
    %v2294 = vsub.s32 1, %v2293
    %v2295 = vrot.slane %v2286, %v2294
    %v2296 = vlaneseq
    %v2297 = vshrl.u32 %v2296, 7
    %v2298 = vsub.s32 2, %v2297
    %v2299 = vrot.slane %v2286, %v2298
    %v2300 = vlaneseq
    %v2301 = vshrl.u32 %v2300, 7
    %v2302 = vsub.s32 3, %v2301
    %v2303 = vrot.slane %v2286, %v2302
    %v2340 = vunpack.c.l.b16 %v2254
    %v2341 = vunpack.c.h.b16 %v2254
    %v2342 = vunpack.c.l.b16 %v2255
    %v2343 = vunpack.c.h.b16 %v2255
    %v2344 = vunpack.c.l.b16 %v2256
    %v2345 = vunpack.c.h.b16 %v2256
    %v2346 = vunpack.c.l.b16 %v2257
    %v2347 = vunpack.c.h.b16 %v2257
    %v2348 = vunpack.c.l.b16 %v2258
    %v2349 = vunpack.c.h.b16 %v2258
    %v2350 = vunpack.c.l.b16 %v2259
    %v2351 = vunpack.c.h.b16 %v2259
    %v2352 = vunpack.c.l.b16 %v2260
    %v2353 = vunpack.c.h.b16 %v2260
    %v2354 = vunpack.c.l.b16 %v2261
    %v2355 = vunpack.c.h.b16 %v2261
    %v2356 = vunpack.c.l.b16 %v2262
    %v2357 = vunpack.c.h.b16 %v2262
    %v2358 = vunpack.c.l.b16 %v2263
    %v2359 = vunpack.c.h.b16 %v2263
    %v2360 = vunpack.c.l.b16 %v2264
    %v2361 = vunpack.c.h.b16 %v2264
    %v2362 = vunpack.c.l.b16 %v2265
    %v2363 = vunpack.c.h.b16 %v2265
    %v2364 = vunpack.c.l.b16 %v2266
    %v2365 = vunpack.c.h.b16 %v2266
    %v2366 = vunpack.c.l.b16 %v2267
    %v2367 = vunpack.c.h.b16 %v2267
    %v2368 = vunpack.c.l.b16 %v2268
    %v2369 = vunpack.c.h.b16 %v2268
    %v2370 = vunpack.c.l.b16 %v2269
    %v2371 = vunpack.c.h.b16 %v2269
    %v2372 = vunpack.c.l.b16 %v2270
    %v2373 = vunpack.c.h.b16 %v2270
    %v2374 = vunpack.c.l.b16 %v2271
    %v2375 = vunpack.c.h.b16 %v2271
    %v2376 = vunpack.c.l.b16 %v2272
    %v2377 = vunpack.c.h.b16 %v2272
    %v2378 = vunpack.c.l.b16 %v2273
    %v2379 = vunpack.c.h.b16 %v2273
    %v2380 = vunpack.c.l.b16 %v2274
    %v2381 = vunpack.c.h.b16 %v2274
    %v2382 = vunpack.c.l.b16 %v2275
    %v2383 = vunpack.c.h.b16 %v2275
    %v2384 = vunpack.c.l.b16 %v2276
    %v2385 = vunpack.c.h.b16 %v2276
    %v2386 = vunpack.c.l.b16 %v2277
    %v2387 = vunpack.c.h.b16 %v2277
    %v2388 = vunpack.c.l.b16 %v2278
    %v2389 = vunpack.c.h.b16 %v2278
    %v2390 = vunpack.c.l.b16 %v2279
    %v2391 = vunpack.c.h.b16 %v2279
    %v2392 = vunpack.c.l.b16 %v2280
    %v2393 = vunpack.c.h.b16 %v2280
    %v2394 = vunpack.c.l.b16 %v2281
    %v2395 = vunpack.c.h.b16 %v2281
    %v2396 = vunpack.c.l.b16 %v2282
    %v2397 = vunpack.c.h.b16 %v2282
    %v2398 = vunpack.c.l.b16 %v2283
    %v2399 = vunpack.c.h.b16 %v2283
    %v2400 = vunpack.c.l.b16 %v2284
    %v2401 = vunpack.c.h.b16 %v2284
    %v2402 = vunpack.c.l.b16 %v2285
    %v2403 = vunpack.c.h.b16 %v2285
    %v2404 = vpack.c.b16 %v2344, %v2340
    %v2405 = vpack.c.b16 %v2345, %v2341
    %v2406 = vpack.c.b16 %v2346, %v2342
    %v2407 = vpack.c.b16 %v2347, %v2343
    %v2408 = vpack.c.b16 %v2352, %v2348
    %v2409 = vpack.c.b16 %v2353, %v2349
    %v2410 = vpack.c.b16 %v2354, %v2350
    %v2411 = vpack.c.b16 %v2355, %v2351
    %v2412 = vpack.c.b16 %v2360, %v2356
    %v2413 = vpack.c.b16 %v2361, %v2357
    %v2414 = vpack.c.b16 %v2362, %v2358
    %v2415 = vpack.c.b16 %v2363, %v2359
    %v2416 = vpack.c.b16 %v2368, %v2364
    %v2417 = vpack.c.b16 %v2369, %v2365
    %v2418 = vpack.c.b16 %v2370, %v2366
    %v2419 = vpack.c.b16 %v2371, %v2367
    %v2420 = vpack.c.b16 %v2376, %v2372
    %v2421 = vpack.c.b16 %v2377, %v2373
    %v2422 = vpack.c.b16 %v2378, %v2374
    %v2423 = vpack.c.b16 %v2379, %v2375
    %v2424 = vpack.c.b16 %v2384, %v2380
    %v2425 = vpack.c.b16 %v2385, %v2381
    %v2426 = vpack.c.b16 %v2386, %v2382
    %v2427 = vpack.c.b16 %v2387, %v2383
    %v2428 = vpack.c.b16 %v2392, %v2388
    %v2429 = vpack.c.b16 %v2393, %v2389
    %v2430 = vpack.c.b16 %v2394, %v2390
    %v2431 = vpack.c.b16 %v2395, %v2391
    %v2432 = vpack.c.b16 %v2400, %v2396
    %v2433 = vpack.c.b16 %v2401, %v2397
    %v2434 = vpack.c.b16 %v2402, %v2398
    %v2435 = vpack.c.b16 %v2403, %v2399
    %2468 = vmatprep.subr.bf16.mxu0 %v2405
    %2469 = vmatpush1.bf16.msra.mxu0 %v2404
    %2470 = vmatprep.subr.bf16.mxu0 %v2409
    %2471 = vmatpush1.bf16.msra.mxu0 %v2408
    %2472 = vmatprep.subr.bf16.mxu0 %v2413
    %2473 = vmatpush1.bf16.msra.mxu0 %v2412
    %2474 = vmatprep.subr.bf16.mxu0 %v2417
    %2475 = vmatpush1.bf16.msra.mxu0 %v2416
    %2476 = vmatprep.subr.bf16.mxu0 %v2421
    %2477 = vmatpush1.bf16.msra.mxu0 %v2420
    %2478 = vmatprep.subr.bf16.mxu0 %v2425
    %2479 = vmatpush1.bf16.msra.mxu0 %v2424
    %2480 = vmatprep.subr.bf16.mxu0 %v2429
    %2481 = vmatpush1.bf16.msra.mxu0 %v2428
    %2482 = vmatprep.subr.bf16.mxu0 %v2433
    %2483 = vmatpush1.bf16.msra.mxu0 %v2432
    %2484 = vmatprep.subr.bf16.mxu0 0
    %2485 = vmatpush1.bf16.msra.mxu0 0
    %2486 = vmatprep.subr.bf16.mxu0 0
    %2487 = vmatpush1.bf16.msra.mxu0 0
    %2488 = vmatprep.subr.bf16.mxu0 0
    %2489 = vmatpush1.bf16.msra.mxu0 0
    %2490 = vmatprep.subr.bf16.mxu0 0
    %2491 = vmatpush1.bf16.msra.mxu0 0
    %2492 = vmatprep.subr.bf16.mxu0 0
    %2493 = vmatpush1.bf16.msra.mxu0 0
    %2494 = vmatprep.subr.bf16.mxu0 0
    %2495 = vmatpush1.bf16.msra.mxu0 0
    %2496 = vmatprep.subr.bf16.mxu0 0
    %2497 = vmatpush1.bf16.msra.mxu0 0
    %2498 = vmatprep.subr.bf16.mxu0 0
    %2499 = vmatpush1.bf16.msra.mxu0 0
    %2500 = vmatprep.mubr.bf16.mxu0 0
    %2501 = vmatmul.mubr.bf16.gmra.mrb[0].mxu0 %v2238
    %v2502 = vpop.f32.mrb[0].mxu0
    %v2503 = vadd.f32 %v2291, %v2502
    %v2504 = vpop.f32.mrb[0].mxu0
    %v2505 = vadd.f32 %v2295, %v2504
    %v2506 = vpop.f32.mrb[0].mxu0
    %v2507 = vadd.f32 %v2291, %v2506
    %v2508 = vpop.f32.mrb[0].mxu0
    %v2509 = vadd.f32 %v2295, %v2508
    %2510 = vmatprep.mubr.bf16.mxu0 0
    %2511 = vmatmul.mubr.bf16.gmra.mrb[0].mxu0 %v2239
    %v2512 = vpop.f32.mrb[0].mxu0
    %v2513 = vadd.f32 %v2291, %v2512
    %v2514 = vpop.f32.mrb[0].mxu0
    %v2515 = vadd.f32 %v2295, %v2514
    %v2516 = vpop.f32.mrb[0].mxu0
    %v2517 = vadd.f32 %v2291, %v2516
    %v2518 = vpop.f32.mrb[0].mxu0
    %v2519 = vadd.f32 %v2295, %v2518
    %2520 = vmatprep.mubr.bf16.mxu0 0
    %2521 = vmatmul.mubr.bf16.gmra.mrb[0].mxu0 %v2240
    %v2522 = vpop.f32.mrb[0].mxu0
    %v2523 = vadd.f32 %v2291, %v2522
    %v2524 = vpop.f32.mrb[0].mxu0
    %v2525 = vadd.f32 %v2295, %v2524
    %v2526 = vpop.f32.mrb[0].mxu0
    %v2527 = vadd.f32 %v2291, %v2526
    %v2528 = vpop.f32.mrb[0].mxu0
    %v2529 = vadd.f32 %v2295, %v2528
    %2530 = vmatprep.mubr.bf16.mxu0 0
    %2531 = vmatmul.mubr.bf16.gmra.mrb[0].mxu0 %v2241
    %v2532 = vpop.f32.mrb[0].mxu0
    %v2533 = vadd.f32 %v2291, %v2532
    %v2534 = vpop.f32.mrb[0].mxu0
    %v2535 = vadd.f32 %v2295, %v2534
    %v2536 = vpop.f32.mrb[0].mxu0
    %v2537 = vadd.f32 %v2291, %v2536
    %v2538 = vpop.f32.mrb[0].mxu0
    %v2539 = vadd.f32 %v2295, %v2538
    %2540 = vmatprep.mubr.bf16.mxu0 0
    %2541 = vmatmul.mubr.bf16.gmra.mrb[0].mxu0 %v2242
    %v2542 = vpop.f32.mrb[0].mxu0
    %v2543 = vadd.f32 %v2291, %v2542
    %v2544 = vpop.f32.mrb[0].mxu0
    %v2545 = vadd.f32 %v2295, %v2544
    %v2546 = vpop.f32.mrb[0].mxu0
    %v2547 = vadd.f32 %v2291, %v2546
    %v2548 = vpop.f32.mrb[0].mxu0
    %v2549 = vadd.f32 %v2295, %v2548
    %2550 = vmatprep.mubr.bf16.mxu0 0
    %2551 = vmatmul.mubr.bf16.gmra.mrb[0].mxu0 %v2243
    %v2552 = vpop.f32.mrb[0].mxu0
    %v2553 = vadd.f32 %v2291, %v2552
    %v2554 = vpop.f32.mrb[0].mxu0
    %v2555 = vadd.f32 %v2295, %v2554
    %v2556 = vpop.f32.mrb[0].mxu0
    %v2557 = vadd.f32 %v2291, %v2556
    %v2558 = vpop.f32.mrb[0].mxu0
    %v2559 = vadd.f32 %v2295, %v2558
    %2560 = vmatprep.mubr.bf16.mxu0 0
    %2561 = vmatmul.mubr.bf16.gmra.mrb[0].mxu0 %v2244
    %v2562 = vpop.f32.mrb[0].mxu0
    %v2563 = vadd.f32 %v2291, %v2562
    %v2564 = vpop.f32.mrb[0].mxu0
    %v2565 = vadd.f32 %v2295, %v2564
    %v2566 = vpop.f32.mrb[0].mxu0
    %v2567 = vadd.f32 %v2291, %v2566
    %v2568 = vpop.f32.mrb[0].mxu0
    %v2569 = vadd.f32 %v2295, %v2568
    %2570 = vmatprep.mubr.bf16.mxu0 0
    %2571 = vmatmul.mubr.bf16.gmra.mrb[0].mxu0 %v2245
    %v2572 = vpop.f32.mrb[0].mxu0
    %v2573 = vadd.f32 %v2291, %v2572
    %v2574 = vpop.f32.mrb[0].mxu0
    %v2575 = vadd.f32 %v2295, %v2574
    %v2576 = vpop.f32.mrb[0].mxu0
    %v2577 = vadd.f32 %v2291, %v2576
    %v2578 = vpop.f32.mrb[0].mxu0
    %v2579 = vadd.f32 %v2295, %v2578
    %2580 = vmatprep.mubr.bf16.mxu0 0
    %2581 = vmatmul.mubr.bf16.gmra.mrb[0].mxu0 %v2246
    %v2582 = vpop.f32.mrb[0].mxu0
    %v2583 = vadd.f32 %v2291, %v2582
    %v2584 = vpop.f32.mrb[0].mxu0
    %v2585 = vadd.f32 %v2295, %v2584
    %v2586 = vpop.f32.mrb[0].mxu0
    %v2587 = vadd.f32 %v2291, %v2586
    %v2588 = vpop.f32.mrb[0].mxu0
    %v2589 = vadd.f32 %v2295, %v2588
    %2590 = vmatprep.mubr.bf16.mxu0 0
    %2591 = vmatmul.mubr.bf16.gmra.mrb[0].mxu0 %v2247
    %v2592 = vpop.f32.mrb[0].mxu0
    %v2593 = vadd.f32 %v2291, %v2592
    %v2594 = vpop.f32.mrb[0].mxu0
    %v2595 = vadd.f32 %v2295, %v2594
    %v2596 = vpop.f32.mrb[0].mxu0
    %v2597 = vadd.f32 %v2291, %v2596
    %v2598 = vpop.f32.mrb[0].mxu0
    %v2599 = vadd.f32 %v2295, %v2598
    %2600 = vmatprep.mubr.bf16.mxu0 0
    %2601 = vmatmul.mubr.bf16.gmra.mrb[0].mxu0 %v2248
    %v2602 = vpop.f32.mrb[0].mxu0
    %v2603 = vadd.f32 %v2291, %v2602
    %v2604 = vpop.f32.mrb[0].mxu0
    %v2605 = vadd.f32 %v2295, %v2604
    %v2606 = vpop.f32.mrb[0].mxu0
    %v2607 = vadd.f32 %v2291, %v2606
    %v2608 = vpop.f32.mrb[0].mxu0
    %v2609 = vadd.f32 %v2295, %v2608
    %2610 = vmatprep.mubr.bf16.mxu0 0
    %2611 = vmatmul.mubr.bf16.gmra.mrb[0].mxu0 %v2249
    %v2612 = vpop.f32.mrb[0].mxu0
    %v2613 = vadd.f32 %v2291, %v2612
    %v2614 = vpop.f32.mrb[0].mxu0
    %v2615 = vadd.f32 %v2295, %v2614
    %v2616 = vpop.f32.mrb[0].mxu0
    %v2617 = vadd.f32 %v2291, %v2616
    %v2618 = vpop.f32.mrb[0].mxu0
    %v2619 = vadd.f32 %v2295, %v2618
    %2620 = vmatprep.mubr.bf16.mxu0 0
    %2621 = vmatmul.mubr.bf16.gmra.mrb[0].mxu0 %v2250
    %v2622 = vpop.f32.mrb[0].mxu0
    %v2623 = vadd.f32 %v2291, %v2622
    %v2624 = vpop.f32.mrb[0].mxu0
    %v2625 = vadd.f32 %v2295, %v2624
    %v2626 = vpop.f32.mrb[0].mxu0
    %v2627 = vadd.f32 %v2291, %v2626
    %v2628 = vpop.f32.mrb[0].mxu0
    %v2629 = vadd.f32 %v2295, %v2628
    %2630 = vmatprep.mubr.bf16.mxu0 0
    %2631 = vmatmul.mubr.bf16.gmra.mrb[0].mxu0 %v2251
    %v2632 = vpop.f32.mrb[0].mxu0
    %v2633 = vadd.f32 %v2291, %v2632
    %v2634 = vpop.f32.mrb[0].mxu0
    %v2635 = vadd.f32 %v2295, %v2634
    %v2636 = vpop.f32.mrb[0].mxu0
    %v2637 = vadd.f32 %v2291, %v2636
    %v2638 = vpop.f32.mrb[0].mxu0
    %v2639 = vadd.f32 %v2295, %v2638
    %2640 = vmatprep.mubr.bf16.mxu0 0
    %2641 = vmatmul.mubr.bf16.gmra.mrb[0].mxu0 %v2252
    %v2642 = vpop.f32.mrb[0].mxu0
    %v2643 = vadd.f32 %v2291, %v2642
    %v2644 = vpop.f32.mrb[0].mxu0
    %v2645 = vadd.f32 %v2295, %v2644
    %v2646 = vpop.f32.mrb[0].mxu0
    %v2647 = vadd.f32 %v2291, %v2646
    %v2648 = vpop.f32.mrb[0].mxu0
    %v2649 = vadd.f32 %v2295, %v2648
    %2650 = vmatprep.mubr.bf16.mxu0 0
    %2651 = vmatmul.mubr.bf16.gmra.mrb[0].mxu0 %v2253
    %v2652 = vpop.f32.mrb[0].mxu0
    %v2653 = vadd.f32 %v2291, %v2652
    %v2654 = vpop.f32.mrb[0].mxu0
    %v2655 = vadd.f32 %v2295, %v2654
    %v2656 = vpop.f32.mrb[0].mxu0
    %v2657 = vadd.f32 %v2291, %v2656
    %v2658 = vpop.f32.mrb[0].mxu0
    %v2659 = vadd.f32 %v2295, %v2658
    %2660 = vdwg.mxu0
    %2661 = vmatprep.subr.bf16.mxu0 %v2407
    %2662 = vmatpush1.bf16.msra.mxu0 %v2406
    %2663 = vmatprep.subr.bf16.mxu0 %v2411
    %2664 = vmatpush1.bf16.msra.mxu0 %v2410
    %2665 = vmatprep.subr.bf16.mxu0 %v2415
    %2666 = vmatpush1.bf16.msra.mxu0 %v2414
    %2667 = vmatprep.subr.bf16.mxu0 %v2419
    %2668 = vmatpush1.bf16.msra.mxu0 %v2418
    %2669 = vmatprep.subr.bf16.mxu0 %v2423
    %2670 = vmatpush1.bf16.msra.mxu0 %v2422
    %2671 = vmatprep.subr.bf16.mxu0 %v2427
    %2672 = vmatpush1.bf16.msra.mxu0 %v2426
    %2673 = vmatprep.subr.bf16.mxu0 %v2431
    %2674 = vmatpush1.bf16.msra.mxu0 %v2430
    %2675 = vmatprep.subr.bf16.mxu0 %v2435
    %2676 = vmatpush1.bf16.msra.mxu0 %v2434
    %2677 = vmatprep.subr.bf16.mxu0 0
    %2678 = vmatpush1.bf16.msra.mxu0 0
    %2679 = vmatprep.subr.bf16.mxu0 0
    %2680 = vmatpush1.bf16.msra.mxu0 0
    %2681 = vmatprep.subr.bf16.mxu0 0
    %2682 = vmatpush1.bf16.msra.mxu0 0
    %2683 = vmatprep.subr.bf16.mxu0 0
    %2684 = vmatpush1.bf16.msra.mxu0 0
    %2685 = vmatprep.subr.bf16.mxu0 0
    %2686 = vmatpush1.bf16.msra.mxu0 0
    %2687 = vmatprep.subr.bf16.mxu0 0
    %2688 = vmatpush1.bf16.msra.mxu0 0
    %2689 = vmatprep.subr.bf16.mxu0 0
    %2690 = vmatpush1.bf16.msra.mxu0 0
    %2691 = vmatprep.subr.bf16.mxu0 0
    %2692 = vmatpush1.bf16.msra.mxu0 0
    %2693 = vmatprep.mubr.bf16.mxu0 0
    %2694 = vmatmul.mubr.bf16.gmra.mrb[0].mxu0 %v2238
    %v2695 = vpop.f32.mrb[0].mxu0
    %v2696 = vadd.f32 %v2299, %v2695
    %v2697 = vpop.f32.mrb[0].mxu0
    %v2698 = vadd.f32 %v2303, %v2697
    %v2699 = vpop.f32.mrb[0].mxu0
    %v2700 = vadd.f32 %v2299, %v2699
    %v2701 = vpop.f32.mrb[0].mxu0
    %v2702 = vadd.f32 %v2303, %v2701
    %2703 = vmatprep.mubr.bf16.mxu0 0
    %2704 = vmatmul.mubr.bf16.gmra.mrb[0].mxu0 %v2239
    %v2705 = vpop.f32.mrb[0].mxu0
    %v2706 = vadd.f32 %v2299, %v2705
    %v2707 = vpop.f32.mrb[0].mxu0
    %v2708 = vadd.f32 %v2303, %v2707
    %v2709 = vpop.f32.mrb[0].mxu0
    %v2710 = vadd.f32 %v2299, %v2709
    %v2711 = vpop.f32.mrb[0].mxu0
    %v2712 = vadd.f32 %v2303, %v2711
    %2713 = vmatprep.mubr.bf16.mxu0 0
    %2714 = vmatmul.mubr.bf16.gmra.mrb[0].mxu0 %v2240
    %v2715 = vpop.f32.mrb[0].mxu0
    %v2716 = vadd.f32 %v2299, %v2715
    %v2717 = vpop.f32.mrb[0].mxu0
    %v2718 = vadd.f32 %v2303, %v2717
    %v2719 = vpop.f32.mrb[0].mxu0
    %v2720 = vadd.f32 %v2299, %v2719
    %v2721 = vpop.f32.mrb[0].mxu0
    %v2722 = vadd.f32 %v2303, %v2721
    %2723 = vmatprep.mubr.bf16.mxu0 0
    %2724 = vmatmul.mubr.bf16.gmra.mrb[0].mxu0 %v2241
    %v2725 = vpop.f32.mrb[0].mxu0
    %v2726 = vadd.f32 %v2299, %v2725
    %v2727 = vpop.f32.mrb[0].mxu0
    %v2728 = vadd.f32 %v2303, %v2727
    %v2729 = vpop.f32.mrb[0].mxu0
    %v2730 = vadd.f32 %v2299, %v2729
    %v2731 = vpop.f32.mrb[0].mxu0
    %v2732 = vadd.f32 %v2303, %v2731
    %2733 = vmatprep.mubr.bf16.mxu0 0
    %2734 = vmatmul.mubr.bf16.gmra.mrb[0].mxu0 %v2242
    %v2735 = vpop.f32.mrb[0].mxu0
    %v2736 = vadd.f32 %v2299, %v2735
    %v2737 = vpop.f32.mrb[0].mxu0
    %v2738 = vadd.f32 %v2303, %v2737
    %v2739 = vpop.f32.mrb[0].mxu0
    %v2740 = vadd.f32 %v2299, %v2739
    %v2741 = vpop.f32.mrb[0].mxu0
    %v2742 = vadd.f32 %v2303, %v2741
    %2743 = vmatprep.mubr.bf16.mxu0 0
    %2744 = vmatmul.mubr.bf16.gmra.mrb[0].mxu0 %v2243
    %v2745 = vpop.f32.mrb[0].mxu0
    %v2746 = vadd.f32 %v2299, %v2745
    %v2747 = vpop.f32.mrb[0].mxu0
    %v2748 = vadd.f32 %v2303, %v2747
    %v2749 = vpop.f32.mrb[0].mxu0
    %v2750 = vadd.f32 %v2299, %v2749
    %v2751 = vpop.f32.mrb[0].mxu0
    %v2752 = vadd.f32 %v2303, %v2751
    %2753 = vmatprep.mubr.bf16.mxu0 0
    %2754 = vmatmul.mubr.bf16.gmra.mrb[0].mxu0 %v2244
    %v2755 = vpop.f32.mrb[0].mxu0
    %v2756 = vadd.f32 %v2299, %v2755
    %v2757 = vpop.f32.mrb[0].mxu0
    %v2758 = vadd.f32 %v2303, %v2757
    %v2759 = vpop.f32.mrb[0].mxu0
    %v2760 = vadd.f32 %v2299, %v2759
    %v2761 = vpop.f32.mrb[0].mxu0
    %v2762 = vadd.f32 %v2303, %v2761
    %2763 = vmatprep.mubr.bf16.mxu0 0
    %2764 = vmatmul.mubr.bf16.gmra.mrb[0].mxu0 %v2245
    %v2765 = vpop.f32.mrb[0].mxu0
    %v2766 = vadd.f32 %v2299, %v2765
    %v2767 = vpop.f32.mrb[0].mxu0
    %v2768 = vadd.f32 %v2303, %v2767
    %v2769 = vpop.f32.mrb[0].mxu0
    %v2770 = vadd.f32 %v2299, %v2769
    %v2771 = vpop.f32.mrb[0].mxu0
    %v2772 = vadd.f32 %v2303, %v2771
    %2773 = vmatprep.mubr.bf16.mxu0 0
    %2774 = vmatmul.mubr.bf16.gmra.mrb[0].mxu0 %v2246
    %v2775 = vpop.f32.mrb[0].mxu0
    %v2776 = vadd.f32 %v2299, %v2775
    %v2777 = vpop.f32.mrb[0].mxu0
    %v2778 = vadd.f32 %v2303, %v2777
    %v2779 = vpop.f32.mrb[0].mxu0
    %v2780 = vadd.f32 %v2299, %v2779
    %v2781 = vpop.f32.mrb[0].mxu0
    %v2782 = vadd.f32 %v2303, %v2781
    %2783 = vmatprep.mubr.bf16.mxu0 0
    %2784 = vmatmul.mubr.bf16.gmra.mrb[0].mxu0 %v2247
    %v2785 = vpop.f32.mrb[0].mxu0
    %v2786 = vadd.f32 %v2299, %v2785
    %v2787 = vpop.f32.mrb[0].mxu0
    %v2788 = vadd.f32 %v2303, %v2787
    %v2789 = vpop.f32.mrb[0].mxu0
    %v2790 = vadd.f32 %v2299, %v2789
    %v2791 = vpop.f32.mrb[0].mxu0
    %v2792 = vadd.f32 %v2303, %v2791
    %2793 = vmatprep.mubr.bf16.mxu0 0
    %2794 = vmatmul.mubr.bf16.gmra.mrb[0].mxu0 %v2248
    %v2795 = vpop.f32.mrb[0].mxu0
    %v2796 = vadd.f32 %v2299, %v2795
    %v2797 = vpop.f32.mrb[0].mxu0
    %v2798 = vadd.f32 %v2303, %v2797
    %v2799 = vpop.f32.mrb[0].mxu0
    %v2800 = vadd.f32 %v2299, %v2799
    %v2801 = vpop.f32.mrb[0].mxu0
    %v2802 = vadd.f32 %v2303, %v2801
    %2803 = vmatprep.mubr.bf16.mxu0 0
    %2804 = vmatmul.mubr.bf16.gmra.mrb[0].mxu0 %v2249
    %v2805 = vpop.f32.mrb[0].mxu0
    %v2806 = vadd.f32 %v2299, %v2805
    %v2807 = vpop.f32.mrb[0].mxu0
    %v2808 = vadd.f32 %v2303, %v2807
    %v2809 = vpop.f32.mrb[0].mxu0
    %v2810 = vadd.f32 %v2299, %v2809
    %v2811 = vpop.f32.mrb[0].mxu0
    %v2812 = vadd.f32 %v2303, %v2811
    %2813 = vmatprep.mubr.bf16.mxu0 0
    %2814 = vmatmul.mubr.bf16.gmra.mrb[0].mxu0 %v2250
    %v2815 = vpop.f32.mrb[0].mxu0
    %v2816 = vadd.f32 %v2299, %v2815
    %v2817 = vpop.f32.mrb[0].mxu0
    %v2818 = vadd.f32 %v2303, %v2817
    %v2819 = vpop.f32.mrb[0].mxu0
    %v2820 = vadd.f32 %v2299, %v2819
    %v2821 = vpop.f32.mrb[0].mxu0
    %v2822 = vadd.f32 %v2303, %v2821
    %2823 = vmatprep.mubr.bf16.mxu0 0
    %2824 = vmatmul.mubr.bf16.gmra.mrb[0].mxu0 %v2251
    %v2825 = vpop.f32.mrb[0].mxu0
    %v2826 = vadd.f32 %v2299, %v2825
    %v2827 = vpop.f32.mrb[0].mxu0
    %v2828 = vadd.f32 %v2303, %v2827
    %v2829 = vpop.f32.mrb[0].mxu0
    %v2830 = vadd.f32 %v2299, %v2829
    %v2831 = vpop.f32.mrb[0].mxu0
    %v2832 = vadd.f32 %v2303, %v2831
    %2833 = vmatprep.mubr.bf16.mxu0 0
    %2834 = vmatmul.mubr.bf16.gmra.mrb[0].mxu0 %v2252
    %v2835 = vpop.f32.mrb[0].mxu0
    %v2836 = vadd.f32 %v2299, %v2835
    %v2837 = vpop.f32.mrb[0].mxu0
    %v2838 = vadd.f32 %v2303, %v2837
    %v2839 = vpop.f32.mrb[0].mxu0
    %v2840 = vadd.f32 %v2299, %v2839
    %v2841 = vpop.f32.mrb[0].mxu0
    %v2842 = vadd.f32 %v2303, %v2841
    %2843 = vmatprep.mubr.bf16.mxu0 0
    %2844 = vmatmul.mubr.bf16.gmra.mrb[0].mxu0 %v2253
    %v2845 = vpop.f32.mrb[0].mxu0
    %v2846 = vadd.f32 %v2299, %v2845
    %v2847 = vpop.f32.mrb[0].mxu0
    %v2848 = vadd.f32 %v2303, %v2847
    %v2849 = vpop.f32.mrb[0].mxu0
    %v2850 = vadd.f32 %v2299, %v2849
    %v2851 = vpop.f32.mrb[0].mxu0
    %v2852 = vadd.f32 %v2303, %v2851
    %2853 = vdwg.mxu0
    %v2854 = vmax.f32 %v2503, 0.0
    %v2855 = vmax.f32 %v2505, 0.0
    %v2856 = vmax.f32 %v2696, 0.0
    %v2857 = vmax.f32 %v2698, 0.0
    %v2858 = vmax.f32 %v2507, 0.0
    %v2859 = vmax.f32 %v2509, 0.0
    %v2860 = vmax.f32 %v2700, 0.0
    %v2861 = vmax.f32 %v2702, 0.0
    %v2862 = vmax.f32 %v2513, 0.0
    %v2863 = vmax.f32 %v2515, 0.0
    %v2864 = vmax.f32 %v2706, 0.0
    %v2865 = vmax.f32 %v2708, 0.0
    %v2866 = vmax.f32 %v2517, 0.0
    %v2867 = vmax.f32 %v2519, 0.0
    %v2868 = vmax.f32 %v2710, 0.0
    %v2869 = vmax.f32 %v2712, 0.0
    %v2870 = vmax.f32 %v2523, 0.0
    %v2871 = vmax.f32 %v2525, 0.0
    %v2872 = vmax.f32 %v2716, 0.0
    %v2873 = vmax.f32 %v2718, 0.0
    %v2874 = vmax.f32 %v2527, 0.0
    %v2875 = vmax.f32 %v2529, 0.0
    %v2876 = vmax.f32 %v2720, 0.0
    %v2877 = vmax.f32 %v2722, 0.0
    %v2878 = vmax.f32 %v2533, 0.0
    %v2879 = vmax.f32 %v2535, 0.0
    %v2880 = vmax.f32 %v2726, 0.0
    %v2881 = vmax.f32 %v2728, 0.0
    %v2882 = vmax.f32 %v2537, 0.0
    %v2883 = vmax.f32 %v2539, 0.0
    %v2884 = vmax.f32 %v2730, 0.0
    %v2885 = vmax.f32 %v2732, 0.0
    %v2886 = vmax.f32 %v2543, 0.0
    %v2887 = vmax.f32 %v2545, 0.0
    %v2888 = vmax.f32 %v2736, 0.0
    %v2889 = vmax.f32 %v2738, 0.0
    %v2890 = vmax.f32 %v2547, 0.0
    %v2891 = vmax.f32 %v2549, 0.0
    %v2892 = vmax.f32 %v2740, 0.0
    %v2893 = vmax.f32 %v2742, 0.0
    %v2894 = vmax.f32 %v2553, 0.0
    %v2895 = vmax.f32 %v2555, 0.0
    %v2896 = vmax.f32 %v2746, 0.0
    %v2897 = vmax.f32 %v2748, 0.0
    %v2898 = vmax.f32 %v2557, 0.0
    %v2899 = vmax.f32 %v2559, 0.0
    %v2900 = vmax.f32 %v2750, 0.0
    %v2901 = vmax.f32 %v2752, 0.0
    %v2902 = vmax.f32 %v2563, 0.0
    %v2903 = vmax.f32 %v2565, 0.0
    %v2904 = vmax.f32 %v2756, 0.0
    %v2905 = vmax.f32 %v2758, 0.0
    %v2906 = vmax.f32 %v2567, 0.0
    %v2907 = vmax.f32 %v2569, 0.0
    %v2908 = vmax.f32 %v2760, 0.0
    %v2909 = vmax.f32 %v2762, 0.0
    %v2910 = vmax.f32 %v2573, 0.0
    %v2911 = vmax.f32 %v2575, 0.0
    %v2912 = vmax.f32 %v2766, 0.0
    %v2913 = vmax.f32 %v2768, 0.0
    %v2914 = vmax.f32 %v2577, 0.0
    %v2915 = vmax.f32 %v2579, 0.0
    %v2916 = vmax.f32 %v2770, 0.0
    %v2917 = vmax.f32 %v2772, 0.0
    %v2918 = vmax.f32 %v2583, 0.0
    %v2919 = vmax.f32 %v2585, 0.0
    %v2920 = vmax.f32 %v2776, 0.0
    %v2921 = vmax.f32 %v2778, 0.0
    %v2922 = vmax.f32 %v2587, 0.0
    %v2923 = vmax.f32 %v2589, 0.0
    %v2924 = vmax.f32 %v2780, 0.0
    %v2925 = vmax.f32 %v2782, 0.0
    %v2926 = vmax.f32 %v2593, 0.0
    %v2927 = vmax.f32 %v2595, 0.0
    %v2928 = vmax.f32 %v2786, 0.0
    %v2929 = vmax.f32 %v2788, 0.0
    %v2930 = vmax.f32 %v2597, 0.0
    %v2931 = vmax.f32 %v2599, 0.0
    %v2932 = vmax.f32 %v2790, 0.0
    %v2933 = vmax.f32 %v2792, 0.0
    %v2934 = vmax.f32 %v2603, 0.0
    %v2935 = vmax.f32 %v2605, 0.0
    %v2936 = vmax.f32 %v2796, 0.0
    %v2937 = vmax.f32 %v2798, 0.0
    %v2938 = vmax.f32 %v2607, 0.0
    %v2939 = vmax.f32 %v2609, 0.0
    %v2940 = vmax.f32 %v2800, 0.0
    %v2941 = vmax.f32 %v2802, 0.0
    %v2942 = vmax.f32 %v2613, 0.0
    %v2943 = vmax.f32 %v2615, 0.0
    %v2944 = vmax.f32 %v2806, 0.0
    %v2945 = vmax.f32 %v2808, 0.0
    %v2946 = vmax.f32 %v2617, 0.0
    %v2947 = vmax.f32 %v2619, 0.0
    %v2948 = vmax.f32 %v2810, 0.0
    %v2949 = vmax.f32 %v2812, 0.0
    %v2950 = vmax.f32 %v2623, 0.0
    %v2951 = vmax.f32 %v2625, 0.0
    %v2952 = vmax.f32 %v2816, 0.0
    %v2953 = vmax.f32 %v2818, 0.0
    %v2954 = vmax.f32 %v2627, 0.0
    %v2955 = vmax.f32 %v2629, 0.0
    %v2956 = vmax.f32 %v2820, 0.0
    %v2957 = vmax.f32 %v2822, 0.0
    %v2958 = vmax.f32 %v2633, 0.0
    %v2959 = vmax.f32 %v2635, 0.0
    %v2960 = vmax.f32 %v2826, 0.0
    %v2961 = vmax.f32 %v2828, 0.0
    %v2962 = vmax.f32 %v2637, 0.0
    %v2963 = vmax.f32 %v2639, 0.0
    %v2964 = vmax.f32 %v2830, 0.0
    %v2965 = vmax.f32 %v2832, 0.0
    %v2966 = vmax.f32 %v2643, 0.0
    %v2967 = vmax.f32 %v2645, 0.0
    %v2968 = vmax.f32 %v2836, 0.0
    %v2969 = vmax.f32 %v2838, 0.0
    %v2970 = vmax.f32 %v2647, 0.0
    %v2971 = vmax.f32 %v2649, 0.0
    %v2972 = vmax.f32 %v2840, 0.0
    %v2973 = vmax.f32 %v2842, 0.0
    %v2974 = vmax.f32 %v2653, 0.0
    %v2975 = vmax.f32 %v2655, 0.0
    %v2976 = vmax.f32 %v2846, 0.0
    %v2977 = vmax.f32 %v2848, 0.0
    %v2978 = vmax.f32 %v2657, 0.0
    %v2979 = vmax.f32 %v2659, 0.0
    %v2980 = vmax.f32 %v2850, 0.0
    %v2981 = vmax.f32 %v2852, 0.0
    %v2982 = vpack.c.bf16 %v2858, %v2854
    %v2983 = vpack.c.bf16 %v2859, %v2855
    %v2984 = vpack.c.bf16 %v2860, %v2856
    %v2985 = vpack.c.bf16 %v2861, %v2857
    %v2986 = vpack.c.bf16 %v2866, %v2862
    %v2987 = vpack.c.bf16 %v2867, %v2863
    %v2988 = vpack.c.bf16 %v2868, %v2864
    %v2989 = vpack.c.bf16 %v2869, %v2865
    %v2990 = vpack.c.bf16 %v2874, %v2870
    %v2991 = vpack.c.bf16 %v2875, %v2871
    %v2992 = vpack.c.bf16 %v2876, %v2872
    %v2993 = vpack.c.bf16 %v2877, %v2873
    %v2994 = vpack.c.bf16 %v2882, %v2878
    %v2995 = vpack.c.bf16 %v2883, %v2879
    %v2996 = vpack.c.bf16 %v2884, %v2880
    %v2997 = vpack.c.bf16 %v2885, %v2881
    %v2998 = vpack.c.bf16 %v2890, %v2886
    %v2999 = vpack.c.bf16 %v2891, %v2887
    %v3000 = vpack.c.bf16 %v2892, %v2888
    %v3001 = vpack.c.bf16 %v2893, %v2889
    %v3002 = vpack.c.bf16 %v2898, %v2894
    %v3003 = vpack.c.bf16 %v2899, %v2895
    %v3004 = vpack.c.bf16 %v2900, %v2896
    %v3005 = vpack.c.bf16 %v2901, %v2897
    %v3006 = vpack.c.bf16 %v2906, %v2902
    %v3007 = vpack.c.bf16 %v2907, %v2903
    %v3008 = vpack.c.bf16 %v2908, %v2904
    %v3009 = vpack.c.bf16 %v2909, %v2905
    %v3010 = vpack.c.bf16 %v2914, %v2910
    %v3011 = vpack.c.bf16 %v2915, %v2911
    %v3012 = vpack.c.bf16 %v2916, %v2912
    %v3013 = vpack.c.bf16 %v2917, %v2913
    %v3014 = vpack.c.bf16 %v2922, %v2918
    %v3015 = vpack.c.bf16 %v2923, %v2919
    %v3016 = vpack.c.bf16 %v2924, %v2920
    %v3017 = vpack.c.bf16 %v2925, %v2921
    %v3018 = vpack.c.bf16 %v2930, %v2926
    %v3019 = vpack.c.bf16 %v2931, %v2927
    %v3020 = vpack.c.bf16 %v2932, %v2928
    %v3021 = vpack.c.bf16 %v2933, %v2929
    %v3022 = vpack.c.bf16 %v2938, %v2934
    %v3023 = vpack.c.bf16 %v2939, %v2935
    %v3024 = vpack.c.bf16 %v2940, %v2936
    %v3025 = vpack.c.bf16 %v2941, %v2937
    %v3026 = vpack.c.bf16 %v2946, %v2942
    %v3027 = vpack.c.bf16 %v2947, %v2943
    %v3028 = vpack.c.bf16 %v2948, %v2944
    %v3029 = vpack.c.bf16 %v2949, %v2945
    %v3030 = vpack.c.bf16 %v2954, %v2950
    %v3031 = vpack.c.bf16 %v2955, %v2951
    %v3032 = vpack.c.bf16 %v2956, %v2952
    %v3033 = vpack.c.bf16 %v2957, %v2953
    %v3034 = vpack.c.bf16 %v2962, %v2958
    %v3035 = vpack.c.bf16 %v2963, %v2959
    %v3036 = vpack.c.bf16 %v2964, %v2960
    %v3037 = vpack.c.bf16 %v2965, %v2961
    %v3038 = vpack.c.bf16 %v2970, %v2966
    %v3039 = vpack.c.bf16 %v2971, %v2967
    %v3040 = vpack.c.bf16 %v2972, %v2968
    %v3041 = vpack.c.bf16 %v2973, %v2969
    %v3042 = vpack.c.bf16 %v2978, %v2974
    %v3043 = vpack.c.bf16 %v2979, %v2975
    %v3044 = vpack.c.bf16 %v2980, %v2976
    %v3045 = vpack.c.bf16 %v2981, %v2977
    %v3046 = vld [vmem:[#allocation13] sm:$0xf]
    %v3047 = vld [vmem:[#allocation13 + $0x4] sm:$0xf]
    %v3048 = vld [vmem:[#allocation13 + $0x8] sm:$0xf]
    %v3049 = vld [vmem:[#allocation13 + $0xc] sm:$0xf]
    %v3050 = vld [vmem:[#allocation13 + $0x10] sm:$0xf]
    %v3051 = vld [vmem:[#allocation13 + $0x14] sm:$0xf]
    %v3052 = vld [vmem:[#allocation13 + $0x18] sm:$0xf]
    %v3053 = vld [vmem:[#allocation13 + $0x1c] sm:$0xf]
    %v3054 = vld [vmem:[#allocation13 + $0x20] sm:$0xf]
    %v3055 = vld [vmem:[#allocation13 + $0x24] sm:$0xf]
    %v3056 = vld [vmem:[#allocation13 + $0x28] sm:$0xf]
    %v3057 = vld [vmem:[#allocation13 + $0x2c] sm:$0xf]
    %v3058 = vld [vmem:[#allocation13 + $0x30] sm:$0xf]
    %v3059 = vld [vmem:[#allocation13 + $0x34] sm:$0xf]
    %v3060 = vld [vmem:[#allocation13 + $0x38] sm:$0xf]
    %v3061 = vld [vmem:[#allocation13 + $0x3c] sm:$0xf]
    %v3062 = vld [vmem:[#allocation13 + $0x40] sm:$0xf]
    %v3063 = vld [vmem:[#allocation13 + $0x44] sm:$0xf]
    %v3064 = vld [vmem:[#allocation13 + $0x48] sm:$0xf]
    %v3065 = vld [vmem:[#allocation13 + $0x4c] sm:$0xf]
    %v3066 = vld [vmem:[#allocation13 + $0x50] sm:$0xf]
    %v3067 = vld [vmem:[#allocation13 + $0x54] sm:$0xf]
    %v3068 = vld [vmem:[#allocation13 + $0x58] sm:$0xf]
    %v3069 = vld [vmem:[#allocation13 + $0x5c] sm:$0xf]
    %v3070 = vld [vmem:[#allocation13 + $0x60] sm:$0xf]
    %v3071 = vld [vmem:[#allocation13 + $0x64] sm:$0xf]
    %v3072 = vld [vmem:[#allocation13 + $0x68] sm:$0xf]
    %v3073 = vld [vmem:[#allocation13 + $0x6c] sm:$0xf]
    %v3074 = vld [vmem:[#allocation13 + $0x70] sm:$0xf]
    %v3075 = vld [vmem:[#allocation13 + $0x74] sm:$0xf]
    %v3076 = vld [vmem:[#allocation13 + $0x78] sm:$0xf]
    %v3077 = vld [vmem:[#allocation13 + $0x7c] sm:$0xf]
    %v3078 = vld [vmem:[#allocation13 + $0x80] sm:$0xf]
    %v3079 = vld [vmem:[#allocation13 + $0x84] sm:$0xf]
    %v3080 = vld [vmem:[#allocation13 + $0x88] sm:$0xf]
    %v3081 = vld [vmem:[#allocation13 + $0x8c] sm:$0xf]
    %v3082 = vld [vmem:[#allocation13 + $0x90] sm:$0xf]
    %v3083 = vld [vmem:[#allocation13 + $0x94] sm:$0xf]
    %v3084 = vld [vmem:[#allocation13 + $0x98] sm:$0xf]
    %v3085 = vld [vmem:[#allocation13 + $0x9c] sm:$0xf]
    %v3086 = vld [vmem:[#allocation13 + $0xa0] sm:$0xf]
    %v3087 = vld [vmem:[#allocation13 + $0xa4] sm:$0xf]
    %v3088 = vld [vmem:[#allocation13 + $0xa8] sm:$0xf]
    %v3089 = vld [vmem:[#allocation13 + $0xac] sm:$0xf]
    %v3090 = vld [vmem:[#allocation13 + $0xb0] sm:$0xf]
    %v3091 = vld [vmem:[#allocation13 + $0xb4] sm:$0xf]
    %v3092 = vld [vmem:[#allocation13 + $0xb8] sm:$0xf]
    %v3093 = vld [vmem:[#allocation13 + $0xbc] sm:$0xf]
    %v3094 = vld [vmem:[#allocation13 + $0xc0] sm:$0xf]
    %v3095 = vld [vmem:[#allocation13 + $0xc4] sm:$0xf]
    %v3096 = vld [vmem:[#allocation13 + $0xc8] sm:$0xf]
    %v3097 = vld [vmem:[#allocation13 + $0xcc] sm:$0xf]
    %v3098 = vld [vmem:[#allocation13 + $0xd0] sm:$0xf]
    %v3099 = vld [vmem:[#allocation13 + $0xd4] sm:$0xf]
    %v3100 = vld [vmem:[#allocation13 + $0xd8] sm:$0xf]
    %v3101 = vld [vmem:[#allocation13 + $0xdc] sm:$0xf]
    %v3102 = vld [vmem:[#allocation13 + $0xe0] sm:$0xf]
    %v3103 = vld [vmem:[#allocation13 + $0xe4] sm:$0xf]
    %v3104 = vld [vmem:[#allocation13 + $0xe8] sm:$0xf]
    %v3105 = vld [vmem:[#allocation13 + $0xec] sm:$0xf]
    %v3106 = vld [vmem:[#allocation13 + $0xf0] sm:$0xf]
    %v3107 = vld [vmem:[#allocation13 + $0xf4] sm:$0xf]
    %v3108 = vld [vmem:[#allocation13 + $0xf8] sm:$0xf]
    %v3109 = vld [vmem:[#allocation13 + $0xfc] sm:$0xf]
    %v3110 = vld [vmem:[%s12] sm:$0x1]
    %v3112 = vlaneseq
    %v3113 = vshrl.u32 %v3112, 7
    %v3114 = vsub.s32 0, %v3113
    %v3115 = vrot.slane %v3110, %v3114
    %v3181 = vunpack.c.l.b16 %v3046
    %v3182 = vunpack.c.l.b16 %v3047
    %v3183 = vunpack.c.l.b16 %v3048
    %v3184 = vunpack.c.l.b16 %v3049
    %v3185 = vunpack.c.l.b16 %v3050
    %v3186 = vunpack.c.l.b16 %v3051
    %v3187 = vunpack.c.l.b16 %v3052
    %v3188 = vunpack.c.l.b16 %v3053
    %v3189 = vunpack.c.l.b16 %v3054
    %v3190 = vunpack.c.l.b16 %v3055
    %v3191 = vunpack.c.l.b16 %v3056
    %v3192 = vunpack.c.l.b16 %v3057
    %v3193 = vunpack.c.l.b16 %v3058
    %v3194 = vunpack.c.l.b16 %v3059
    %v3195 = vunpack.c.l.b16 %v3060
    %v3196 = vunpack.c.l.b16 %v3061
    %v3197 = vunpack.c.l.b16 %v3062
    %v3198 = vunpack.c.l.b16 %v3063
    %v3199 = vunpack.c.l.b16 %v3064
    %v3200 = vunpack.c.l.b16 %v3065
    %v3201 = vunpack.c.l.b16 %v3066
    %v3202 = vunpack.c.l.b16 %v3067
    %v3203 = vunpack.c.l.b16 %v3068
    %v3204 = vunpack.c.l.b16 %v3069
    %v3205 = vunpack.c.l.b16 %v3070
    %v3206 = vunpack.c.l.b16 %v3071
    %v3207 = vunpack.c.l.b16 %v3072
    %v3208 = vunpack.c.l.b16 %v3073
    %v3209 = vunpack.c.l.b16 %v3074
    %v3210 = vunpack.c.l.b16 %v3075
    %v3211 = vunpack.c.l.b16 %v3076
    %v3212 = vunpack.c.l.b16 %v3077
    %v3213 = vunpack.c.l.b16 %v3078
    %v3214 = vunpack.c.l.b16 %v3079
    %v3215 = vunpack.c.l.b16 %v3080
    %v3216 = vunpack.c.l.b16 %v3081
    %v3217 = vunpack.c.l.b16 %v3082
    %v3218 = vunpack.c.l.b16 %v3083
    %v3219 = vunpack.c.l.b16 %v3084
    %v3220 = vunpack.c.l.b16 %v3085
    %v3221 = vunpack.c.l.b16 %v3086
    %v3222 = vunpack.c.l.b16 %v3087
    %v3223 = vunpack.c.l.b16 %v3088
    %v3224 = vunpack.c.l.b16 %v3089
    %v3225 = vunpack.c.l.b16 %v3090
    %v3226 = vunpack.c.l.b16 %v3091
    %v3227 = vunpack.c.l.b16 %v3092
    %v3228 = vunpack.c.l.b16 %v3093
    %v3229 = vunpack.c.l.b16 %v3094
    %v3230 = vunpack.c.l.b16 %v3095
    %v3231 = vunpack.c.l.b16 %v3096
    %v3232 = vunpack.c.l.b16 %v3097
    %v3233 = vunpack.c.l.b16 %v3098
    %v3234 = vunpack.c.l.b16 %v3099
    %v3235 = vunpack.c.l.b16 %v3100
    %v3236 = vunpack.c.l.b16 %v3101
    %v3237 = vunpack.c.l.b16 %v3102
    %v3238 = vunpack.c.l.b16 %v3103
    %v3239 = vunpack.c.l.b16 %v3104
    %v3240 = vunpack.c.l.b16 %v3105
    %v3241 = vunpack.c.l.b16 %v3106
    %v3242 = vunpack.c.l.b16 %v3107
    %v3243 = vunpack.c.l.b16 %v3108
    %v3244 = vunpack.c.l.b16 %v3109
    %v3245 = vpack.c.b16 %v3182, %v3181
    %v3246 = vpack.c.b16 %v3184, %v3183
    %v3247 = vpack.c.b16 %v3186, %v3185
    %v3248 = vpack.c.b16 %v3188, %v3187
    %v3249 = vpack.c.b16 %v3190, %v3189
    %v3250 = vpack.c.b16 %v3192, %v3191
    %v3251 = vpack.c.b16 %v3194, %v3193
    %v3252 = vpack.c.b16 %v3196, %v3195
    %v3253 = vpack.c.b16 %v3198, %v3197
    %v3254 = vpack.c.b16 %v3200, %v3199
    %v3255 = vpack.c.b16 %v3202, %v3201
    %v3256 = vpack.c.b16 %v3204, %v3203
    %v3257 = vpack.c.b16 %v3206, %v3205
    %v3258 = vpack.c.b16 %v3208, %v3207
    %v3259 = vpack.c.b16 %v3210, %v3209
    %v3260 = vpack.c.b16 %v3212, %v3211
    %v3261 = vpack.c.b16 %v3214, %v3213
    %v3262 = vpack.c.b16 %v3216, %v3215
    %v3263 = vpack.c.b16 %v3218, %v3217
    %v3264 = vpack.c.b16 %v3220, %v3219
    %v3265 = vpack.c.b16 %v3222, %v3221
    %v3266 = vpack.c.b16 %v3224, %v3223
    %v3267 = vpack.c.b16 %v3226, %v3225
    %v3268 = vpack.c.b16 %v3228, %v3227
    %v3269 = vpack.c.b16 %v3230, %v3229
    %v3270 = vpack.c.b16 %v3232, %v3231
    %v3271 = vpack.c.b16 %v3234, %v3233
    %v3272 = vpack.c.b16 %v3236, %v3235
    %v3273 = vpack.c.b16 %v3238, %v3237
    %v3274 = vpack.c.b16 %v3240, %v3239
    %v3275 = vpack.c.b16 %v3242, %v3241
    %v3276 = vpack.c.b16 %v3244, %v3243
    %3309 = vmatprep.subr.bf16.mxu0 0
    %3310 = vmatpush1.bf16.msra.mxu0 %v3245
    %3311 = vmatprep.subr.bf16.mxu0 0
    %3312 = vmatpush1.bf16.msra.mxu0 %v3246
    %3313 = vmatprep.subr.bf16.mxu0 0
    %3314 = vmatpush1.bf16.msra.mxu0 %v3247
    %3315 = vmatprep.subr.bf16.mxu0 0
    %3316 = vmatpush1.bf16.msra.mxu0 %v3248
    %3317 = vmatprep.subr.bf16.mxu0 0
    %3318 = vmatpush1.bf16.msra.mxu0 %v3249
    %3319 = vmatprep.subr.bf16.mxu0 0
    %3320 = vmatpush1.bf16.msra.mxu0 %v3250
    %3321 = vmatprep.subr.bf16.mxu0 0
    %3322 = vmatpush1.bf16.msra.mxu0 %v3251
    %3323 = vmatprep.subr.bf16.mxu0 0
    %3324 = vmatpush1.bf16.msra.mxu0 %v3252
    %3325 = vmatprep.subr.bf16.mxu0 0
    %3326 = vmatpush1.bf16.msra.mxu0 %v3253
    %3327 = vmatprep.subr.bf16.mxu0 0
    %3328 = vmatpush1.bf16.msra.mxu0 %v3254
    %3329 = vmatprep.subr.bf16.mxu0 0
    %3330 = vmatpush1.bf16.msra.mxu0 %v3255
    %3331 = vmatprep.subr.bf16.mxu0 0
    %3332 = vmatpush1.bf16.msra.mxu0 %v3256
    %3333 = vmatprep.subr.bf16.mxu0 0
    %3334 = vmatpush1.bf16.msra.mxu0 %v3257
    %3335 = vmatprep.subr.bf16.mxu0 0
    %3336 = vmatpush1.bf16.msra.mxu0 %v3258
    %3337 = vmatprep.subr.bf16.mxu0 0
    %3338 = vmatpush1.bf16.msra.mxu0 %v3259
    %3339 = vmatprep.subr.bf16.mxu0 0
    %3340 = vmatpush1.bf16.msra.mxu0 %v3260
    %3341 = vmatprep.mubr.bf16.mxu0 %v2983
    %3342 = vmatmul.mubr.bf16.gmra.mrb[0].mxu0 %v2982
    %v3343 = vpop.f32.mrb[0].mxu0
    %v3344 = vadd.f32 %v3115, %v3343
    %v3345 = vpop.f32.mrb[0].mxu0
    %v3346 = vpop.f32.mrb[0].mxu0
    %v3347 = vadd.f32 %v3115, %v3346
    %v3348 = vpop.f32.mrb[0].mxu0
    %3349 = vmatprep.mubr.bf16.mxu0 %v2987
    %3350 = vmatmul.mubr.bf16.gmra.mrb[0].mxu0 %v2986
    %v3351 = vpop.f32.mrb[0].mxu0
    %v3352 = vadd.f32 %v3115, %v3351
    %v3353 = vpop.f32.mrb[0].mxu0
    %v3354 = vpop.f32.mrb[0].mxu0
    %v3355 = vadd.f32 %v3115, %v3354
    %v3356 = vpop.f32.mrb[0].mxu0
    %3357 = vmatprep.mubr.bf16.mxu0 %v2991
    %3358 = vmatmul.mubr.bf16.gmra.mrb[0].mxu0 %v2990
    %v3359 = vpop.f32.mrb[0].mxu0
    %v3360 = vadd.f32 %v3115, %v3359
    %v3361 = vpop.f32.mrb[0].mxu0
    %v3362 = vpop.f32.mrb[0].mxu0
    %v3363 = vadd.f32 %v3115, %v3362
    %v3364 = vpop.f32.mrb[0].mxu0
    %3365 = vmatprep.mubr.bf16.mxu0 %v2995
    %3366 = vmatmul.mubr.bf16.gmra.mrb[0].mxu0 %v2994
    %v3367 = vpop.f32.mrb[0].mxu0
    %v3368 = vadd.f32 %v3115, %v3367
    %v3369 = vpop.f32.mrb[0].mxu0
    %v3370 = vpop.f32.mrb[0].mxu0
    %v3371 = vadd.f32 %v3115, %v3370
    %v3372 = vpop.f32.mrb[0].mxu0
    %3373 = vmatprep.mubr.bf16.mxu0 %v2999
    %3374 = vmatmul.mubr.bf16.gmra.mrb[0].mxu0 %v2998
    %v3375 = vpop.f32.mrb[0].mxu0
    %v3376 = vadd.f32 %v3115, %v3375
    %v3377 = vpop.f32.mrb[0].mxu0
    %v3378 = vpop.f32.mrb[0].mxu0
    %v3379 = vadd.f32 %v3115, %v3378
    %v3380 = vpop.f32.mrb[0].mxu0
    %3381 = vmatprep.mubr.bf16.mxu0 %v3003
    %3382 = vmatmul.mubr.bf16.gmra.mrb[0].mxu0 %v3002
    %v3383 = vpop.f32.mrb[0].mxu0
    %v3384 = vadd.f32 %v3115, %v3383
    %v3385 = vpop.f32.mrb[0].mxu0
    %v3386 = vpop.f32.mrb[0].mxu0
    %v3387 = vadd.f32 %v3115, %v3386
    %v3388 = vpop.f32.mrb[0].mxu0
    %3389 = vmatprep.mubr.bf16.mxu0 %v3007
    %3390 = vmatmul.mubr.bf16.gmra.mrb[0].mxu0 %v3006
    %v3391 = vpop.f32.mrb[0].mxu0
    %v3392 = vadd.f32 %v3115, %v3391
    %v3393 = vpop.f32.mrb[0].mxu0
    %v3394 = vpop.f32.mrb[0].mxu0
    %v3395 = vadd.f32 %v3115, %v3394
    %v3396 = vpop.f32.mrb[0].mxu0
    %3397 = vmatprep.mubr.bf16.mxu0 %v3011
    %3398 = vmatmul.mubr.bf16.gmra.mrb[0].mxu0 %v3010
    %v3399 = vpop.f32.mrb[0].mxu0
    %v3400 = vadd.f32 %v3115, %v3399
    %v3401 = vpop.f32.mrb[0].mxu0
    %v3402 = vpop.f32.mrb[0].mxu0
    %v3403 = vadd.f32 %v3115, %v3402
    %v3404 = vpop.f32.mrb[0].mxu0
    %3405 = vmatprep.mubr.bf16.mxu0 %v3015
    %3406 = vmatmul.mubr.bf16.gmra.mrb[0].mxu0 %v3014
    %v3407 = vpop.f32.mrb[0].mxu0
    %v3408 = vadd.f32 %v3115, %v3407
    %v3409 = vpop.f32.mrb[0].mxu0
    %v3410 = vpop.f32.mrb[0].mxu0
    %v3411 = vadd.f32 %v3115, %v3410
    %v3412 = vpop.f32.mrb[0].mxu0
    %3413 = vmatprep.mubr.bf16.mxu0 %v3019
    %3414 = vmatmul.mubr.bf16.gmra.mrb[0].mxu0 %v3018
    %v3415 = vpop.f32.mrb[0].mxu0
    %v3416 = vadd.f32 %v3115, %v3415
    %v3417 = vpop.f32.mrb[0].mxu0
    %v3418 = vpop.f32.mrb[0].mxu0
    %v3419 = vadd.f32 %v3115, %v3418
    %v3420 = vpop.f32.mrb[0].mxu0
    %3421 = vmatprep.mubr.bf16.mxu0 %v3023
    %3422 = vmatmul.mubr.bf16.gmra.mrb[0].mxu0 %v3022
    %v3423 = vpop.f32.mrb[0].mxu0
    %v3424 = vadd.f32 %v3115, %v3423
    %v3425 = vpop.f32.mrb[0].mxu0
    %v3426 = vpop.f32.mrb[0].mxu0
    %v3427 = vadd.f32 %v3115, %v3426
    %v3428 = vpop.f32.mrb[0].mxu0
    %3429 = vmatprep.mubr.bf16.mxu0 %v3027
    %3430 = vmatmul.mubr.bf16.gmra.mrb[0].mxu0 %v3026
    %v3431 = vpop.f32.mrb[0].mxu0
    %v3432 = vadd.f32 %v3115, %v3431
    %v3433 = vpop.f32.mrb[0].mxu0
    %v3434 = vpop.f32.mrb[0].mxu0
    %v3435 = vadd.f32 %v3115, %v3434
    %v3436 = vpop.f32.mrb[0].mxu0
    %3437 = vmatprep.mubr.bf16.mxu0 %v3031
    %3438 = vmatmul.mubr.bf16.gmra.mrb[0].mxu0 %v3030
    %v3439 = vpop.f32.mrb[0].mxu0
    %v3440 = vadd.f32 %v3115, %v3439
    %v3441 = vpop.f32.mrb[0].mxu0
    %v3442 = vpop.f32.mrb[0].mxu0
    %v3443 = vadd.f32 %v3115, %v3442
    %v3444 = vpop.f32.mrb[0].mxu0
    %3445 = vmatprep.mubr.bf16.mxu0 %v3035
    %3446 = vmatmul.mubr.bf16.gmra.mrb[0].mxu0 %v3034
    %v3447 = vpop.f32.mrb[0].mxu0
    %v3448 = vadd.f32 %v3115, %v3447
    %v3449 = vpop.f32.mrb[0].mxu0
    %v3450 = vpop.f32.mrb[0].mxu0
    %v3451 = vadd.f32 %v3115, %v3450
    %v3452 = vpop.f32.mrb[0].mxu0
    %3453 = vmatprep.mubr.bf16.mxu0 %v3039
    %3454 = vmatmul.mubr.bf16.gmra.mrb[0].mxu0 %v3038
    %v3455 = vpop.f32.mrb[0].mxu0
    %v3456 = vadd.f32 %v3115, %v3455
    %v3457 = vpop.f32.mrb[0].mxu0
    %v3458 = vpop.f32.mrb[0].mxu0
    %v3459 = vadd.f32 %v3115, %v3458
    %v3460 = vpop.f32.mrb[0].mxu0
    %3461 = vmatprep.mubr.bf16.mxu0 %v3043
    %3462 = vmatmul.mubr.bf16.gmra.mrb[0].mxu0 %v3042
    %v3463 = vpop.f32.mrb[0].mxu0
    %v3464 = vadd.f32 %v3115, %v3463
    %v3465 = vpop.f32.mrb[0].mxu0
    %v3466 = vpop.f32.mrb[0].mxu0
    %v3467 = vadd.f32 %v3115, %v3466
    %v3468 = vpop.f32.mrb[0].mxu0
    %3469 = vdwg.mxu0
    %3470 = vmatprep.subr.bf16.mxu0 0
    %3471 = vmatpush1.bf16.msra.mxu0 %v3261
    %3472 = vmatprep.subr.bf16.mxu0 0
    %3473 = vmatpush1.bf16.msra.mxu0 %v3262
    %3474 = vmatprep.subr.bf16.mxu0 0
    %3475 = vmatpush1.bf16.msra.mxu0 %v3263
    %3476 = vmatprep.subr.bf16.mxu0 0
    %3477 = vmatpush1.bf16.msra.mxu0 %v3264
    %3478 = vmatprep.subr.bf16.mxu0 0
    %3479 = vmatpush1.bf16.msra.mxu0 %v3265
    %3480 = vmatprep.subr.bf16.mxu0 0
    %3481 = vmatpush1.bf16.msra.mxu0 %v3266
    %3482 = vmatprep.subr.bf16.mxu0 0
    %3483 = vmatpush1.bf16.msra.mxu0 %v3267
    %3484 = vmatprep.subr.bf16.mxu0 0
    %3485 = vmatpush1.bf16.msra.mxu0 %v3268
    %3486 = vmatprep.subr.bf16.mxu0 0
    %3487 = vmatpush1.bf16.msra.mxu0 %v3269
    %3488 = vmatprep.subr.bf16.mxu0 0
    %3489 = vmatpush1.bf16.msra.mxu0 %v3270
    %3490 = vmatprep.subr.bf16.mxu0 0
    %3491 = vmatpush1.bf16.msra.mxu0 %v3271
    %3492 = vmatprep.subr.bf16.mxu0 0
    %3493 = vmatpush1.bf16.msra.mxu0 %v3272
    %3494 = vmatprep.subr.bf16.mxu0 0
    %3495 = vmatpush1.bf16.msra.mxu0 %v3273
    %3496 = vmatprep.subr.bf16.mxu0 0
    %3497 = vmatpush1.bf16.msra.mxu0 %v3274
    %3498 = vmatprep.subr.bf16.mxu0 0
    %3499 = vmatpush1.bf16.msra.mxu0 %v3275
    %3500 = vmatprep.subr.bf16.mxu0 0
    %3501 = vmatpush1.bf16.msra.mxu0 %v3276
    %3502 = vmatprep.mubr.bf16.mxu0 %v2985
    %3503 = vmatmul.mubr.bf16.gmra.mrb[0].mxu0 %v2984
    %v3504 = vpop.f32.mrb[0].mxu0
    %v3505 = vadd.f32 %v3344, %v3504
    %v3506 = vpop.f32.mrb[0].mxu0
    %v3507 = vpop.f32.mrb[0].mxu0
    %v3508 = vadd.f32 %v3347, %v3507
    %v3509 = vpop.f32.mrb[0].mxu0
    %3510 = vmatprep.mubr.bf16.mxu0 %v2989
    %3511 = vmatmul.mubr.bf16.gmra.mrb[0].mxu0 %v2988
    %v3512 = vpop.f32.mrb[0].mxu0
    %v3513 = vadd.f32 %v3352, %v3512
    %v3514 = vpop.f32.mrb[0].mxu0
    %v3515 = vpop.f32.mrb[0].mxu0
    %v3516 = vadd.f32 %v3355, %v3515
    %v3517 = vpop.f32.mrb[0].mxu0
    %3518 = vmatprep.mubr.bf16.mxu0 %v2993
    %3519 = vmatmul.mubr.bf16.gmra.mrb[0].mxu0 %v2992
    %v3520 = vpop.f32.mrb[0].mxu0
    %v3521 = vadd.f32 %v3360, %v3520
    %v3522 = vpop.f32.mrb[0].mxu0
    %v3523 = vpop.f32.mrb[0].mxu0
    %v3524 = vadd.f32 %v3363, %v3523
    %v3525 = vpop.f32.mrb[0].mxu0
    %3526 = vmatprep.mubr.bf16.mxu0 %v2997
    %3527 = vmatmul.mubr.bf16.gmra.mrb[0].mxu0 %v2996
    %v3528 = vpop.f32.mrb[0].mxu0
    %v3529 = vadd.f32 %v3368, %v3528
    %v3530 = vpop.f32.mrb[0].mxu0
    %v3531 = vpop.f32.mrb[0].mxu0
    %v3532 = vadd.f32 %v3371, %v3531
    %v3533 = vpop.f32.mrb[0].mxu0
    %3534 = vmatprep.mubr.bf16.mxu0 %v3001
    %3535 = vmatmul.mubr.bf16.gmra.mrb[0].mxu0 %v3000
    %v3536 = vpop.f32.mrb[0].mxu0
    %v3537 = vadd.f32 %v3376, %v3536
    %v3538 = vpop.f32.mrb[0].mxu0
    %v3539 = vpop.f32.mrb[0].mxu0
    %v3540 = vadd.f32 %v3379, %v3539
    %v3541 = vpop.f32.mrb[0].mxu0
    %3542 = vmatprep.mubr.bf16.mxu0 %v3005
    %3543 = vmatmul.mubr.bf16.gmra.mrb[0].mxu0 %v3004
    %v3544 = vpop.f32.mrb[0].mxu0
    %v3545 = vadd.f32 %v3384, %v3544
    %v3546 = vpop.f32.mrb[0].mxu0
    %v3547 = vpop.f32.mrb[0].mxu0
    %v3548 = vadd.f32 %v3387, %v3547
    %v3549 = vpop.f32.mrb[0].mxu0
    %3550 = vmatprep.mubr.bf16.mxu0 %v3009
    %3551 = vmatmul.mubr.bf16.gmra.mrb[0].mxu0 %v3008
    %v3552 = vpop.f32.mrb[0].mxu0
    %v3553 = vadd.f32 %v3392, %v3552
    %v3554 = vpop.f32.mrb[0].mxu0
    %v3555 = vpop.f32.mrb[0].mxu0
    %v3556 = vadd.f32 %v3395, %v3555
    %v3557 = vpop.f32.mrb[0].mxu0
    %3558 = vmatprep.mubr.bf16.mxu0 %v3013
    %3559 = vmatmul.mubr.bf16.gmra.mrb[0].mxu0 %v3012
    %v3560 = vpop.f32.mrb[0].mxu0
    %v3561 = vadd.f32 %v3400, %v3560
    %v3562 = vpop.f32.mrb[0].mxu0
    %v3563 = vpop.f32.mrb[0].mxu0
    %v3564 = vadd.f32 %v3403, %v3563
    %v3565 = vpop.f32.mrb[0].mxu0
    %3566 = vmatprep.mubr.bf16.mxu0 %v3017
    %3567 = vmatmul.mubr.bf16.gmra.mrb[0].mxu0 %v3016
    %v3568 = vpop.f32.mrb[0].mxu0
    %v3569 = vadd.f32 %v3408, %v3568
    %v3570 = vpop.f32.mrb[0].mxu0
    %v3571 = vpop.f32.mrb[0].mxu0
    %v3572 = vadd.f32 %v3411, %v3571
    %v3573 = vpop.f32.mrb[0].mxu0
    %3574 = vmatprep.mubr.bf16.mxu0 %v3021
    %3575 = vmatmul.mubr.bf16.gmra.mrb[0].mxu0 %v3020
    %v3576 = vpop.f32.mrb[0].mxu0
    %v3577 = vadd.f32 %v3416, %v3576
    %v3578 = vpop.f32.mrb[0].mxu0
    %v3579 = vpop.f32.mrb[0].mxu0
    %v3580 = vadd.f32 %v3419, %v3579
    %v3581 = vpop.f32.mrb[0].mxu0
    %3582 = vmatprep.mubr.bf16.mxu0 %v3025
    %3583 = vmatmul.mubr.bf16.gmra.mrb[0].mxu0 %v3024
    %v3584 = vpop.f32.mrb[0].mxu0
    %v3585 = vadd.f32 %v3424, %v3584
    %v3586 = vpop.f32.mrb[0].mxu0
    %v3587 = vpop.f32.mrb[0].mxu0
    %v3588 = vadd.f32 %v3427, %v3587
    %v3589 = vpop.f32.mrb[0].mxu0
    %3590 = vmatprep.mubr.bf16.mxu0 %v3029
    %3591 = vmatmul.mubr.bf16.gmra.mrb[0].mxu0 %v3028
    %v3592 = vpop.f32.mrb[0].mxu0
    %v3593 = vadd.f32 %v3432, %v3592
    %v3594 = vpop.f32.mrb[0].mxu0
    %v3595 = vpop.f32.mrb[0].mxu0
    %v3596 = vadd.f32 %v3435, %v3595
    %v3597 = vpop.f32.mrb[0].mxu0
    %3598 = vmatprep.mubr.bf16.mxu0 %v3033
    %3599 = vmatmul.mubr.bf16.gmra.mrb[0].mxu0 %v3032
    %v3600 = vpop.f32.mrb[0].mxu0
    %v3601 = vadd.f32 %v3440, %v3600
    %v3602 = vpop.f32.mrb[0].mxu0
    %v3603 = vpop.f32.mrb[0].mxu0
    %v3604 = vadd.f32 %v3443, %v3603
    %v3605 = vpop.f32.mrb[0].mxu0
    %3606 = vmatprep.mubr.bf16.mxu0 %v3037
    %3607 = vmatmul.mubr.bf16.gmra.mrb[0].mxu0 %v3036
    %v3608 = vpop.f32.mrb[0].mxu0
    %v3609 = vadd.f32 %v3448, %v3608
    %v3610 = vpop.f32.mrb[0].mxu0
    %v3611 = vpop.f32.mrb[0].mxu0
    %v3612 = vadd.f32 %v3451, %v3611
    %v3613 = vpop.f32.mrb[0].mxu0
    %3614 = vmatprep.mubr.bf16.mxu0 %v3041
    %3615 = vmatmul.mubr.bf16.gmra.mrb[0].mxu0 %v3040
    %v3616 = vpop.f32.mrb[0].mxu0
    %v3617 = vadd.f32 %v3456, %v3616
    %v3618 = vpop.f32.mrb[0].mxu0
    %v3619 = vpop.f32.mrb[0].mxu0
    %v3620 = vadd.f32 %v3459, %v3619
    %v3621 = vpop.f32.mrb[0].mxu0
    %3622 = vmatprep.mubr.bf16.mxu0 %v3045
    %3623 = vmatmul.mubr.bf16.gmra.mrb[0].mxu0 %v3044
    %v3624 = vpop.f32.mrb[0].mxu0
    %v3625 = vadd.f32 %v3464, %v3624
    %v3626 = vpop.f32.mrb[0].mxu0
    %v3627 = vpop.f32.mrb[0].mxu0
    %v3628 = vadd.f32 %v3467, %v3627
    %v3629 = vpop.f32.mrb[0].mxu0
    %3630 = vdwg.mxu0
    %3631 = vst [vmem:[#allocation14] sm:$0xff] %v3505
    %3632 = vst [vmem:[#allocation14 + $0x8] sm:$0xff] %v3508
    %3633 = vst [vmem:[#allocation14 + $0x10] sm:$0xff] %v3513
    %3634 = vst [vmem:[#allocation14 + $0x18] sm:$0xff] %v3516
    %3635 = vst [vmem:[#allocation14 + $0x20] sm:$0xff] %v3521
    %3636 = vst [vmem:[#allocation14 + $0x28] sm:$0xff] %v3524
    %3637 = vst [vmem:[#allocation14 + $0x30] sm:$0xff] %v3529
    %3638 = vst [vmem:[#allocation14 + $0x38] sm:$0xff] %v3532
    %3639 = vst [vmem:[#allocation14 + $0x40] sm:$0xff] %v3537
    %3640 = vst [vmem:[#allocation14 + $0x48] sm:$0xff] %v3540
    %3641 = vst [vmem:[#allocation14 + $0x50] sm:$0xff] %v3545
    %3642 = vst [vmem:[#allocation14 + $0x58] sm:$0xff] %v3548
    %3643 = vst [vmem:[#allocation14 + $0x60] sm:$0xff] %v3553
    %3644 = vst [vmem:[#allocation14 + $0x68] sm:$0xff] %v3556
    %3645 = vst [vmem:[#allocation14 + $0x70] sm:$0xff] %v3561
    %3646 = vst [vmem:[#allocation14 + $0x78] sm:$0xff] %v3564
    %3647 = vst [vmem:[#allocation14 + $0x80] sm:$0xff] %v3569
    %3648 = vst [vmem:[#allocation14 + $0x88] sm:$0xff] %v3572
    %3649 = vst [vmem:[#allocation14 + $0x90] sm:$0xff] %v3577
    %3650 = vst [vmem:[#allocation14 + $0x98] sm:$0xff] %v3580
    %3651 = vst [vmem:[#allocation14 + $0xa0] sm:$0xff] %v3585
    %3652 = vst [vmem:[#allocation14 + $0xa8] sm:$0xff] %v3588
    %3653 = vst [vmem:[#allocation14 + $0xb0] sm:$0xff] %v3593
    %3654 = vst [vmem:[#allocation14 + $0xb8] sm:$0xff] %v3596
    %3655 = vst [vmem:[#allocation14 + $0xc0] sm:$0xff] %v3601
    %3656 = vst [vmem:[#allocation14 + $0xc8] sm:$0xff] %v3604
    %3657 = vst [vmem:[#allocation14 + $0xd0] sm:$0xff] %v3609
    %3658 = vst [vmem:[#allocation14 + $0xd8] sm:$0xff] %v3612
    %3659 = vst [vmem:[#allocation14 + $0xe0] sm:$0xff] %v3617
    %3660 = vst [vmem:[#allocation14 + $0xe8] sm:$0xff] %v3620
    %3661 = vst [vmem:[#allocation14 + $0xf0] sm:$0xff] %v3625
    %3662 = vst [vmem:[#allocation14 + $0xf8] sm:$0xff] %v3628
    // Predicated region
    $region82: #{tpu_custom_call.1} parent=1 // pred_check
      _
    $region83: #{tpu_custom_call.1} parent=1 // pred_check_branch
      %3664 = sbr.rel (0) target = $region85
    $region84: #{tpu_custom_call.1} parent=1 // pred_region
      %s3666 = ssub.s32 4096, 4096
      %3667 = vsyncadd [#allocation4], %s3666
      %s3668 = sshll.u32 [#allocation14], 4
      %s3669 = int_to_ptr.vmem [resolvable:$true] %s3668
      %3674 = dma.vmem_to_hbm [thread:$0]  %s3669, 4096, %s13, [#allocation4], 128, 128, 8
    $region85: #{tpu_custom_call.1} parent=1 // pred_fallthru
      _
    // Predicated region
    $region86: #{tpu_custom_call.1} parent=1 // pred_check
      _
    $region87: #{tpu_custom_call.1} parent=1 // pred_check_branch
      %3676 = sbr.rel (0) target = $region89
    $region88: #{tpu_custom_call.1} parent=1 // pred_region
      %3677 = dma.done [#allocation4], 4096
    $region89: #{tpu_custom_call.1} parent=1 // pred_fallthru
      _
    %3678 = vsyncpa [#allocation3], 1
    %3679 = vsyncpa [#allocation6], 1
    %3680 = vsyncpa [#allocation9], 1
    %3681 = vsyncpa [#allocation12], 1
    %3682 = vsyncpa [#allocation4], 1

</llo_original>
